<compile_context>
chip_gen: v7x
topology: tpu7x:2x2x1
jax: 0.10.0
libtpu: 0.0.40
codegen_flags: <defaults>
</compile_context>

<pallas_src>
import jax
import jax.numpy as jnp
from jax.experimental import pallas as pl
from jax.experimental.pallas import tpu as pltpu


def _make_tcn_kernel(layer_cfgs, K, tile_l):
    """layer_cfgs: tuple of (c_in, c_out, dilation, pad, has_downsample)."""
    refs_per_layer = 2 * K + 2       # conv1: (K-1) taps + last + bias; conv2: same
    n_wrefs = len(layer_cfgs) * refs_per_layer

    def kernel(*refs):
        x_ref = refs[0]
        w_refs = refs[1:1 + n_wrefs]
        out_ref = refs[1 + n_wrefs]
        stage_refs = refs[2 + n_wrefs:]

        # First time tile of a new batch sample: clear the carried causal
        # history.  Correct only because the time axis is innermost and
        # sequential ("arbitrary") -- never reorder the grid or mark it
        # "parallel".
        @pl.when(pl.program_id(1) == 0)
        def _():
            for s in stage_refs:
                s[...] = jnp.zeros_like(s)

        def tap_sum(act_bf, tap_ws, stage, dilation, pad):
            # Accumulated matmuls for taps k = 0 .. K-2 (the time-shifted ones).
            # stage: (C, pad + T) bf16; [:, :pad] holds the previous tile's tail
            # (zeros at t = 0) == the causal left pad.
            stage[:, pad:] = act_bf                        # current tile
            acc = None
            for k in range(K - 1):
                t = stage[:, k * dilation:k * dilation + tile_l]
                d = jnp.dot(tap_ws[k][...], t, preferred_element_type=jnp.float32)
                acc = d if acc is None else acc + d
            # Carry the last `pad` steps for the next tile (after the tap reads).
            stage[:, :pad] = act_bf[:, tile_l - pad:]
            return acc

        act_bf = x_ref[0]                                  # (C_in0, T), already bf16
        y = None
        wi = 0
        si = 0
        for (c_in, c_out, dilation, pad, has_ds) in layer_cfgs:
            w1_taps = w_refs[wi:wi + K - 1]; wi += K - 1
            w1_last = w_refs[wi]; wi += 1                  # downsample rows folded in
            b1_full = w_refs[wi]; wi += 1
            w2_taps = w_refs[wi:wi + K - 1]; wi += K - 1
            w2_last = w_refs[wi]; wi += 1
            b2 = w_refs[wi]; wi += 1
            stage1, stage2 = stage_refs[si], stage_refs[si + 1]; si += 2

            # ---- conv1 (+ folded 1x1 downsample residual) ----
            # Tap K-1 needs no time shift -> feed act_bf directly; with the
            # downsample stacked as extra output rows, this single matmul yields
            # both conv1's last-tap term and the residual.
            y1 = jnp.dot(w1_last[...], act_bf,
                         preferred_element_type=jnp.float32) + b1_full[...]
            s1 = tap_sum(act_bf, w1_taps, stage1, dilation, pad)
            if has_ds:
                pre1 = y1[:c_out] + s1
                res = y1[c_out:]                           # 1x1 downsample output
            else:
                pre1 = y1 + s1
                res = act_bf                               # identity residual (bf16)
            h1 = jnp.maximum(pre1, 0.0)
            # dropout1: identity (eval mode)
            h1_bf = h1.astype(jnp.bfloat16)                # single cast, reused below

            # ---- conv2 ----
            y2 = jnp.dot(w2_last[...], h1_bf,
                         preferred_element_type=jnp.float32) + b2[...]
            pre2 = y2 + tap_sum(h1_bf, w2_taps, stage2, dilation, pad)
            h2 = jnp.maximum(pre2, 0.0)
            # dropout2: identity (eval mode)
            # TODO(synk): training-mode stochastic dropout not implemented
            # (would use pltpu.prng_seed / pltpu.stateful_bernoulli).

            y = jnp.maximum(h2 + res.astype(jnp.float32), 0.0)
            act_bf = y.astype(jnp.bfloat16)                # next layer input

        out_ref[0] = y.astype(out_ref.dtype)

    return kernel


def tcn_forward(x, layer_params, kernel_size, *, tile_l=512,
                out_dtype=jnp.bfloat16):
    """Fused TCN forward.

    x:            (N, C_in, L) float32 (PyTorch Conv1d layout, no transposes).
                  NOTE: the input (and hence the residual path) is bf16 at the
                  call boundary -- an inference-accuracy choice.
    layer_params: list of (W1, b1, W2, b2, Wd, bd) per TemporalBlock in PyTorch
                  layouts: W* (C_out, C_in, K), Wd (C_out, C_in, 1); Wd/bd are
                  None when C_in == C_out (identity residual).
    """
    N, c_in0, L = x.shape
    K = kernel_size
    assert K >= 2, "TemporalBlock uses kernel_size >= 2"
    tile_l = min(tile_l, L)
    assert L % tile_l == 0, "sequence length must be a multiple of the time tile"
    n_tiles = L // tile_l

    flat_inputs = [x.astype(jnp.bfloat16)]          # single bf16 input stream
    in_specs = [pl.BlockSpec((1, c_in0, tile_l), lambda n, l: (n, 0, l))]
    # TODO(synk): when per-tile compute is long, add pipeline_mode=pl.Buffered(3)
    # on this spec and sweep buffer depth to hide the remaining input DMA.
    scratch_shapes = []
    layer_cfgs = []
    weight_bytes = 0

    def const_spec(arr):
        # Grid-invariant (resident) weights/biases.
        # TODO(synk): on v7x (64 MiB VMEM) at production channel widths, add
        # pipeline_mode=pl.Buffered(1) here to single-buffer these residents
        # (Pallas double-buffers every input by default).
        return pl.BlockSpec(arr.shape, lambda n, l: (0, 0))

    c_in = c_in0
    for i, (W1, b1, W2, b2, Wd, bd) in enumerate(layer_params):
        c_out = W1.shape[0]
        dilation = 2 ** i
        pad = (K - 1) * dilation
        assert pad <= tile_l, (
            f"layer {i}: causal pad {pad} exceeds time tile {tile_l}; "
            "raise tile_l for deeper dilations")
        has_ds = Wd is not None

        # conv1: one (rows, C_in) bf16 matrix per tap.  The last tap carries the
        # 1x1 downsample stacked as extra output rows (tap K-1 multiplies x[t],
        # which is exactly what the 1x1 residual conv needs).
        w1_taps = [W1[:, :, k].astype(jnp.bfloat16) for k in range(K - 1)]
        w1_last = W1[:, :, K - 1]
        b1_full = b1
        if has_ds:
            w1_last = jnp.concatenate([w1_last, Wd[:, :, 0]], axis=0)
            b1_full = jnp.concatenate([b1, bd], axis=0)
        w1_last = w1_last.astype(jnp.bfloat16)
        b1_full = b1_full.reshape(-1, 1).astype(jnp.float32)

        w2_taps = [W2[:, :, k].astype(jnp.bfloat16) for k in range(K - 1)]
        w2_last = W2[:, :, K - 1].astype(jnp.bfloat16)
        b2_col = b2.reshape(-1, 1).astype(jnp.float32)

        layer_inputs = w1_taps + [w1_last, b1_full] + w2_taps + [w2_last, b2_col]
        flat_inputs += layer_inputs
        in_specs += [const_spec(a) for a in layer_inputs]
        weight_bytes += sum(int(a.size) * a.dtype.itemsize for a in layer_inputs)

        # Per-conv bf16 causal staging buffers: [prev-tile tail (pad) | tile].
        scratch_shapes += [pltpu.VMEM((c_in, pad + tile_l), jnp.bfloat16),
                           pltpu.VMEM((c_out, pad + tile_l), jnp.bfloat16)]

        layer_cfgs.append((c_in, c_out, dilation, pad, has_ds))
        c_in = c_out

    c_out_last = layer_cfgs[-1][1]

    # Explicit VMEM budget (review: v7x has only 64 MiB): double-buffered x/out
    # tiles, double-buffered resident weights, staging scratch, plus headroom
    # for the live f32 intermediates.  Floor at 32 MiB, cap at v7x's 64 MiB
    # (raise the cap on v5e/v6e if production sizes need it).
    out_itemsize = jnp.dtype(out_dtype).itemsize
    x_blk = c_in0 * tile_l * 2
    out_blk = c_out_last * tile_l * out_itemsize
    stage_bytes = sum((ci + co) * (p + tile_l) * 2
                      for (ci, co, _, p, _) in layer_cfgs)
    max_c = max(co for (_, co, _, _, _) in layer_cfgs)
    interm_bytes = 8 * max_c * tile_l * 4
    est = 2 * (x_blk + out_blk) + 2 * weight_bytes + stage_bytes + interm_bytes
    vmem_limit = int(min(max(2 * est, 32 << 20), 64 << 20))

    kernel = _make_tcn_kernel(tuple(layer_cfgs), K, tile_l)

    return pl.pallas_call(
        kernel,
        out_shape=jax.ShapeDtypeStruct((N, c_out_last, L), out_dtype),
        grid=(N, n_tiles),
        in_specs=in_specs,
        out_specs=pl.BlockSpec((1, c_out_last, tile_l), lambda n, l: (n, 0, l)),
        scratch_shapes=scratch_shapes,
        compiler_params=pltpu.CompilerParams(
            # Batch samples are independent (megacore sharding); the time axis
            # carries causal history in scratch so it must stay sequential.
            dimension_semantics=("parallel", "arbitrary"),
            vmem_limit_bytes=vmem_limit),
    )(*flat_inputs)
    # TODO(synk): for v7x single-sequence inference (N < 2), split the time axis
    # across the 2 TensorCores (halo = total receptive field) instead of batch.
    # TODO(synk): batching B_TILE samples onto the lane axis of the matmul RHS
    # (per-sample history slices) would further fill the 256-wide MXU on v6e/v7x.


# ------------------------- pure-JAX reference (f32) -------------------------
def _ref_tcn_forward(x, layer_params, kernel_size):
    def conv1d(inp, w, b, dilation, pad):
        y = jax.lax.conv_general_dilated(
            inp, w, window_strides=(1,), padding=[(pad, pad)],
            rhs_dilation=(dilation,), dimension_numbers=('NCH', 'OIH', 'NCH'))
        return y + b[None, :, None]

    out = x
    for i, (W1, b1, W2, b2, Wd, bd) in enumerate(layer_params):
        dilation = 2 ** i
        pad = (kernel_size - 1) * dilation
        h = conv1d(out, W1, b1, dilation, pad)
        h = jnp.maximum(h[:, :, :-pad], 0.0)               # chomp1 + relu1
        h = conv1d(h, W2, b2, dilation, pad)
        h = jnp.maximum(h[:, :, :-pad], 0.0)               # chomp2 + relu2
        res = out if Wd is None else conv1d(out, Wd, bd, 1, 0)
        out = jnp.maximum(h + res, 0.0)
    return out


if __name__ == "__main__":
    # Small TCN: num_inputs=4, num_channels=(8, 16, 16) -> layers with and
    # without a downsample conv; dilations 1, 2, 4.  L=1024 with the default
    # tile_l=512 gives 2 time tiles, exercising the cross-tile history carry.
    N, num_inputs, L = 2, 4, 1024
    num_channels = (8, 16, 16)
    kernel_size = 3
    dropout = 0.2                                   # identity at inference

    key = jax.random.PRNGKey(0)

    # weight_norm parametrization W = g * v / ||v||_2 (norm per out-channel over
    # (in, k)); folded into the effective weight on the host.
    def weight_norm_conv_weight(k, c_out, c_in, ksz):
        kv, kg = jax.random.split(k)
        v = jax.random.normal(kv, (c_out, c_in, ksz), jnp.float32) / jnp.sqrt(c_in * ksz)
        g = 1.0 + 0.1 * jax.random.normal(kg, (c_out, 1, 1), jnp.float32)
        norm = jnp.sqrt(jnp.sum(v * v, axis=(1, 2), keepdims=True))
        return g * v / norm

    layer_params = []
    c_in = num_inputs
    for i, c_out in enumerate(num_channels):
        key, k1, k2, k3, k4, k5, k6 = jax.random.split(key, 7)
        W1 = weight_norm_conv_weight(k1, c_out, c_in, kernel_size)
        b1 = 0.1 * jax.random.normal(k2, (c_out,), jnp.float32)
        W2 = weight_norm_conv_weight(k3, c_out, c_out, kernel_size)
        b2 = 0.1 * jax.random.normal(k4, (c_out,), jnp.float32)
        if c_in != c_out:
            Wd = jax.random.normal(k5, (c_out, c_in, 1), jnp.float32) / jnp.sqrt(c_in)
            bd = 0.1 * jax.random.normal(k6, (c_out,), jnp.float32)
        else:
            Wd, bd = None, None
        layer_params.append((W1, b1, W2, b2, Wd, bd))
        c_in = c_out

    x = jax.random.normal(key, (N, num_inputs, L), jnp.float32)

    out = tcn_forward(x, layer_params, kernel_size)          # bf16 out by default
    out = jax.block_until_ready(out)

    ref = _ref_tcn_forward(x, layer_params, kernel_size)
    assert out.shape == (N, num_channels[-1], L)
    out_f32 = out.astype(jnp.float32)
    # Kernel uses bf16 MXU operands, bf16 inter-layer activations / history /
    # residual and a bf16 output, with f32 accumulation -> loose tolerance vs
    # the pure-f32 reference.  Any indexing/history bug produces O(1) errors,
    # far past this bound.
    max_err = float(jnp.max(jnp.abs(out_f32 - ref)))
    assert jnp.allclose(out_f32, ref, rtol=5e-2, atol=1e-1), \
        f"mismatch vs reference, max abs err {max_err}"

    print("KERNEL_OK")
</pallas_src>

<mosaic_0001>
module attributes {stable_mosaic.version = 11 : i64} {
  func.func @kernel(%arg0: i32, %arg1: i32, %arg2: memref<1x4x512xbf16, #tpu.memory_space<vmem>>, %arg3: memref<8x4xbf16, #tpu.memory_space<vmem>>, %arg4: memref<8x4xbf16, #tpu.memory_space<vmem>>, %arg5: memref<16x4xbf16, #tpu.memory_space<vmem>>, %arg6: memref<16x1xf32, #tpu.memory_space<vmem>>, %arg7: memref<8x8xbf16, #tpu.memory_space<vmem>>, %arg8: memref<8x8xbf16, #tpu.memory_space<vmem>>, %arg9: memref<8x8xbf16, #tpu.memory_space<vmem>>, %arg10: memref<8x1xf32, #tpu.memory_space<vmem>>, %arg11: memref<16x8xbf16, #tpu.memory_space<vmem>>, %arg12: memref<16x8xbf16, #tpu.memory_space<vmem>>, %arg13: memref<32x8xbf16, #tpu.memory_space<vmem>>, %arg14: memref<32x1xf32, #tpu.memory_space<vmem>>, %arg15: memref<16x16xbf16, #tpu.memory_space<vmem>>, %arg16: memref<16x16xbf16, #tpu.memory_space<vmem>>, %arg17: memref<16x16xbf16, #tpu.memory_space<vmem>>, %arg18: memref<16x1xf32, #tpu.memory_space<vmem>>, %arg19: memref<16x16xbf16, #tpu.memory_space<vmem>>, %arg20: memref<16x16xbf16, #tpu.memory_space<vmem>>, %arg21: memref<16x16xbf16, #tpu.memory_space<vmem>>, %arg22: memref<16x1xf32, #tpu.memory_space<vmem>>, %arg23: memref<16x16xbf16, #tpu.memory_space<vmem>>, %arg24: memref<16x16xbf16, #tpu.memory_space<vmem>>, %arg25: memref<16x16xbf16, #tpu.memory_space<vmem>>, %arg26: memref<16x1xf32, #tpu.memory_space<vmem>>, %arg27: memref<1x16x512xbf16, #tpu.memory_space<vmem>>, %arg28: memref<4x514xbf16, #tpu.memory_space<vmem>>, %arg29: memref<8x514xbf16, #tpu.memory_space<vmem>>, %arg30: memref<8x516xbf16, #tpu.memory_space<vmem>>, %arg31: memref<16x516xbf16, #tpu.memory_space<vmem>>, %arg32: memref<16x520xbf16, #tpu.memory_space<vmem>>, %arg33: memref<16x520xbf16, #tpu.memory_space<vmem>>) attributes {dimension_semantics = [#tpu.dimension_semantics<parallel>, #tpu.dimension_semantics<arbitrary>], iteration_bounds = array<i64: 2, 2>, scalar_prefetch = 0 : i64, scratch_operands = 6 : i64, tpu.core_type = #tpu.core_type<tc>, window_params = [{transform_indices = @transform_0, window_bounds = array<i64: 1, 4, 512>}, {pipeline_mode = #tpu.pipeline_mode<synchronous>, transform_indices = @transform_1, window_bounds = array<i64: 8, 4>}, {pipeline_mode = #tpu.pipeline_mode<synchronous>, transform_indices = @transform_2, window_bounds = array<i64: 8, 4>}, {pipeline_mode = #tpu.pipeline_mode<synchronous>, transform_indices = @transform_3, window_bounds = array<i64: 16, 4>}, {pipeline_mode = #tpu.pipeline_mode<synchronous>, transform_indices = @transform_4, window_bounds = array<i64: 16, 1>}, {pipeline_mode = #tpu.pipeline_mode<synchronous>, transform_indices = @transform_5, window_bounds = array<i64: 8, 8>}, {pipeline_mode = #tpu.pipeline_mode<synchronous>, transform_indices = @transform_6, window_bounds = array<i64: 8, 8>}, {pipeline_mode = #tpu.pipeline_mode<synchronous>, transform_indices = @transform_7, window_bounds = array<i64: 8, 8>}, {pipeline_mode = #tpu.pipeline_mode<synchronous>, transform_indices = @transform_8, window_bounds = array<i64: 8, 1>}, {pipeline_mode = #tpu.pipeline_mode<synchronous>, transform_indices = @transform_9, window_bounds = array<i64: 16, 8>}, {pipeline_mode = #tpu.pipeline_mode<synchronous>, transform_indices = @transform_10, window_bounds = array<i64: 16, 8>}, {pipeline_mode = #tpu.pipeline_mode<synchronous>, transform_indices = @transform_11, window_bounds = array<i64: 32, 8>}, {pipeline_mode = #tpu.pipeline_mode<synchronous>, transform_indices = @transform_12, window_bounds = array<i64: 32, 1>}, {pipeline_mode = #tpu.pipeline_mode<synchronous>, transform_indices = @transform_13, window_bounds = array<i64: 16, 16>}, {pipeline_mode = #tpu.pipeline_mode<synchronous>, transform_indices = @transform_14, window_bounds = array<i64: 16, 16>}, {pipeline_mode = #tpu.pipeline_mode<synchronous>, transform_indices = @transform_15, window_bounds = array<i64: 16, 16>}, {pipeline_mode = #tpu.pipeline_mode<synchronous>, transform_indices = @transform_16, window_bounds = array<i64: 16, 1>}, {pipeline_mode = #tpu.pipeline_mode<synchronous>, transform_indices = @transform_17, window_bounds = array<i64: 16, 16>}, {pipeline_mode = #tpu.pipeline_mode<synchronous>, transform_indices = @transform_18, window_bounds = array<i64: 16, 16>}, {pipeline_mode = #tpu.pipeline_mode<synchronous>, transform_indices = @transform_19, window_bounds = array<i64: 16, 16>}, {pipeline_mode = #tpu.pipeline_mode<synchronous>, transform_indices = @transform_20, window_bounds = array<i64: 16, 1>}, {pipeline_mode = #tpu.pipeline_mode<synchronous>, transform_indices = @transform_21, window_bounds = array<i64: 16, 16>}, {pipeline_mode = #tpu.pipeline_mode<synchronous>, transform_indices = @transform_22, window_bounds = array<i64: 16, 16>}, {pipeline_mode = #tpu.pipeline_mode<synchronous>, transform_indices = @transform_23, window_bounds = array<i64: 16, 16>}, {pipeline_mode = #tpu.pipeline_mode<synchronous>, transform_indices = @transform_24, window_bounds = array<i64: 16, 1>}, {transform_indices = @transform_25, window_bounds = array<i64: 1, 16, 512>}]} {
    %c0_i32 = arith.constant 0 : i32
    %0 = arith.cmpi eq, %arg1, %c0_i32 : i32
    %1 = arith.extui %0 : i1 to i32
    %c0_i32_0 = arith.constant 0 : i32
    %2 = arith.cmpi ne, %1, %c0_i32_0 : i32
    scf.if %2 {
      %cst_124 = arith.constant 0.000000e+00 : bf16
      %136 = vector.broadcast %cst_124 : bf16 to vector<4x514xbf16>
      %c0_125 = arith.constant 0 : index
      %c0_126 = arith.constant 0 : index
      %137 = vector.load %arg28[%c0_125, %c0_126] : memref<4x514xbf16, #tpu.memory_space<vmem>>, vector<4x514xbf16>
      tpu.vector_store %arg28[%c0_125, %c0_126], %136 {strides = array<i32>} : memref<4x514xbf16, #tpu.memory_space<vmem>>, vector<4x514xbf16>,
      %cst_127 = arith.constant 0.000000e+00 : bf16
      %138 = vector.broadcast %cst_127 : bf16 to vector<8x514xbf16>
      %c0_128 = arith.constant 0 : index
      %c0_129 = arith.constant 0 : index
      %139 = vector.load %arg29[%c0_128, %c0_129] : memref<8x514xbf16, #tpu.memory_space<vmem>>, vector<8x514xbf16>
      tpu.vector_store %arg29[%c0_128, %c0_129], %138 {strides = array<i32>} : memref<8x514xbf16, #tpu.memory_space<vmem>>, vector<8x514xbf16>,
      %cst_130 = arith.constant 0.000000e+00 : bf16
      %140 = vector.broadcast %cst_130 : bf16 to vector<8x516xbf16>
      %c0_131 = arith.constant 0 : index
      %c0_132 = arith.constant 0 : index
      %141 = vector.load %arg30[%c0_131, %c0_132] : memref<8x516xbf16, #tpu.memory_space<vmem>>, vector<8x516xbf16>
      tpu.vector_store %arg30[%c0_131, %c0_132], %140 {strides = array<i32>} : memref<8x516xbf16, #tpu.memory_space<vmem>>, vector<8x516xbf16>,
      %cst_133 = arith.constant 0.000000e+00 : bf16
      %142 = vector.broadcast %cst_133 : bf16 to vector<16x516xbf16>
      %c0_134 = arith.constant 0 : index
      %c0_135 = arith.constant 0 : index
      %143 = vector.load %arg31[%c0_134, %c0_135] : memref<16x516xbf16, #tpu.memory_space<vmem>>, vector<16x516xbf16>
      tpu.vector_store %arg31[%c0_134, %c0_135], %142 {strides = array<i32>} : memref<16x516xbf16, #tpu.memory_space<vmem>>, vector<16x516xbf16>,
      %cst_136 = arith.constant 0.000000e+00 : bf16
      %144 = vector.broadcast %cst_136 : bf16 to vector<16x520xbf16>
      %c0_137 = arith.constant 0 : index
      %c0_138 = arith.constant 0 : index
      %145 = vector.load %arg32[%c0_137, %c0_138] : memref<16x520xbf16, #tpu.memory_space<vmem>>, vector<16x520xbf16>
      tpu.vector_store %arg32[%c0_137, %c0_138], %144 {strides = array<i32>} : memref<16x520xbf16, #tpu.memory_space<vmem>>, vector<16x520xbf16>,
      %cst_139 = arith.constant 0.000000e+00 : bf16
      %146 = vector.broadcast %cst_139 : bf16 to vector<16x520xbf16>
      %c0_140 = arith.constant 0 : index
      %c0_141 = arith.constant 0 : index
      %147 = vector.load %arg33[%c0_140, %c0_141] : memref<16x520xbf16, #tpu.memory_space<vmem>>, vector<16x520xbf16>
      tpu.vector_store %arg33[%c0_140, %c0_141], %146 {strides = array<i32>} : memref<16x520xbf16, #tpu.memory_space<vmem>>, vector<16x520xbf16>,
    } else {
    }
    %c0 = arith.constant 0 : index
    %c0_1 = arith.constant 0 : index
    %c0_2 = arith.constant 0 : index
    %3 = vector.load %arg2[%c0, %c0_1, %c0_2] : memref<1x4x512xbf16, #tpu.memory_space<vmem>>, vector<1x4x512xbf16>
    %4 = vector.shape_cast %3 : vector<1x4x512xbf16> to vector<4x512xbf16>
    %c0_3 = arith.constant 0 : index
    %c0_4 = arith.constant 0 : index
    %5 = vector.load %arg5[%c0_3, %c0_4] : memref<16x4xbf16, #tpu.memory_space<vmem>>, vector<16x4xbf16>
    %cst = arith.constant dense<0.000000e+00> : vector<16x512xf32>
    %6 = tpu.matmul %5, %4, %cst {dimension_numbers = #tpu.dot_dimension_numbers<[1], [0], [0], [1], [0, 0, 1, 1], [], []>} : vector<16x4xbf16>, vector<4x512xbf16>, vector<16x512xf32> -> vector<16x512xf32>
    %c0_5 = arith.constant 0 : index
    %c0_6 = arith.constant 0 : index
    %7 = vector.load %arg6[%c0_5, %c0_6] : memref<16x1xf32, #tpu.memory_space<vmem>>, vector<16x1xf32>
    %8 = vector.broadcast %7 : vector<16x1xf32> to vector<16x512xf32>
    %9 = arith.addf %6, %8 : vector<16x512xf32>
    %c0_7 = arith.constant 0 : index
    %c2 = arith.constant 2 : index
    %10 = vector.load %arg28[%c0_7, %c2] : memref<4x514xbf16, #tpu.memory_space<vmem>>, vector<4x512xbf16>
    tpu.vector_store %arg28[%c0_7, %c2], %4 {strides = array<i32>} : memref<4x514xbf16, #tpu.memory_space<vmem>>, vector<4x512xbf16>,
    %c0_8 = arith.constant 0 : index
    %c0_9 = arith.constant 0 : index
    %11 = vector.load %arg28[%c0_8, %c0_9] : memref<4x514xbf16, #tpu.memory_space<vmem>>, vector<4x512xbf16>
    %c0_10 = arith.constant 0 : index
    %c0_11 = arith.constant 0 : index
    %12 = vector.load %arg3[%c0_10, %c0_11] : memref<8x4xbf16, #tpu.memory_space<vmem>>, vector<8x4xbf16>
    %cst_12 = arith.constant dense<0.000000e+00> : vector<8x512xf32>
    %13 = tpu.matmul %12, %11, %cst_12 {dimension_numbers = #tpu.dot_dimension_numbers<[1], [0], [0], [1], [0, 0, 1, 1], [], []>} : vector<8x4xbf16>, vector<4x512xbf16>, vector<8x512xf32> -> vector<8x512xf32>
    %c0_13 = arith.constant 0 : index
    %c1 = arith.constant 1 : index
    %14 = vector.load %arg28[%c0_13, %c1] : memref<4x514xbf16, #tpu.memory_space<vmem>>, vector<4x512xbf16>
    %c0_14 = arith.constant 0 : index
    %c0_15 = arith.constant 0 : index
    %15 = vector.load %arg4[%c0_14, %c0_15] : memref<8x4xbf16, #tpu.memory_space<vmem>>, vector<8x4xbf16>
    %cst_16 = arith.constant dense<0.000000e+00> : vector<8x512xf32>
    %16 = tpu.matmul %15, %14, %cst_16 {dimension_numbers = #tpu.dot_dimension_numbers<[1], [0], [0], [1], [0, 0, 1, 1], [], []>} : vector<8x4xbf16>, vector<4x512xbf16>, vector<8x512xf32> -> vector<8x512xf32>
    %17 = arith.addf %13, %16 : vector<8x512xf32>
    %18 = vector.extract_strided_slice %4 {offsets = [0, 510], sizes = [4, 2], strides = [1, 1]} : vector<4x512xbf16> to vector<4x2xbf16>
    %c0_17 = arith.constant 0 : index
    %c0_18 = arith.constant 0 : index
    %19 = vector.load %arg28[%c0_17, %c0_18] : memref<4x514xbf16, #tpu.memory_space<vmem>>, vector<4x2xbf16>
    tpu.vector_store %arg28[%c0_17, %c0_18], %18 {strides = array<i32>} : memref<4x514xbf16, #tpu.memory_space<vmem>>, vector<4x2xbf16>,
    %20 = vector.extract_strided_slice %9 {offsets = [0, 0], sizes = [8, 512], strides = [1, 1]} : vector<16x512xf32> to vector<8x512xf32>
    %21 = arith.addf %20, %17 : vector<8x512xf32>
    %22 = vector.extract_strided_slice %9 {offsets = [8, 0], sizes = [8, 512], strides = [1, 1]} : vector<16x512xf32> to vector<8x512xf32>
    %cst_19 = arith.constant 0.000000e+00 : f32
    %23 = vector.broadcast %cst_19 : f32 to vector<8x512xf32>
    %24 = arith.maximumf %21, %23 : vector<8x512xf32>
    %25 = arith.truncf %24 : vector<8x512xf32> to vector<8x512xbf16>
    %c0_20 = arith.constant 0 : index
    %c0_21 = arith.constant 0 : index
    %26 = vector.load %arg9[%c0_20, %c0_21] : memref<8x8xbf16, #tpu.memory_space<vmem>>, vector<8x8xbf16>
    %cst_22 = arith.constant dense<0.000000e+00> : vector<8x512xf32>
    %27 = tpu.matmul %26, %25, %cst_22 {dimension_numbers = #tpu.dot_dimension_numbers<[1], [0], [0], [1], [0, 0, 1, 1], [], []>} : vector<8x8xbf16>, vector<8x512xbf16>, vector<8x512xf32> -> vector<8x512xf32>
    %c0_23 = arith.constant 0 : index
    %c0_24 = arith.constant 0 : index
    %28 = vector.load %arg10[%c0_23, %c0_24] : memref<8x1xf32, #tpu.memory_space<vmem>>, vector<8x1xf32>
    %29 = vector.broadcast %28 : vector<8x1xf32> to vector<8x512xf32>
    %30 = arith.addf %27, %29 : vector<8x512xf32>
    %c0_25 = arith.constant 0 : index
    %c2_26 = arith.constant 2 : index
    %31 = vector.load %arg29[%c0_25, %c2_26] : memref<8x514xbf16, #tpu.memory_space<vmem>>, vector<8x512xbf16>
    tpu.vector_store %arg29[%c0_25, %c2_26], %25 {strides = array<i32>} : memref<8x514xbf16, #tpu.memory_space<vmem>>, vector<8x512xbf16>,
    %c0_27 = arith.constant 0 : index
    %c0_28 = arith.constant 0 : index
    %32 = vector.load %arg29[%c0_27, %c0_28] : memref<8x514xbf16, #tpu.memory_space<vmem>>, vector<8x512xbf16>
    %c0_29 = arith.constant 0 : index
    %c0_30 = arith.constant 0 : index
    %33 = vector.load %arg7[%c0_29, %c0_30] : memref<8x8xbf16, #tpu.memory_space<vmem>>, vector<8x8xbf16>
    %cst_31 = arith.constant dense<0.000000e+00> : vector<8x512xf32>
    %34 = tpu.matmul %33, %32, %cst_31 {dimension_numbers = #tpu.dot_dimension_numbers<[1], [0], [0], [1], [0, 0, 1, 1], [], []>} : vector<8x8xbf16>, vector<8x512xbf16>, vector<8x512xf32> -> vector<8x512xf32>
    %c0_32 = arith.constant 0 : index
    %c1_33 = arith.constant 1 : index
    %35 = vector.load %arg29[%c0_32, %c1_33] : memref<8x514xbf16, #tpu.memory_space<vmem>>, vector<8x512xbf16>
    %c0_34 = arith.constant 0 : index
    %c0_35 = arith.constant 0 : index
    %36 = vector.load %arg8[%c0_34, %c0_35] : memref<8x8xbf16, #tpu.memory_space<vmem>>, vector<8x8xbf16>
    %cst_36 = arith.constant dense<0.000000e+00> : vector<8x512xf32>
    %37 = tpu.matmul %36, %35, %cst_36 {dimension_numbers = #tpu.dot_dimension_numbers<[1], [0], [0], [1], [0, 0, 1, 1], [], []>} : vector<8x8xbf16>, vector<8x512xbf16>, vector<8x512xf32> -> vector<8x512xf32>
    %38 = arith.addf %34, %37 : vector<8x512xf32>
    %39 = vector.extract_strided_slice %25 {offsets = [0, 510], sizes = [8, 2], strides = [1, 1]} : vector<8x512xbf16> to vector<8x2xbf16>
    %c0_37 = arith.constant 0 : index
    %c0_38 = arith.constant 0 : index
    %40 = vector.load %arg29[%c0_37, %c0_38] : memref<8x514xbf16, #tpu.memory_space<vmem>>, vector<8x2xbf16>
    tpu.vector_store %arg29[%c0_37, %c0_38], %39 {strides = array<i32>} : memref<8x514xbf16, #tpu.memory_space<vmem>>, vector<8x2xbf16>,
    %41 = arith.addf %30, %38 : vector<8x512xf32>
    %cst_39 = arith.constant 0.000000e+00 : f32
    %42 = vector.broadcast %cst_39 : f32 to vector<8x512xf32>
    %43 = arith.maximumf %41, %42 : vector<8x512xf32>
    %44 = arith.addf %43, %22 : vector<8x512xf32>
    %cst_40 = arith.constant 0.000000e+00 : f32
    %45 = vector.broadcast %cst_40 : f32 to vector<8x512xf32>
    %46 = arith.maximumf %44, %45 : vector<8x512xf32>
    %47 = arith.truncf %46 : vector<8x512xf32> to vector<8x512xbf16>
    %c0_41 = arith.constant 0 : index
    %c0_42 = arith.constant 0 : index
    %48 = vector.load %arg13[%c0_41, %c0_42] : memref<32x8xbf16, #tpu.memory_space<vmem>>, vector<32x8xbf16>
    %cst_43 = arith.constant dense<0.000000e+00> : vector<32x512xf32>
    %49 = tpu.matmul %48, %47, %cst_43 {dimension_numbers = #tpu.dot_dimension_numbers<[1], [0], [0], [1], [0, 0, 1, 1], [], []>} : vector<32x8xbf16>, vector<8x512xbf16>, vector<32x512xf32> -> vector<32x512xf32>
    %c0_44 = arith.constant 0 : index
    %c0_45 = arith.constant 0 : index
    %50 = vector.load %arg14[%c0_44, %c0_45] : memref<32x1xf32, #tpu.memory_space<vmem>>, vector<32x1xf32>
    %51 = vector.broadcast %50 : vector<32x1xf32> to vector<32x512xf32>
    %52 = arith.addf %49, %51 : vector<32x512xf32>
    %c0_46 = arith.constant 0 : index
    %c4 = arith.constant 4 : index
    %53 = vector.load %arg30[%c0_46, %c4] : memref<8x516xbf16, #tpu.memory_space<vmem>>, vector<8x512xbf16>
    tpu.vector_store %arg30[%c0_46, %c4], %47 {strides = array<i32>} : memref<8x516xbf16, #tpu.memory_space<vmem>>, vector<8x512xbf16>,
    %c0_47 = arith.constant 0 : index
    %c0_48 = arith.constant 0 : index
    %54 = vector.load %arg30[%c0_47, %c0_48] : memref<8x516xbf16, #tpu.memory_space<vmem>>, vector<8x512xbf16>
    %c0_49 = arith.constant 0 : index
    %c0_50 = arith.constant 0 : index
    %55 = vector.load %arg11[%c0_49, %c0_50] : memref<16x8xbf16, #tpu.memory_space<vmem>>, vector<16x8xbf16>
    %cst_51 = arith.constant dense<0.000000e+00> : vector<16x512xf32>
    %56 = tpu.matmul %55, %54, %cst_51 {dimension_numbers = #tpu.dot_dimension_numbers<[1], [0], [0], [1], [0, 0, 1, 1], [], []>} : vector<16x8xbf16>, vector<8x512xbf16>, vector<16x512xf32> -> vector<16x512xf32>
    %c0_52 = arith.constant 0 : index
    %c2_53 = arith.constant 2 : index
    %57 = vector.load %arg30[%c0_52, %c2_53] : memref<8x516xbf16, #tpu.memory_space<vmem>>, vector<8x512xbf16>
    %c0_54 = arith.constant 0 : index
    %c0_55 = arith.constant 0 : index
    %58 = vector.load %arg12[%c0_54, %c0_55] : memref<16x8xbf16, #tpu.memory_space<vmem>>, vector<16x8xbf16>
    %cst_56 = arith.constant dense<0.000000e+00> : vector<16x512xf32>
    %59 = tpu.matmul %58, %57, %cst_56 {dimension_numbers = #tpu.dot_dimension_numbers<[1], [0], [0], [1], [0, 0, 1, 1], [], []>} : vector<16x8xbf16>, vector<8x512xbf16>, vector<16x512xf32> -> vector<16x512xf32>
    %60 = arith.addf %56, %59 : vector<16x512xf32>
    %61 = vector.extract_strided_slice %47 {offsets = [0, 508], sizes = [8, 4], strides = [1, 1]} : vector<8x512xbf16> to vector<8x4xbf16>
    %c0_57 = arith.constant 0 : index
    %c0_58 = arith.constant 0 : index
    %62 = vector.load %arg30[%c0_57, %c0_58] : memref<8x516xbf16, #tpu.memory_space<vmem>>, vector<8x4xbf16>
    tpu.vector_store %arg30[%c0_57, %c0_58], %61 {strides = array<i32>} : memref<8x516xbf16, #tpu.memory_space<vmem>>, vector<8x4xbf16>,
    %63 = vector.extract_strided_slice %52 {offsets = [0, 0], sizes = [16, 512], strides = [1, 1]} : vector<32x512xf32> to vector<16x512xf32>
    %64 = arith.addf %63, %60 : vector<16x512xf32>
    %65 = vector.extract_strided_slice %52 {offsets = [16, 0], sizes = [16, 512], strides = [1, 1]} : vector<32x512xf32> to vector<16x512xf32>
    %cst_59 = arith.constant 0.000000e+00 : f32
    %66 = vector.broadcast %cst_59 : f32 to vector<16x512xf32>
    %67 = arith.maximumf %64, %66 : vector<16x512xf32>
    %68 = arith.truncf %67 : vector<16x512xf32> to vector<16x512xbf16>
    %c0_60 = arith.constant 0 : index
    %c0_61 = arith.constant 0 : index
    %69 = vector.load %arg17[%c0_60, %c0_61] : memref<16x16xbf16, #tpu.memory_space<vmem>>, vector<16x16xbf16>
    %cst_62 = arith.constant dense<0.000000e+00> : vector<16x512xf32>
    %70 = tpu.matmul %69, %68, %cst_62 {dimension_numbers = #tpu.dot_dimension_numbers<[1], [0], [0], [1], [0, 0, 1, 1], [], []>} : vector<16x16xbf16>, vector<16x512xbf16>, vector<16x512xf32> -> vector<16x512xf32>
    %c0_63 = arith.constant 0 : index
    %c0_64 = arith.constant 0 : index
    %71 = vector.load %arg18[%c0_63, %c0_64] : memref<16x1xf32, #tpu.memory_space<vmem>>, vector<16x1xf32>
    %72 = vector.broadcast %71 : vector<16x1xf32> to vector<16x512xf32>
    %73 = arith.addf %70, %72 : vector<16x512xf32>
    %c0_65 = arith.constant 0 : index
    %c4_66 = arith.constant 4 : index
    %74 = vector.load %arg31[%c0_65, %c4_66] : memref<16x516xbf16, #tpu.memory_space<vmem>>, vector<16x512xbf16>
    tpu.vector_store %arg31[%c0_65, %c4_66], %68 {strides = array<i32>} : memref<16x516xbf16, #tpu.memory_space<vmem>>, vector<16x512xbf16>,
    %c0_67 = arith.constant 0 : index
    %c0_68 = arith.constant 0 : index
    %75 = vector.load %arg31[%c0_67, %c0_68] : memref<16x516xbf16, #tpu.memory_space<vmem>>, vector<16x512xbf16>
    %c0_69 = arith.constant 0 : index
    %c0_70 = arith.constant 0 : index
    %76 = vector.load %arg15[%c0_69, %c0_70] : memref<16x16xbf16, #tpu.memory_space<vmem>>, vector<16x16xbf16>
    %cst_71 = arith.constant dense<0.000000e+00> : vector<16x512xf32>
    %77 = tpu.matmul %76, %75, %cst_71 {dimension_numbers = #tpu.dot_dimension_numbers<[1], [0], [0], [1], [0, 0, 1, 1], [], []>} : vector<16x16xbf16>, vector<16x512xbf16>, vector<16x512xf32> -> vector<16x512xf32>
    %c0_72 = arith.constant 0 : index
    %c2_73 = arith.constant 2 : index
    %78 = vector.load %arg31[%c0_72, %c2_73] : memref<16x516xbf16, #tpu.memory_space<vmem>>, vector<16x512xbf16>
    %c0_74 = arith.constant 0 : index
    %c0_75 = arith.constant 0 : index
    %79 = vector.load %arg16[%c0_74, %c0_75] : memref<16x16xbf16, #tpu.memory_space<vmem>>, vector<16x16xbf16>
    %cst_76 = arith.constant dense<0.000000e+00> : vector<16x512xf32>
    %80 = tpu.matmul %79, %78, %cst_76 {dimension_numbers = #tpu.dot_dimension_numbers<[1], [0], [0], [1], [0, 0, 1, 1], [], []>} : vector<16x16xbf16>, vector<16x512xbf16>, vector<16x512xf32> -> vector<16x512xf32>
    %81 = arith.addf %77, %80 : vector<16x512xf32>
    %82 = vector.extract_strided_slice %68 {offsets = [0, 508], sizes = [16, 4], strides = [1, 1]} : vector<16x512xbf16> to vector<16x4xbf16>
    %c0_77 = arith.constant 0 : index
    %c0_78 = arith.constant 0 : index
    %83 = vector.load %arg31[%c0_77, %c0_78] : memref<16x516xbf16, #tpu.memory_space<vmem>>, vector<16x4xbf16>
    tpu.vector_store %arg31[%c0_77, %c0_78], %82 {strides = array<i32>} : memref<16x516xbf16, #tpu.memory_space<vmem>>, vector<16x4xbf16>,
    %84 = arith.addf %73, %81 : vector<16x512xf32>
    %cst_79 = arith.constant 0.000000e+00 : f32
    %85 = vector.broadcast %cst_79 : f32 to vector<16x512xf32>
    %86 = arith.maximumf %84, %85 : vector<16x512xf32>
    %87 = arith.addf %86, %65 : vector<16x512xf32>
    %cst_80 = arith.constant 0.000000e+00 : f32
    %88 = vector.broadcast %cst_80 : f32 to vector<16x512xf32>
    %89 = arith.maximumf %87, %88 : vector<16x512xf32>
    %90 = arith.truncf %89 : vector<16x512xf32> to vector<16x512xbf16>
    %c0_81 = arith.constant 0 : index
    %c0_82 = arith.constant 0 : index
    %91 = vector.load %arg21[%c0_81, %c0_82] : memref<16x16xbf16, #tpu.memory_space<vmem>>, vector<16x16xbf16>
    %cst_83 = arith.constant dense<0.000000e+00> : vector<16x512xf32>
    %92 = tpu.matmul %91, %90, %cst_83 {dimension_numbers = #tpu.dot_dimension_numbers<[1], [0], [0], [1], [0, 0, 1, 1], [], []>} : vector<16x16xbf16>, vector<16x512xbf16>, vector<16x512xf32> -> vector<16x512xf32>
    %c0_84 = arith.constant 0 : index
    %c0_85 = arith.constant 0 : index
    %93 = vector.load %arg22[%c0_84, %c0_85] : memref<16x1xf32, #tpu.memory_space<vmem>>, vector<16x1xf32>
    %94 = vector.broadcast %93 : vector<16x1xf32> to vector<16x512xf32>
    %95 = arith.addf %92, %94 : vector<16x512xf32>
    %c0_86 = arith.constant 0 : index
    %c8 = arith.constant 8 : index
    %96 = vector.load %arg32[%c0_86, %c8] : memref<16x520xbf16, #tpu.memory_space<vmem>>, vector<16x512xbf16>
    tpu.vector_store %arg32[%c0_86, %c8], %90 {strides = array<i32>} : memref<16x520xbf16, #tpu.memory_space<vmem>>, vector<16x512xbf16>,
    %c0_87 = arith.constant 0 : index
    %c0_88 = arith.constant 0 : index
    %97 = vector.load %arg32[%c0_87, %c0_88] : memref<16x520xbf16, #tpu.memory_space<vmem>>, vector<16x512xbf16>
    %c0_89 = arith.constant 0 : index
    %c0_90 = arith.constant 0 : index
    %98 = vector.load %arg19[%c0_89, %c0_90] : memref<16x16xbf16, #tpu.memory_space<vmem>>, vector<16x16xbf16>
    %cst_91 = arith.constant dense<0.000000e+00> : vector<16x512xf32>
    %99 = tpu.matmul %98, %97, %cst_91 {dimension_numbers = #tpu.dot_dimension_numbers<[1], [0], [0], [1], [0, 0, 1, 1], [], []>} : vector<16x16xbf16>, vector<16x512xbf16>, vector<16x512xf32> -> vector<16x512xf32>
    %c0_92 = arith.constant 0 : index
    %c4_93 = arith.constant 4 : index
    %100 = vector.load %arg32[%c0_92, %c4_93] : memref<16x520xbf16, #tpu.memory_space<vmem>>, vector<16x512xbf16>
    %c0_94 = arith.constant 0 : index
    %c0_95 = arith.constant 0 : index
    %101 = vector.load %arg20[%c0_94, %c0_95] : memref<16x16xbf16, #tpu.memory_space<vmem>>, vector<16x16xbf16>
    %cst_96 = arith.constant dense<0.000000e+00> : vector<16x512xf32>
    %102 = tpu.matmul %101, %100, %cst_96 {dimension_numbers = #tpu.dot_dimension_numbers<[1], [0], [0], [1], [0, 0, 1, 1], [], []>} : vector<16x16xbf16>, vector<16x512xbf16>, vector<16x512xf32> -> vector<16x512xf32>
    %103 = arith.addf %99, %102 : vector<16x512xf32>
    %104 = vector.extract_strided_slice %90 {offsets = [0, 504], sizes = [16, 8], strides = [1, 1]} : vector<16x512xbf16> to vector<16x8xbf16>
    %c0_97 = arith.constant 0 : index
    %c0_98 = arith.constant 0 : index
    %105 = vector.load %arg32[%c0_97, %c0_98] : memref<16x520xbf16, #tpu.memory_space<vmem>>, vector<16x8xbf16>
    tpu.vector_store %arg32[%c0_97, %c0_98], %104 {strides = array<i32>} : memref<16x520xbf16, #tpu.memory_space<vmem>>, vector<16x8xbf16>,
    %106 = arith.addf %95, %103 : vector<16x512xf32>
    %cst_99 = arith.constant 0.000000e+00 : f32
    %107 = vector.broadcast %cst_99 : f32 to vector<16x512xf32>
    %108 = arith.maximumf %106, %107 : vector<16x512xf32>
    %109 = arith.truncf %108 : vector<16x512xf32> to vector<16x512xbf16>
    %c0_100 = arith.constant 0 : index
    %c0_101 = arith.constant 0 : index
    %110 = vector.load %arg25[%c0_100, %c0_101] : memref<16x16xbf16, #tpu.memory_space<vmem>>, vector<16x16xbf16>
    %cst_102 = arith.constant dense<0.000000e+00> : vector<16x512xf32>
    %111 = tpu.matmul %110, %109, %cst_102 {dimension_numbers = #tpu.dot_dimension_numbers<[1], [0], [0], [1], [0, 0, 1, 1], [], []>} : vector<16x16xbf16>, vector<16x512xbf16>, vector<16x512xf32> -> vector<16x512xf32>
    %c0_103 = arith.constant 0 : index
    %c0_104 = arith.constant 0 : index
    %112 = vector.load %arg26[%c0_103, %c0_104] : memref<16x1xf32, #tpu.memory_space<vmem>>, vector<16x1xf32>
    %113 = vector.broadcast %112 : vector<16x1xf32> to vector<16x512xf32>
    %114 = arith.addf %111, %113 : vector<16x512xf32>
    %c0_105 = arith.constant 0 : index
    %c8_106 = arith.constant 8 : index
    %115 = vector.load %arg33[%c0_105, %c8_106] : memref<16x520xbf16, #tpu.memory_space<vmem>>, vector<16x512xbf16>
    tpu.vector_store %arg33[%c0_105, %c8_106], %109 {strides = array<i32>} : memref<16x520xbf16, #tpu.memory_space<vmem>>, vector<16x512xbf16>,
    %c0_107 = arith.constant 0 : index
    %c0_108 = arith.constant 0 : index
    %116 = vector.load %arg33[%c0_107, %c0_108] : memref<16x520xbf16, #tpu.memory_space<vmem>>, vector<16x512xbf16>
    %c0_109 = arith.constant 0 : index
    %c0_110 = arith.constant 0 : index
    %117 = vector.load %arg23[%c0_109, %c0_110] : memref<16x16xbf16, #tpu.memory_space<vmem>>, vector<16x16xbf16>
    %cst_111 = arith.constant dense<0.000000e+00> : vector<16x512xf32>
    %118 = tpu.matmul %117, %116, %cst_111 {dimension_numbers = #tpu.dot_dimension_numbers<[1], [0], [0], [1], [0, 0, 1, 1], [], []>} : vector<16x16xbf16>, vector<16x512xbf16>, vector<16x512xf32> -> vector<16x512xf32>
    %c0_112 = arith.constant 0 : index
    %c4_113 = arith.constant 4 : index
    %119 = vector.load %arg33[%c0_112, %c4_113] : memref<16x520xbf16, #tpu.memory_space<vmem>>, vector<16x512xbf16>
    %c0_114 = arith.constant 0 : index
    %c0_115 = arith.constant 0 : index
    %120 = vector.load %arg24[%c0_114, %c0_115] : memref<16x16xbf16, #tpu.memory_space<vmem>>, vector<16x16xbf16>
    %cst_116 = arith.constant dense<0.000000e+00> : vector<16x512xf32>
    %121 = tpu.matmul %120, %119, %cst_116 {dimension_numbers = #tpu.dot_dimension_numbers<[1], [0], [0], [1], [0, 0, 1, 1], [], []>} : vector<16x16xbf16>, vector<16x512xbf16>, vector<16x512xf32> -> vector<16x512xf32>
    %122 = arith.addf %118, %121 : vector<16x512xf32>
    %123 = vector.extract_strided_slice %109 {offsets = [0, 504], sizes = [16, 8], strides = [1, 1]} : vector<16x512xbf16> to vector<16x8xbf16>
    %c0_117 = arith.constant 0 : index
    %c0_118 = arith.constant 0 : index
    %124 = vector.load %arg33[%c0_117, %c0_118] : memref<16x520xbf16, #tpu.memory_space<vmem>>, vector<16x8xbf16>
    tpu.vector_store %arg33[%c0_117, %c0_118], %123 {strides = array<i32>} : memref<16x520xbf16, #tpu.memory_space<vmem>>, vector<16x8xbf16>,
    %125 = arith.addf %114, %122 : vector<16x512xf32>
    %cst_119 = arith.constant 0.000000e+00 : f32
    %126 = vector.broadcast %cst_119 : f32 to vector<16x512xf32>
    %127 = arith.maximumf %125, %126 : vector<16x512xf32>
    %128 = arith.extf %90 : vector<16x512xbf16> to vector<16x512xf32>
    %129 = arith.addf %127, %128 : vector<16x512xf32>
    %cst_120 = arith.constant 0.000000e+00 : f32
    %130 = vector.broadcast %cst_120 : f32 to vector<16x512xf32>
    %131 = arith.maximumf %129, %130 : vector<16x512xf32>
    %132 = arith.truncf %131 : vector<16x512xf32> to vector<16x512xbf16>
    %c0_121 = arith.constant 0 : index
    %c0_122 = arith.constant 0 : index
    %c0_123 = arith.constant 0 : index
    %133 = vector.load %arg27[%c0_121, %c0_122, %c0_123] : memref<1x16x512xbf16, #tpu.memory_space<vmem>>, vector<1x16x512xbf16>
    %134 = vector.shape_cast %133 : vector<1x16x512xbf16> to vector<16x512xbf16>
    %135 = vector.shape_cast %132 : vector<16x512xbf16> to vector<1x16x512xbf16>
    tpu.vector_store %arg27[%c0_121, %c0_122, %c0_123], %135 {strides = array<i32>} : memref<1x16x512xbf16, #tpu.memory_space<vmem>>, vector<1x16x512xbf16>,
    return
  }
  func.func @transform_0(%arg0: i32, %arg1: i32) -> (i32, i32, i32) {
    %c0_i32 = arith.constant 0 : i32
    %c0_i32_0 = arith.constant 0 : i32
    return %arg0, %c0_i32, %arg1 : i32, i32, i32
  }
  func.func @transform_1(%arg0: i32, %arg1: i32) -> (i32, i32) {
    %c0_i32 = arith.constant 0 : i32
    %c0_i32_0 = arith.constant 0 : i32
    %c0_i32_1 = arith.constant 0 : i32
    return %c0_i32, %c0_i32_0 : i32, i32
  }
  func.func @transform_2(%arg0: i32, %arg1: i32) -> (i32, i32) {
    %c0_i32 = arith.constant 0 : i32
    %c0_i32_0 = arith.constant 0 : i32
    %c0_i32_1 = arith.constant 0 : i32
    return %c0_i32, %c0_i32_0 : i32, i32
  }
  func.func @transform_3(%arg0: i32, %arg1: i32) -> (i32, i32) {
    %c0_i32 = arith.constant 0 : i32
    %c0_i32_0 = arith.constant 0 : i32
    %c0_i32_1 = arith.constant 0 : i32
    return %c0_i32, %c0_i32_0 : i32, i32
  }
  func.func @transform_4(%arg0: i32, %arg1: i32) -> (i32, i32) {
    %c0_i32 = arith.constant 0 : i32
    %c0_i32_0 = arith.constant 0 : i32
    %c0_i32_1 = arith.constant 0 : i32
    return %c0_i32, %c0_i32_0 : i32, i32
  }
  func.func @transform_5(%arg0: i32, %arg1: i32) -> (i32, i32) {
    %c0_i32 = arith.constant 0 : i32
    %c0_i32_0 = arith.constant 0 : i32
    %c0_i32_1 = arith.constant 0 : i32
    return %c0_i32, %c0_i32_0 : i32, i32
  }
  func.func @transform_6(%arg0: i32, %arg1: i32) -> (i32, i32) {
    %c0_i32 = arith.constant 0 : i32
    %c0_i32_0 = arith.constant 0 : i32
    %c0_i32_1 = arith.constant 0 : i32
    return %c0_i32, %c0_i32_0 : i32, i32
  }
  func.func @transform_7(%arg0: i32, %arg1: i32) -> (i32, i32) {
    %c0_i32 = arith.constant 0 : i32
    %c0_i32_0 = arith.constant 0 : i32
    %c0_i32_1 = arith.constant 0 : i32
    return %c0_i32, %c0_i32_0 : i32, i32
  }
  func.func @transform_8(%arg0: i32, %arg1: i32) -> (i32, i32) {
    %c0_i32 = arith.constant 0 : i32
    %c0_i32_0 = arith.constant 0 : i32
    %c0_i32_1 = arith.constant 0 : i32
    return %c0_i32, %c0_i32_0 : i32, i32
  }
  func.func @transform_9(%arg0: i32, %arg1: i32) -> (i32, i32) {
    %c0_i32 = arith.constant 0 : i32
    %c0_i32_0 = arith.constant 0 : i32
    %c0_i32_1 = arith.constant 0 : i32
    return %c0_i32, %c0_i32_0 : i32, i32
  }
  func.func @transform_10(%arg0: i32, %arg1: i32) -> (i32, i32) {
    %c0_i32 = arith.constant 0 : i32
    %c0_i32_0 = arith.constant 0 : i32
    %c0_i32_1 = arith.constant 0 : i32
    return %c0_i32, %c0_i32_0 : i32, i32
  }
  func.func @transform_11(%arg0: i32, %arg1: i32) -> (i32, i32) {
    %c0_i32 = arith.constant 0 : i32
    %c0_i32_0 = arith.constant 0 : i32
    %c0_i32_1 = arith.constant 0 : i32
    return %c0_i32, %c0_i32_0 : i32, i32
  }
  func.func @transform_12(%arg0: i32, %arg1: i32) -> (i32, i32) {
    %c0_i32 = arith.constant 0 : i32
    %c0_i32_0 = arith.constant 0 : i32
    %c0_i32_1 = arith.constant 0 : i32
    return %c0_i32, %c0_i32_0 : i32, i32
  }
  func.func @transform_13(%arg0: i32, %arg1: i32) -> (i32, i32) {
    %c0_i32 = arith.constant 0 : i32
    %c0_i32_0 = arith.constant 0 : i32
    %c0_i32_1 = arith.constant 0 : i32
    return %c0_i32, %c0_i32_0 : i32, i32
  }
  func.func @transform_14(%arg0: i32, %arg1: i32) -> (i32, i32) {
    %c0_i32 = arith.constant 0 : i32
    %c0_i32_0 = arith.constant 0 : i32
    %c0_i32_1 = arith.constant 0 : i32
    return %c0_i32, %c0_i32_0 : i32, i32
  }
  func.func @transform_15(%arg0: i32, %arg1: i32) -> (i32, i32) {
    %c0_i32 = arith.constant 0 : i32
    %c0_i32_0 = arith.constant 0 : i32
    %c0_i32_1 = arith.constant 0 : i32
    return %c0_i32, %c0_i32_0 : i32, i32
  }
  func.func @transform_16(%arg0: i32, %arg1: i32) -> (i32, i32) {
    %c0_i32 = arith.constant 0 : i32
    %c0_i32_0 = arith.constant 0 : i32
    %c0_i32_1 = arith.constant 0 : i32
    return %c0_i32, %c0_i32_0 : i32, i32
  }
  func.func @transform_17(%arg0: i32, %arg1: i32) -> (i32, i32) {
    %c0_i32 = arith.constant 0 : i32
    %c0_i32_0 = arith.constant 0 : i32
    %c0_i32_1 = arith.constant 0 : i32
    return %c0_i32, %c0_i32_0 : i32, i32
  }
  func.func @transform_18(%arg0: i32, %arg1: i32) -> (i32, i32) {
    %c0_i32 = arith.constant 0 : i32
    %c0_i32_0 = arith.constant 0 : i32
    %c0_i32_1 = arith.constant 0 : i32
    return %c0_i32, %c0_i32_0 : i32, i32
  }
  func.func @transform_19(%arg0: i32, %arg1: i32) -> (i32, i32) {
    %c0_i32 = arith.constant 0 : i32
    %c0_i32_0 = arith.constant 0 : i32
    %c0_i32_1 = arith.constant 0 : i32
    return %c0_i32, %c0_i32_0 : i32, i32
  }
  func.func @transform_20(%arg0: i32, %arg1: i32) -> (i32, i32) {
    %c0_i32 = arith.constant 0 : i32
    %c0_i32_0 = arith.constant 0 : i32
    %c0_i32_1 = arith.constant 0 : i32
    return %c0_i32, %c0_i32_0 : i32, i32
  }
  func.func @transform_21(%arg0: i32, %arg1: i32) -> (i32, i32) {
    %c0_i32 = arith.constant 0 : i32
    %c0_i32_0 = arith.constant 0 : i32
    %c0_i32_1 = arith.constant 0 : i32
    return %c0_i32, %c0_i32_0 : i32, i32
  }
  func.func @transform_22(%arg0: i32, %arg1: i32) -> (i32, i32) {
    %c0_i32 = arith.constant 0 : i32
    %c0_i32_0 = arith.constant 0 : i32
    %c0_i32_1 = arith.constant 0 : i32
    return %c0_i32, %c0_i32_0 : i32, i32
  }
  func.func @transform_23(%arg0: i32, %arg1: i32) -> (i32, i32) {
    %c0_i32 = arith.constant 0 : i32
    %c0_i32_0 = arith.constant 0 : i32
    %c0_i32_1 = arith.constant 0 : i32
    return %c0_i32, %c0_i32_0 : i32, i32
  }
  func.func @transform_24(%arg0: i32, %arg1: i32) -> (i32, i32) {
    %c0_i32 = arith.constant 0 : i32
    %c0_i32_0 = arith.constant 0 : i32
    %c0_i32_1 = arith.constant 0 : i32
    return %c0_i32, %c0_i32_0 : i32, i32
  }
  func.func @transform_25(%arg0: i32, %arg1: i32) -> (i32, i32, i32) {
    %c0_i32 = arith.constant 0 : i32
    %c0_i32_0 = arith.constant 0 : i32
    return %arg0, %c0_i32, %arg1 : i32, i32, i32
  }
}

</mosaic_0001>

<llo_original>
// kernel: tpu_custom_call.1
$region0: #{tpu_custom_call.1}
  #allocation0 [shape = 'u32[]', space=smem, size = 0x4, offset = 0x4, fixed_abs, tag = 'smem constant byte address 0x4 - core index']
  #allocation1 [shape = 'u32[144,128]{1,0:T(1,128)}', space=vmem, size = 0x12000, scoped, tag = 'internal scratch']
  #allocation2 [shape = 'bf16[4,514]{1,0:T(4,128)(2,1)}', space=vmem, size = 0x1400, scoped, tag = 'scratch operand']
  #allocation3 [shape = 'bf16[8,514]{1,0:T(8,128)(2,1)}', space=vmem, size = 0x2800, scoped, tag = 'scratch operand']
  #allocation4 [shape = 'bf16[8,516]{1,0:T(8,128)(2,1)}', space=vmem, size = 0x2800, scoped, tag = 'scratch operand']
  #allocation5 [shape = 'bf16[16,516]{1,0:T(16,128)(2,1)}', space=vmem, size = 0x5000, scoped, tag = 'scratch operand']
  #allocation6 [shape = 'bf16[16,520]{1,0:T(16,128)(2,1)}', space=vmem, size = 0x5000, scoped, tag = 'scratch operand']
  #allocation7 [shape = 'bf16[16,520]{1,0:T(16,128)(2,1)}', space=vmem, size = 0x5000, scoped, tag = 'scratch operand']
  %s0 = inlined_call_operand.vmem [shape: bf16[2,4,1024], index: 0, kind: input, shape index: {}]
  %s1 = inlined_call_operand.vmem [shape: bf16[8,4], index: 1, kind: input, shape index: {}]
  %s2 = inlined_call_operand.vmem [shape: bf16[8,4], index: 2, kind: input, shape index: {}]
  %s3 = inlined_call_operand.vmem [shape: bf16[16,4], index: 3, kind: input, shape index: {}]
  %s4 = inlined_call_operand.vmem [shape: f32[16,1], index: 4, kind: input, shape index: {}]
  %s5 = inlined_call_operand.vmem [shape: bf16[8,8], index: 5, kind: input, shape index: {}]
  %s6 = inlined_call_operand.vmem [shape: bf16[8,8], index: 6, kind: input, shape index: {}]
  %s7 = inlined_call_operand.vmem [shape: bf16[8,8], index: 7, kind: input, shape index: {}]
  %s8 = inlined_call_operand.vmem [shape: f32[8,1], index: 8, kind: input, shape index: {}]
  %s9 = inlined_call_operand.vmem [shape: bf16[16,8], index: 9, kind: input, shape index: {}]
  %s10 = inlined_call_operand.vmem [shape: bf16[16,8], index: 10, kind: input, shape index: {}]
  %s11 = inlined_call_operand.vmem [shape: bf16[32,8], index: 11, kind: input, shape index: {}]
  %s12 = inlined_call_operand.vmem [shape: f32[32,1], index: 12, kind: input, shape index: {}]
  %s13 = inlined_call_operand.vmem [shape: bf16[16,16], index: 13, kind: input, shape index: {}]
  %s14 = inlined_call_operand.vmem [shape: bf16[16,16], index: 14, kind: input, shape index: {}]
  %s15 = inlined_call_operand.vmem [shape: bf16[16,16], index: 15, kind: input, shape index: {}]
  %s16 = inlined_call_operand.vmem [shape: f32[16,1], index: 16, kind: input, shape index: {}]
  %s17 = inlined_call_operand.vmem [shape: bf16[16,16], index: 17, kind: input, shape index: {}]
  %s18 = inlined_call_operand.vmem [shape: bf16[16,16], index: 18, kind: input, shape index: {}]
  %s19 = inlined_call_operand.vmem [shape: bf16[16,16], index: 19, kind: input, shape index: {}]
  %s20 = inlined_call_operand.vmem [shape: f32[16,1], index: 20, kind: input, shape index: {}]
  %s21 = inlined_call_operand.vmem [shape: bf16[16,16], index: 21, kind: input, shape index: {}]
  %s22 = inlined_call_operand.vmem [shape: bf16[16,16], index: 22, kind: input, shape index: {}]
  %s23 = inlined_call_operand.vmem [shape: bf16[16,16], index: 23, kind: input, shape index: {}]
  %s24 = inlined_call_operand.vmem [shape: f32[16,1], index: 24, kind: input, shape index: {}]
  %s25 = inlined_call_operand.hbm [shape: bf16[2,16,1024], index: 25, kind: output, shape index: {}]
  %s26 = sld [smem:[#allocation0]]
  $region137: #{tpu_custom_call.1} parent=0
    _
  %s28 = ssub.s32 1, %s26
  %s29 = scalar_select 0, %s28, %s26
  $region1: #{tpu_custom_call.1} parent=0
    #allocation8 [shape = 'u8[32768]{0}', space=vmem, size = 0x8000, scoped, tag = 'output window, operand 0']
    #allocation9 [shape = 's32[2]{0}', space=sflag, size = 0x8, scoped, tag = 'scoped memory for tpu_custom_call.1']
    %30 = vsyncpa [#allocation9], 0
    %s31 = scalar_lea.sflag [#allocation9], 1
    %32 = vsyncpa %s31, 0
    loop: start=0, step=1, limit=6
    $region2: #{tpu_custom_call.1} parent=1 // loop_pre_header
      _
    $region3: #{tpu_custom_call.1} parent=1 // loop_header
      %s34 = sphi 0, %s38
      %p35 = scmp.ge.s32.totalorder %s34, 6
      %s41 = sphi 0, %s53
      %s42 = sphi 0, %s49
      %s43 = sphi 0, %s41
      %s44 = sphi 0, %s42
      %s45 = sphi 0, %s43
      %s46 = sphi 0, %s44
      %s58 = sphi 0, %s60
      %s61 = sphi 0, %s58
      %s62 = sphi 0, %s61
      %s78 = sphi 0, %s62
      %s82 = sphi 0, %s82
      %s84 = sphi 0, %s82
      %s85 = sphi 0, %s84
      %s99 = sphi 0, %s85
      %s103 = sphi 0, %s103
      %s105 = sphi 0, %s103
      %s106 = sphi 0, %s105
      %s120 = sphi 0, %s106
      %s124 = sphi 0, %s124
      %s126 = sphi 0, %s124
      %s127 = sphi 0, %s126
      %s141 = sphi 0, %s127
      %s145 = sphi 0, %s145
      %s147 = sphi 0, %s145
      %s148 = sphi 0, %s147
      %s162 = sphi 0, %s148
      %s166 = sphi 0, %s166
      %s168 = sphi 0, %s166
      %s169 = sphi 0, %s168
      %s183 = sphi 0, %s169
      %s187 = sphi 0, %s187
      %s189 = sphi 0, %s187
      %s190 = sphi 0, %s189
      %s204 = sphi 0, %s190
      %s208 = sphi 0, %s208
      %s210 = sphi 0, %s208
      %s211 = sphi 0, %s210
      %s225 = sphi 0, %s211
      %s229 = sphi 0, %s229
      %s231 = sphi 0, %s229
      %s232 = sphi 0, %s231
      %s246 = sphi 0, %s232
      %s250 = sphi 0, %s250
      %s252 = sphi 0, %s250
      %s253 = sphi 0, %s252
      %s267 = sphi 0, %s253
      %s271 = sphi 0, %s271
      %s273 = sphi 0, %s271
      %s274 = sphi 0, %s273
      %s288 = sphi 0, %s274
      %s292 = sphi 0, %s292
      %s294 = sphi 0, %s292
      %s295 = sphi 0, %s294
      %s309 = sphi 0, %s295
      %s313 = sphi 0, %s313
      %s315 = sphi 0, %s313
      %s316 = sphi 0, %s315
      %s330 = sphi 0, %s316
      %s334 = sphi 0, %s334
      %s336 = sphi 0, %s334
      %s337 = sphi 0, %s336
      %s351 = sphi 0, %s337
      %s355 = sphi 0, %s355
      %s357 = sphi 0, %s355
      %s358 = sphi 0, %s357
      %s372 = sphi 0, %s358
      %s376 = sphi 0, %s376
      %s378 = sphi 0, %s376
      %s379 = sphi 0, %s378
      %s393 = sphi 0, %s379
      %s397 = sphi 0, %s397
      %s399 = sphi 0, %s397
      %s400 = sphi 0, %s399
      %s414 = sphi 0, %s400
      %s418 = sphi 0, %s418
      %s420 = sphi 0, %s418
      %s421 = sphi 0, %s420
      %s435 = sphi 0, %s421
      %s439 = sphi 0, %s439
      %s441 = sphi 0, %s439
      %s442 = sphi 0, %s441
      %s456 = sphi 0, %s442
      %s460 = sphi 0, %s460
      %s462 = sphi 0, %s460
      %s463 = sphi 0, %s462
      %s477 = sphi 0, %s463
      %s481 = sphi 0, %s481
      %s483 = sphi 0, %s481
      %s484 = sphi 0, %s483
      %s498 = sphi 0, %s484
      %s502 = sphi 0, %s502
      %s504 = sphi 0, %s502
      %s505 = sphi 0, %s504
      %s519 = sphi 0, %s505
      %s523 = sphi 0, %s523
      %s525 = sphi 0, %s523
      %s526 = sphi 0, %s525
      %s540 = sphi 0, %s526
      %s544 = sphi 0, %s544
      %s546 = sphi 0, %s544
      %s547 = sphi 0, %s546
      %s561 = sphi 0, %s547
      %s565 = sphi 0, %s565
      %s567 = sphi 0, %s565
      %s568 = sphi 0, %s567
      %s582 = sphi 0, %s568
      %s590 = sphi 0, %s592
      %s593 = sphi 0, %s590
      %s594 = sphi 0, %s593
      %s610 = sphi 0, %s594
    $region4: #{tpu_custom_call.1} parent=1 // loop_header_branch
      %37 = sbr.rel (%p35) target = $region8
    $region5: #{tpu_custom_call.1} parent=1 // loop_body
      %s39 = ssub.s32 %s34, 1
      %s40 = ssub.s32 %s34, 2
      %s47 = sadd.s32 1, %s42
      %p48 = scmp.ge.s32.totalorder %s47, 2
      %s49 = scalar_select %p48, 0, %s47
      %s50 = sadd.s32 1, %s41
      %s51 = scalar_select %p48, %s50, %s41
      %p52 = scmp.ge.s32.totalorder %s51, 2
      %s53 = scalar_select %p52, 0, %s51
      %s54 = ssub.s32 %s41, %s53
      %s55 = ssub.s32 %s42, %s49
      %s56 = sor.u32 %s54, %s55
      %p57 = scmp.eq.s32.totalorder %s56, 0
      %s59 = sadd.s32 %s58, 1
      %s60 = scalar_select %p57, %s58, %s59
      %p63 = pneg %p57
      %p64 = scmp.eq.s32.totalorder %s34, 3
      %p65 = por %p63, %p64
      %p66 = scmp.ne.s32.totalorder %s58, %s61
      %p67 = scmp.eq.s32.totalorder %s34, 0
      %p68 = por %p66, %p67
      %p69 = scmp.ne.s32.totalorder %s58, %s61
      %p70 = scmp.eq.s32.totalorder %s39, 3
      %p71 = por %p69, %p70
      %p72 = scmp.ne.s32.totalorder %s61, %s62
      %p73 = scmp.eq.s32.totalorder %s39, 0
      %p74 = por %p72, %p73
      %p75 = scmp.ne.s32.totalorder %s61, %s62
      %p76 = scmp.eq.s32.totalorder %s40, 3
      %p77 = por %p75, %p76
      %p79 = scmp.ne.s32.totalorder %s62, %s78
      %p80 = scmp.eq.s32.totalorder %s40, 0
      %p81 = por %p79, %p80
      %s83 = sadd.s32 %s82, 1
      %p86 = scmp.eq.s32.totalorder %s34, 3
      %p87 = scmp.ne.s32.totalorder %s82, %s84
      %p88 = scmp.eq.s32.totalorder %s34, 0
      %p89 = por %p87, %p88
      %p90 = scmp.ne.s32.totalorder %s82, %s84
      %p91 = scmp.eq.s32.totalorder %s39, 3
      %p92 = por %p90, %p91
      %p93 = scmp.ne.s32.totalorder %s84, %s85
      %p94 = scmp.eq.s32.totalorder %s39, 0
      %p95 = por %p93, %p94
      %p96 = scmp.ne.s32.totalorder %s84, %s85
      %p97 = scmp.eq.s32.totalorder %s40, 3
      %p98 = por %p96, %p97
      %p100 = scmp.ne.s32.totalorder %s85, %s99
      %p101 = scmp.eq.s32.totalorder %s40, 0
      %p102 = por %p100, %p101
      %s104 = sadd.s32 %s103, 1
      %p107 = scmp.eq.s32.totalorder %s34, 3
      %p108 = scmp.ne.s32.totalorder %s103, %s105
      %p109 = scmp.eq.s32.totalorder %s34, 0
      %p110 = por %p108, %p109
      %p111 = scmp.ne.s32.totalorder %s103, %s105
      %p112 = scmp.eq.s32.totalorder %s39, 3
      %p113 = por %p111, %p112
      %p114 = scmp.ne.s32.totalorder %s105, %s106
      %p115 = scmp.eq.s32.totalorder %s39, 0
      %p116 = por %p114, %p115
      %p117 = scmp.ne.s32.totalorder %s105, %s106
      %p118 = scmp.eq.s32.totalorder %s40, 3
      %p119 = por %p117, %p118
      %p121 = scmp.ne.s32.totalorder %s106, %s120
      %p122 = scmp.eq.s32.totalorder %s40, 0
      %p123 = por %p121, %p122
      %s125 = sadd.s32 %s124, 1
      %p128 = scmp.eq.s32.totalorder %s34, 3
      %p129 = scmp.ne.s32.totalorder %s124, %s126
      %p130 = scmp.eq.s32.totalorder %s34, 0
      %p131 = por %p129, %p130
      %p132 = scmp.ne.s32.totalorder %s124, %s126
      %p133 = scmp.eq.s32.totalorder %s39, 3
      %p134 = por %p132, %p133
      %p135 = scmp.ne.s32.totalorder %s126, %s127
      %p136 = scmp.eq.s32.totalorder %s39, 0
      %p137 = por %p135, %p136
      %p138 = scmp.ne.s32.totalorder %s126, %s127
      %p139 = scmp.eq.s32.totalorder %s40, 3
      %p140 = por %p138, %p139
      %p142 = scmp.ne.s32.totalorder %s127, %s141
      %p143 = scmp.eq.s32.totalorder %s40, 0
      %p144 = por %p142, %p143
      %s146 = sadd.s32 %s145, 1
      %p149 = scmp.eq.s32.totalorder %s34, 3
      %p150 = scmp.ne.s32.totalorder %s145, %s147
      %p151 = scmp.eq.s32.totalorder %s34, 0
      %p152 = por %p150, %p151
      %p153 = scmp.ne.s32.totalorder %s145, %s147
      %p154 = scmp.eq.s32.totalorder %s39, 3
      %p155 = por %p153, %p154
      %p156 = scmp.ne.s32.totalorder %s147, %s148
      %p157 = scmp.eq.s32.totalorder %s39, 0
      %p158 = por %p156, %p157
      %p159 = scmp.ne.s32.totalorder %s147, %s148
      %p160 = scmp.eq.s32.totalorder %s40, 3
      %p161 = por %p159, %p160
      %p163 = scmp.ne.s32.totalorder %s148, %s162
      %p164 = scmp.eq.s32.totalorder %s40, 0
      %p165 = por %p163, %p164
      %s167 = sadd.s32 %s166, 1
      %p170 = scmp.eq.s32.totalorder %s34, 3
      %p171 = scmp.ne.s32.totalorder %s166, %s168
      %p172 = scmp.eq.s32.totalorder %s34, 0
      %p173 = por %p171, %p172
      %p174 = scmp.ne.s32.totalorder %s166, %s168
      %p175 = scmp.eq.s32.totalorder %s39, 3
      %p176 = por %p174, %p175
      %p177 = scmp.ne.s32.totalorder %s168, %s169
      %p178 = scmp.eq.s32.totalorder %s39, 0
      %p179 = por %p177, %p178
      %p180 = scmp.ne.s32.totalorder %s168, %s169
      %p181 = scmp.eq.s32.totalorder %s40, 3
      %p182 = por %p180, %p181
      %p184 = scmp.ne.s32.totalorder %s169, %s183
      %p185 = scmp.eq.s32.totalorder %s40, 0
      %p186 = por %p184, %p185
      %s188 = sadd.s32 %s187, 1
      %p191 = scmp.eq.s32.totalorder %s34, 3
      %p192 = scmp.ne.s32.totalorder %s187, %s189
      %p193 = scmp.eq.s32.totalorder %s34, 0
      %p194 = por %p192, %p193
      %p195 = scmp.ne.s32.totalorder %s187, %s189
      %p196 = scmp.eq.s32.totalorder %s39, 3
      %p197 = por %p195, %p196
      %p198 = scmp.ne.s32.totalorder %s189, %s190
      %p199 = scmp.eq.s32.totalorder %s39, 0
      %p200 = por %p198, %p199
      %p201 = scmp.ne.s32.totalorder %s189, %s190
      %p202 = scmp.eq.s32.totalorder %s40, 3
      %p203 = por %p201, %p202
      %p205 = scmp.ne.s32.totalorder %s190, %s204
      %p206 = scmp.eq.s32.totalorder %s40, 0
      %p207 = por %p205, %p206
      %s209 = sadd.s32 %s208, 1
      %p212 = scmp.eq.s32.totalorder %s34, 3
      %p213 = scmp.ne.s32.totalorder %s208, %s210
      %p214 = scmp.eq.s32.totalorder %s34, 0
      %p215 = por %p213, %p214
      %p216 = scmp.ne.s32.totalorder %s208, %s210
      %p217 = scmp.eq.s32.totalorder %s39, 3
      %p218 = por %p216, %p217
      %p219 = scmp.ne.s32.totalorder %s210, %s211
      %p220 = scmp.eq.s32.totalorder %s39, 0
      %p221 = por %p219, %p220
      %p222 = scmp.ne.s32.totalorder %s210, %s211
      %p223 = scmp.eq.s32.totalorder %s40, 3
      %p224 = por %p222, %p223
      %p226 = scmp.ne.s32.totalorder %s211, %s225
      %p227 = scmp.eq.s32.totalorder %s40, 0
      %p228 = por %p226, %p227
      %s230 = sadd.s32 %s229, 1
      %p233 = scmp.eq.s32.totalorder %s34, 3
      %p234 = scmp.ne.s32.totalorder %s229, %s231
      %p235 = scmp.eq.s32.totalorder %s34, 0
      %p236 = por %p234, %p235
      %p237 = scmp.ne.s32.totalorder %s229, %s231
      %p238 = scmp.eq.s32.totalorder %s39, 3
      %p239 = por %p237, %p238
      %p240 = scmp.ne.s32.totalorder %s231, %s232
      %p241 = scmp.eq.s32.totalorder %s39, 0
      %p242 = por %p240, %p241
      %p243 = scmp.ne.s32.totalorder %s231, %s232
      %p244 = scmp.eq.s32.totalorder %s40, 3
      %p245 = por %p243, %p244
      %p247 = scmp.ne.s32.totalorder %s232, %s246
      %p248 = scmp.eq.s32.totalorder %s40, 0
      %p249 = por %p247, %p248
      %s251 = sadd.s32 %s250, 1
      %p254 = scmp.eq.s32.totalorder %s34, 3
      %p255 = scmp.ne.s32.totalorder %s250, %s252
      %p256 = scmp.eq.s32.totalorder %s34, 0
      %p257 = por %p255, %p256
      %p258 = scmp.ne.s32.totalorder %s250, %s252
      %p259 = scmp.eq.s32.totalorder %s39, 3
      %p260 = por %p258, %p259
      %p261 = scmp.ne.s32.totalorder %s252, %s253
      %p262 = scmp.eq.s32.totalorder %s39, 0
      %p263 = por %p261, %p262
      %p264 = scmp.ne.s32.totalorder %s252, %s253
      %p265 = scmp.eq.s32.totalorder %s40, 3
      %p266 = por %p264, %p265
      %p268 = scmp.ne.s32.totalorder %s253, %s267
      %p269 = scmp.eq.s32.totalorder %s40, 0
      %p270 = por %p268, %p269
      %s272 = sadd.s32 %s271, 1
      %p275 = scmp.eq.s32.totalorder %s34, 3
      %p276 = scmp.ne.s32.totalorder %s271, %s273
      %p277 = scmp.eq.s32.totalorder %s34, 0
      %p278 = por %p276, %p277
      %p279 = scmp.ne.s32.totalorder %s271, %s273
      %p280 = scmp.eq.s32.totalorder %s39, 3
      %p281 = por %p279, %p280
      %p282 = scmp.ne.s32.totalorder %s273, %s274
      %p283 = scmp.eq.s32.totalorder %s39, 0
      %p284 = por %p282, %p283
      %p285 = scmp.ne.s32.totalorder %s273, %s274
      %p286 = scmp.eq.s32.totalorder %s40, 3
      %p287 = por %p285, %p286
      %p289 = scmp.ne.s32.totalorder %s274, %s288
      %p290 = scmp.eq.s32.totalorder %s40, 0
      %p291 = por %p289, %p290
      %s293 = sadd.s32 %s292, 1
      %p296 = scmp.eq.s32.totalorder %s34, 3
      %p297 = scmp.ne.s32.totalorder %s292, %s294
      %p298 = scmp.eq.s32.totalorder %s34, 0
      %p299 = por %p297, %p298
      %p300 = scmp.ne.s32.totalorder %s292, %s294
      %p301 = scmp.eq.s32.totalorder %s39, 3
      %p302 = por %p300, %p301
      %p303 = scmp.ne.s32.totalorder %s294, %s295
      %p304 = scmp.eq.s32.totalorder %s39, 0
      %p305 = por %p303, %p304
      %p306 = scmp.ne.s32.totalorder %s294, %s295
      %p307 = scmp.eq.s32.totalorder %s40, 3
      %p308 = por %p306, %p307
      %p310 = scmp.ne.s32.totalorder %s295, %s309
      %p311 = scmp.eq.s32.totalorder %s40, 0
      %p312 = por %p310, %p311
      %s314 = sadd.s32 %s313, 1
      %p317 = scmp.eq.s32.totalorder %s34, 3
      %p318 = scmp.ne.s32.totalorder %s313, %s315
      %p319 = scmp.eq.s32.totalorder %s34, 0
      %p320 = por %p318, %p319
      %p321 = scmp.ne.s32.totalorder %s313, %s315
      %p322 = scmp.eq.s32.totalorder %s39, 3
      %p323 = por %p321, %p322
      %p324 = scmp.ne.s32.totalorder %s315, %s316
      %p325 = scmp.eq.s32.totalorder %s39, 0
      %p326 = por %p324, %p325
      %p327 = scmp.ne.s32.totalorder %s315, %s316
      %p328 = scmp.eq.s32.totalorder %s40, 3
      %p329 = por %p327, %p328
      %p331 = scmp.ne.s32.totalorder %s316, %s330
      %p332 = scmp.eq.s32.totalorder %s40, 0
      %p333 = por %p331, %p332
      %s335 = sadd.s32 %s334, 1
      %p338 = scmp.eq.s32.totalorder %s34, 3
      %p339 = scmp.ne.s32.totalorder %s334, %s336
      %p340 = scmp.eq.s32.totalorder %s34, 0
      %p341 = por %p339, %p340
      %p342 = scmp.ne.s32.totalorder %s334, %s336
      %p343 = scmp.eq.s32.totalorder %s39, 3
      %p344 = por %p342, %p343
      %p345 = scmp.ne.s32.totalorder %s336, %s337
      %p346 = scmp.eq.s32.totalorder %s39, 0
      %p347 = por %p345, %p346
      %p348 = scmp.ne.s32.totalorder %s336, %s337
      %p349 = scmp.eq.s32.totalorder %s40, 3
      %p350 = por %p348, %p349
      %p352 = scmp.ne.s32.totalorder %s337, %s351
      %p353 = scmp.eq.s32.totalorder %s40, 0
      %p354 = por %p352, %p353
      %s356 = sadd.s32 %s355, 1
      %p359 = scmp.eq.s32.totalorder %s34, 3
      %p360 = scmp.ne.s32.totalorder %s355, %s357
      %p361 = scmp.eq.s32.totalorder %s34, 0
      %p362 = por %p360, %p361
      %p363 = scmp.ne.s32.totalorder %s355, %s357
      %p364 = scmp.eq.s32.totalorder %s39, 3
      %p365 = por %p363, %p364
      %p366 = scmp.ne.s32.totalorder %s357, %s358
      %p367 = scmp.eq.s32.totalorder %s39, 0
      %p368 = por %p366, %p367
      %p369 = scmp.ne.s32.totalorder %s357, %s358
      %p370 = scmp.eq.s32.totalorder %s40, 3
      %p371 = por %p369, %p370
      %p373 = scmp.ne.s32.totalorder %s358, %s372
      %p374 = scmp.eq.s32.totalorder %s40, 0
      %p375 = por %p373, %p374
      %s377 = sadd.s32 %s376, 1
      %p380 = scmp.eq.s32.totalorder %s34, 3
      %p381 = scmp.ne.s32.totalorder %s376, %s378
      %p382 = scmp.eq.s32.totalorder %s34, 0
      %p383 = por %p381, %p382
      %p384 = scmp.ne.s32.totalorder %s376, %s378
      %p385 = scmp.eq.s32.totalorder %s39, 3
      %p386 = por %p384, %p385
      %p387 = scmp.ne.s32.totalorder %s378, %s379
      %p388 = scmp.eq.s32.totalorder %s39, 0
      %p389 = por %p387, %p388
      %p390 = scmp.ne.s32.totalorder %s378, %s379
      %p391 = scmp.eq.s32.totalorder %s40, 3
      %p392 = por %p390, %p391
      %p394 = scmp.ne.s32.totalorder %s379, %s393
      %p395 = scmp.eq.s32.totalorder %s40, 0
      %p396 = por %p394, %p395
      %s398 = sadd.s32 %s397, 1
      %p401 = scmp.eq.s32.totalorder %s34, 3
      %p402 = scmp.ne.s32.totalorder %s397, %s399
      %p403 = scmp.eq.s32.totalorder %s34, 0
      %p404 = por %p402, %p403
      %p405 = scmp.ne.s32.totalorder %s397, %s399
      %p406 = scmp.eq.s32.totalorder %s39, 3
      %p407 = por %p405, %p406
      %p408 = scmp.ne.s32.totalorder %s399, %s400
      %p409 = scmp.eq.s32.totalorder %s39, 0
      %p410 = por %p408, %p409
      %p411 = scmp.ne.s32.totalorder %s399, %s400
      %p412 = scmp.eq.s32.totalorder %s40, 3
      %p413 = por %p411, %p412
      %p415 = scmp.ne.s32.totalorder %s400, %s414
      %p416 = scmp.eq.s32.totalorder %s40, 0
      %p417 = por %p415, %p416
      %s419 = sadd.s32 %s418, 1
      %p422 = scmp.eq.s32.totalorder %s34, 3
      %p423 = scmp.ne.s32.totalorder %s418, %s420
      %p424 = scmp.eq.s32.totalorder %s34, 0
      %p425 = por %p423, %p424
      %p426 = scmp.ne.s32.totalorder %s418, %s420
      %p427 = scmp.eq.s32.totalorder %s39, 3
      %p428 = por %p426, %p427
      %p429 = scmp.ne.s32.totalorder %s420, %s421
      %p430 = scmp.eq.s32.totalorder %s39, 0
      %p431 = por %p429, %p430
      %p432 = scmp.ne.s32.totalorder %s420, %s421
      %p433 = scmp.eq.s32.totalorder %s40, 3
      %p434 = por %p432, %p433
      %p436 = scmp.ne.s32.totalorder %s421, %s435
      %p437 = scmp.eq.s32.totalorder %s40, 0
      %p438 = por %p436, %p437
      %s440 = sadd.s32 %s439, 1
      %p443 = scmp.eq.s32.totalorder %s34, 3
      %p444 = scmp.ne.s32.totalorder %s439, %s441
      %p445 = scmp.eq.s32.totalorder %s34, 0
      %p446 = por %p444, %p445
      %p447 = scmp.ne.s32.totalorder %s439, %s441
      %p448 = scmp.eq.s32.totalorder %s39, 3
      %p449 = por %p447, %p448
      %p450 = scmp.ne.s32.totalorder %s441, %s442
      %p451 = scmp.eq.s32.totalorder %s39, 0
      %p452 = por %p450, %p451
      %p453 = scmp.ne.s32.totalorder %s441, %s442
      %p454 = scmp.eq.s32.totalorder %s40, 3
      %p455 = por %p453, %p454
      %p457 = scmp.ne.s32.totalorder %s442, %s456
      %p458 = scmp.eq.s32.totalorder %s40, 0
      %p459 = por %p457, %p458
      %s461 = sadd.s32 %s460, 1
      %p464 = scmp.eq.s32.totalorder %s34, 3
      %p465 = scmp.ne.s32.totalorder %s460, %s462
      %p466 = scmp.eq.s32.totalorder %s34, 0
      %p467 = por %p465, %p466
      %p468 = scmp.ne.s32.totalorder %s460, %s462
      %p469 = scmp.eq.s32.totalorder %s39, 3
      %p470 = por %p468, %p469
      %p471 = scmp.ne.s32.totalorder %s462, %s463
      %p472 = scmp.eq.s32.totalorder %s39, 0
      %p473 = por %p471, %p472
      %p474 = scmp.ne.s32.totalorder %s462, %s463
      %p475 = scmp.eq.s32.totalorder %s40, 3
      %p476 = por %p474, %p475
      %p478 = scmp.ne.s32.totalorder %s463, %s477
      %p479 = scmp.eq.s32.totalorder %s40, 0
      %p480 = por %p478, %p479
      %s482 = sadd.s32 %s481, 1
      %p485 = scmp.eq.s32.totalorder %s34, 3
      %p486 = scmp.ne.s32.totalorder %s481, %s483
      %p487 = scmp.eq.s32.totalorder %s34, 0
      %p488 = por %p486, %p487
      %p489 = scmp.ne.s32.totalorder %s481, %s483
      %p490 = scmp.eq.s32.totalorder %s39, 3
      %p491 = por %p489, %p490
      %p492 = scmp.ne.s32.totalorder %s483, %s484
      %p493 = scmp.eq.s32.totalorder %s39, 0
      %p494 = por %p492, %p493
      %p495 = scmp.ne.s32.totalorder %s483, %s484
      %p496 = scmp.eq.s32.totalorder %s40, 3
      %p497 = por %p495, %p496
      %p499 = scmp.ne.s32.totalorder %s484, %s498
      %p500 = scmp.eq.s32.totalorder %s40, 0
      %p501 = por %p499, %p500
      %s503 = sadd.s32 %s502, 1
      %p506 = scmp.eq.s32.totalorder %s34, 3
      %p507 = scmp.ne.s32.totalorder %s502, %s504
      %p508 = scmp.eq.s32.totalorder %s34, 0
      %p509 = por %p507, %p508
      %p510 = scmp.ne.s32.totalorder %s502, %s504
      %p511 = scmp.eq.s32.totalorder %s39, 3
      %p512 = por %p510, %p511
      %p513 = scmp.ne.s32.totalorder %s504, %s505
      %p514 = scmp.eq.s32.totalorder %s39, 0
      %p515 = por %p513, %p514
      %p516 = scmp.ne.s32.totalorder %s504, %s505
      %p517 = scmp.eq.s32.totalorder %s40, 3
      %p518 = por %p516, %p517
      %p520 = scmp.ne.s32.totalorder %s505, %s519
      %p521 = scmp.eq.s32.totalorder %s40, 0
      %p522 = por %p520, %p521
      %s524 = sadd.s32 %s523, 1
      %p527 = scmp.eq.s32.totalorder %s34, 3
      %p528 = scmp.ne.s32.totalorder %s523, %s525
      %p529 = scmp.eq.s32.totalorder %s34, 0
      %p530 = por %p528, %p529
      %p531 = scmp.ne.s32.totalorder %s523, %s525
      %p532 = scmp.eq.s32.totalorder %s39, 3
      %p533 = por %p531, %p532
      %p534 = scmp.ne.s32.totalorder %s525, %s526
      %p535 = scmp.eq.s32.totalorder %s39, 0
      %p536 = por %p534, %p535
      %p537 = scmp.ne.s32.totalorder %s525, %s526
      %p538 = scmp.eq.s32.totalorder %s40, 3
      %p539 = por %p537, %p538
      %p541 = scmp.ne.s32.totalorder %s526, %s540
      %p542 = scmp.eq.s32.totalorder %s40, 0
      %p543 = por %p541, %p542
      %s545 = sadd.s32 %s544, 1
      %p548 = scmp.eq.s32.totalorder %s34, 3
      %p549 = scmp.ne.s32.totalorder %s544, %s546
      %p550 = scmp.eq.s32.totalorder %s34, 0
      %p551 = por %p549, %p550
      %p552 = scmp.ne.s32.totalorder %s544, %s546
      %p553 = scmp.eq.s32.totalorder %s39, 3
      %p554 = por %p552, %p553
      %p555 = scmp.ne.s32.totalorder %s546, %s547
      %p556 = scmp.eq.s32.totalorder %s39, 0
      %p557 = por %p555, %p556
      %p558 = scmp.ne.s32.totalorder %s546, %s547
      %p559 = scmp.eq.s32.totalorder %s40, 3
      %p560 = por %p558, %p559
      %p562 = scmp.ne.s32.totalorder %s547, %s561
      %p563 = scmp.eq.s32.totalorder %s40, 0
      %p564 = por %p562, %p563
      %s566 = sadd.s32 %s565, 1
      %p569 = scmp.eq.s32.totalorder %s34, 3
      %p570 = scmp.ne.s32.totalorder %s565, %s567
      %p571 = scmp.eq.s32.totalorder %s34, 0
      %p572 = por %p570, %p571
      %p573 = scmp.ne.s32.totalorder %s565, %s567
      %p574 = scmp.eq.s32.totalorder %s39, 3
      %p575 = por %p573, %p574
      %p576 = scmp.ne.s32.totalorder %s567, %s568
      %p577 = scmp.eq.s32.totalorder %s39, 0
      %p578 = por %p576, %p577
      %p579 = scmp.ne.s32.totalorder %s567, %s568
      %p580 = scmp.eq.s32.totalorder %s40, 3
      %p581 = por %p579, %p580
      %p583 = scmp.ne.s32.totalorder %s568, %s582
      %p584 = scmp.eq.s32.totalorder %s40, 0
      %p585 = por %p583, %p584
      %s586 = ssub.s32 %s41, %s53
      %s587 = ssub.s32 %s42, %s49
      %s588 = sor.u32 %s586, %s587
      %p589 = scmp.eq.s32.totalorder %s588, 0
      %s591 = sadd.s32 %s590, 1
      %s592 = scalar_select %p589, %s590, %s591
      %p595 = pneg %p589
      %p596 = scmp.eq.s32.totalorder %s34, 3
      %p597 = por %p595, %p596
      %p598 = scmp.ne.s32.totalorder %s590, %s593
      %p599 = scmp.eq.s32.totalorder %s34, 0
      %p600 = por %p598, %p599
      %p601 = scmp.ne.s32.totalorder %s590, %s593
      %p602 = scmp.eq.s32.totalorder %s39, 3
      %p603 = por %p601, %p602
      %p604 = scmp.ne.s32.totalorder %s593, %s594
      %p605 = scmp.eq.s32.totalorder %s39, 0
      %p606 = por %p604, %p605
      %p607 = scmp.ne.s32.totalorder %s593, %s594
      %p608 = scmp.eq.s32.totalorder %s40, 3
      %p609 = por %p607, %p608
      %p611 = scmp.ne.s32.totalorder %s594, %s610
      %p612 = scmp.eq.s32.totalorder %s40, 0
      %p613 = por %p611, %p612
      %p614 = scmp.le.s32.totalorder 1, %s34
      %p615 = scmp.lt.s32.totalorder %s34, 5
      %p616 = pnand %p614, %p615
      %p617 = pneg %p616
      // Predicated region
      $region9: #{tpu_custom_call.1} parent=5 // pred_check
        _
      $region10: #{tpu_custom_call.1} parent=5 // pred_check_branch
        %619 = sbr.rel (%p616) target = $region12
      $region11: #{tpu_custom_call.1} parent=5 // pred_region
        %s620 = ssub.s32 %s34, 1
        // Predicated region
        $region13: #{tpu_custom_call.1} parent=11 // pred_check
          %p621 = pneg %p95
        $region14: #{tpu_custom_call.1} parent=11 // pred_check_branch
          %623 = sbr.rel (%p621) target = $region16
        $region15: #{tpu_custom_call.1} parent=11 // pred_region
          _
        $region16: #{tpu_custom_call.1} parent=11 // pred_fallthru
          _
        // Predicated region
        $region17: #{tpu_custom_call.1} parent=11 // pred_check
          %p624 = pneg %p116
        $region18: #{tpu_custom_call.1} parent=11 // pred_check_branch
          %626 = sbr.rel (%p624) target = $region20
        $region19: #{tpu_custom_call.1} parent=11 // pred_region
          _
        $region20: #{tpu_custom_call.1} parent=11 // pred_fallthru
          _
        // Predicated region
        $region21: #{tpu_custom_call.1} parent=11 // pred_check
          %p627 = pneg %p137
        $region22: #{tpu_custom_call.1} parent=11 // pred_check_branch
          %629 = sbr.rel (%p627) target = $region24
        $region23: #{tpu_custom_call.1} parent=11 // pred_region
          _
        $region24: #{tpu_custom_call.1} parent=11 // pred_fallthru
          _
        // Predicated region
        $region25: #{tpu_custom_call.1} parent=11 // pred_check
          %p630 = pneg %p158
        $region26: #{tpu_custom_call.1} parent=11 // pred_check_branch
          %632 = sbr.rel (%p630) target = $region28
        $region27: #{tpu_custom_call.1} parent=11 // pred_region
          _
        $region28: #{tpu_custom_call.1} parent=11 // pred_fallthru
          _
        // Predicated region
        $region29: #{tpu_custom_call.1} parent=11 // pred_check
          %p633 = pneg %p179
        $region30: #{tpu_custom_call.1} parent=11 // pred_check_branch
          %635 = sbr.rel (%p633) target = $region32
        $region31: #{tpu_custom_call.1} parent=11 // pred_region
          _
        $region32: #{tpu_custom_call.1} parent=11 // pred_fallthru
          _
        // Predicated region
        $region33: #{tpu_custom_call.1} parent=11 // pred_check
          %p636 = pneg %p200
        $region34: #{tpu_custom_call.1} parent=11 // pred_check_branch
          %638 = sbr.rel (%p636) target = $region36
        $region35: #{tpu_custom_call.1} parent=11 // pred_region
          _
        $region36: #{tpu_custom_call.1} parent=11 // pred_fallthru
          _
        // Predicated region
        $region37: #{tpu_custom_call.1} parent=11 // pred_check
          %p639 = pneg %p221
        $region38: #{tpu_custom_call.1} parent=11 // pred_check_branch
          %641 = sbr.rel (%p639) target = $region40
        $region39: #{tpu_custom_call.1} parent=11 // pred_region
          _
        $region40: #{tpu_custom_call.1} parent=11 // pred_fallthru
          _
        // Predicated region
        $region41: #{tpu_custom_call.1} parent=11 // pred_check
          %p642 = pneg %p242
        $region42: #{tpu_custom_call.1} parent=11 // pred_check_branch
          %644 = sbr.rel (%p642) target = $region44
        $region43: #{tpu_custom_call.1} parent=11 // pred_region
          _
        $region44: #{tpu_custom_call.1} parent=11 // pred_fallthru
          _
        // Predicated region
        $region45: #{tpu_custom_call.1} parent=11 // pred_check
          %p645 = pneg %p263
        $region46: #{tpu_custom_call.1} parent=11 // pred_check_branch
          %647 = sbr.rel (%p645) target = $region48
        $region47: #{tpu_custom_call.1} parent=11 // pred_region
          _
        $region48: #{tpu_custom_call.1} parent=11 // pred_fallthru
          _
        // Predicated region
        $region49: #{tpu_custom_call.1} parent=11 // pred_check
          %p648 = pneg %p284
        $region50: #{tpu_custom_call.1} parent=11 // pred_check_branch
          %650 = sbr.rel (%p648) target = $region52
        $region51: #{tpu_custom_call.1} parent=11 // pred_region
          _
        $region52: #{tpu_custom_call.1} parent=11 // pred_fallthru
          _
        // Predicated region
        $region53: #{tpu_custom_call.1} parent=11 // pred_check
          %p651 = pneg %p305
        $region54: #{tpu_custom_call.1} parent=11 // pred_check_branch
          %653 = sbr.rel (%p651) target = $region56
        $region55: #{tpu_custom_call.1} parent=11 // pred_region
          _
        $region56: #{tpu_custom_call.1} parent=11 // pred_fallthru
          _
        // Predicated region
        $region57: #{tpu_custom_call.1} parent=11 // pred_check
          %p654 = pneg %p326
        $region58: #{tpu_custom_call.1} parent=11 // pred_check_branch
          %656 = sbr.rel (%p654) target = $region60
        $region59: #{tpu_custom_call.1} parent=11 // pred_region
          _
        $region60: #{tpu_custom_call.1} parent=11 // pred_fallthru
          _
        // Predicated region
        $region61: #{tpu_custom_call.1} parent=11 // pred_check
          %p657 = pneg %p347
        $region62: #{tpu_custom_call.1} parent=11 // pred_check_branch
          %659 = sbr.rel (%p657) target = $region64
        $region63: #{tpu_custom_call.1} parent=11 // pred_region
          _
        $region64: #{tpu_custom_call.1} parent=11 // pred_fallthru
          _
        // Predicated region
        $region65: #{tpu_custom_call.1} parent=11 // pred_check
          %p660 = pneg %p368
        $region66: #{tpu_custom_call.1} parent=11 // pred_check_branch
          %662 = sbr.rel (%p660) target = $region68
        $region67: #{tpu_custom_call.1} parent=11 // pred_region
          _
        $region68: #{tpu_custom_call.1} parent=11 // pred_fallthru
          _
        // Predicated region
        $region69: #{tpu_custom_call.1} parent=11 // pred_check
          %p663 = pneg %p389
        $region70: #{tpu_custom_call.1} parent=11 // pred_check_branch
          %665 = sbr.rel (%p663) target = $region72
        $region71: #{tpu_custom_call.1} parent=11 // pred_region
          _
        $region72: #{tpu_custom_call.1} parent=11 // pred_fallthru
          _
        // Predicated region
        $region73: #{tpu_custom_call.1} parent=11 // pred_check
          %p666 = pneg %p410
        $region74: #{tpu_custom_call.1} parent=11 // pred_check_branch
          %668 = sbr.rel (%p666) target = $region76
        $region75: #{tpu_custom_call.1} parent=11 // pred_region
          _
        $region76: #{tpu_custom_call.1} parent=11 // pred_fallthru
          _
        // Predicated region
        $region77: #{tpu_custom_call.1} parent=11 // pred_check
          %p669 = pneg %p431
        $region78: #{tpu_custom_call.1} parent=11 // pred_check_branch
          %671 = sbr.rel (%p669) target = $region80
        $region79: #{tpu_custom_call.1} parent=11 // pred_region
          _
        $region80: #{tpu_custom_call.1} parent=11 // pred_fallthru
          _
        // Predicated region
        $region81: #{tpu_custom_call.1} parent=11 // pred_check
          %p672 = pneg %p452
        $region82: #{tpu_custom_call.1} parent=11 // pred_check_branch
          %674 = sbr.rel (%p672) target = $region84
        $region83: #{tpu_custom_call.1} parent=11 // pred_region
          _
        $region84: #{tpu_custom_call.1} parent=11 // pred_fallthru
          _
        // Predicated region
        $region85: #{tpu_custom_call.1} parent=11 // pred_check
          %p675 = pneg %p473
        $region86: #{tpu_custom_call.1} parent=11 // pred_check_branch
          %677 = sbr.rel (%p675) target = $region88
        $region87: #{tpu_custom_call.1} parent=11 // pred_region
          _
        $region88: #{tpu_custom_call.1} parent=11 // pred_fallthru
          _
        // Predicated region
        $region89: #{tpu_custom_call.1} parent=11 // pred_check
          %p678 = pneg %p494
        $region90: #{tpu_custom_call.1} parent=11 // pred_check_branch
          %680 = sbr.rel (%p678) target = $region92
        $region91: #{tpu_custom_call.1} parent=11 // pred_region
          _
        $region92: #{tpu_custom_call.1} parent=11 // pred_fallthru
          _
        // Predicated region
        $region93: #{tpu_custom_call.1} parent=11 // pred_check
          %p681 = pneg %p515
        $region94: #{tpu_custom_call.1} parent=11 // pred_check_branch
          %683 = sbr.rel (%p681) target = $region96
        $region95: #{tpu_custom_call.1} parent=11 // pred_region
          _
        $region96: #{tpu_custom_call.1} parent=11 // pred_fallthru
          _
        // Predicated region
        $region97: #{tpu_custom_call.1} parent=11 // pred_check
          %p684 = pneg %p536
        $region98: #{tpu_custom_call.1} parent=11 // pred_check_branch
          %686 = sbr.rel (%p684) target = $region100
        $region99: #{tpu_custom_call.1} parent=11 // pred_region
          _
        $region100: #{tpu_custom_call.1} parent=11 // pred_fallthru
          _
        // Predicated region
        $region101: #{tpu_custom_call.1} parent=11 // pred_check
          %p687 = pneg %p557
        $region102: #{tpu_custom_call.1} parent=11 // pred_check_branch
          %689 = sbr.rel (%p687) target = $region104
        $region103: #{tpu_custom_call.1} parent=11 // pred_region
          _
        $region104: #{tpu_custom_call.1} parent=11 // pred_fallthru
          _
        // Predicated region
        $region105: #{tpu_custom_call.1} parent=11 // pred_check
          %p690 = pneg %p578
        $region106: #{tpu_custom_call.1} parent=11 // pred_check_branch
          %692 = sbr.rel (%p690) target = $region108
        $region107: #{tpu_custom_call.1} parent=11 // pred_region
          _
        $region108: #{tpu_custom_call.1} parent=11 // pred_fallthru
          _
      $region12: #{tpu_custom_call.1} parent=5 // pred_fallthru
        _
      %p693 = scmp.lt.s32.totalorder %s34, 4
      // Predicated region
      $region109: #{tpu_custom_call.1} parent=5 // pred_check
        %p694 = pneg %p693
      $region110: #{tpu_custom_call.1} parent=5 // pred_check_branch
        %696 = sbr.rel (%p694) target = $region112
      $region111: #{tpu_custom_call.1} parent=5 // pred_region
        // Predicated region
        $region113: #{tpu_custom_call.1} parent=111 // pred_check
          %p697 = pneg %p68
        $region114: #{tpu_custom_call.1} parent=111 // pred_check_branch
          %699 = sbr.rel (%p697) target = $region116
        $region115: #{tpu_custom_call.1} parent=111 // pred_region
          %s700 = smul.u32 4, %s42
          %p701 = scmp.lt.s32.totalorder %s41, 1
          %s702 = scalar_select %p701, %s41, 1
          %p703 = scmp.lt.s32.totalorder %s700, 7
          %s704 = scalar_select %p703, %s700, 7
          %s705 = smul.addr %s702, 8
          %s706 = sadd.s32 %s704, %s705
          %s707 = smul.addr %s706, 2
          %s708 = scalar_lea.vmem %s0, %s707
          %s709 = smul.u32 4, %s42
        $region116: #{tpu_custom_call.1} parent=111 // pred_fallthru
          _
      $region112: #{tpu_custom_call.1} parent=5 // pred_fallthru
        _
      %p710 = scmp.le.s32.totalorder 1, %s34
      %p711 = scmp.lt.s32.totalorder %s34, 5
      %p712 = pnand %p710, %p711
      %p713 = pneg %p712
      // Predicated region
      $region117: #{tpu_custom_call.1} parent=5 // pred_check
        _
      $region118: #{tpu_custom_call.1} parent=5 // pred_check_branch
        %715 = sbr.rel (%p712) target = $region120
      $region119: #{tpu_custom_call.1} parent=5 // pred_region
        %s716 = ssub.s32 %s34, 1
        %s717 = smul.u32 4, %s44
        %p718 = scmp.lt.s32.totalorder %s43, 1
        %s719 = scalar_select %p718, %s43, 1
        %p720 = scmp.lt.s32.totalorder %s717, 7
        %s721 = scalar_select %p720, %s717, 7
        %s722 = smul.addr %s719, 8
        %s723 = sadd.s32 %s721, %s722
        %s724 = smul.addr %s723, 2
        %s725 = scalar_lea.vmem %s0, %s724
        %p726 = pneg %p74
        %p727 = pneg %p71
        %p728 = pneg %p95
        %p729 = pneg %p92
        %p730 = pneg %p116
        %p731 = pneg %p113
        %p732 = pneg %p137
        %p733 = pneg %p134
        %p734 = pneg %p158
        %p735 = pneg %p155
        %p736 = pneg %p179
        %p737 = pneg %p176
        %p738 = pneg %p200
        %p739 = pneg %p197
        %p740 = pneg %p221
        %p741 = pneg %p218
        %p742 = pneg %p242
        %p743 = pneg %p239
        %p744 = pneg %p263
        %p745 = pneg %p260
        %p746 = pneg %p284
        %p747 = pneg %p281
        %p748 = pneg %p305
        %p749 = pneg %p302
        %p750 = pneg %p326
        %p751 = pneg %p323
        %p752 = pneg %p347
        %p753 = pneg %p344
        %p754 = pneg %p368
        %p755 = pneg %p365
        %p756 = pneg %p389
        %p757 = pneg %p386
        %p758 = pneg %p410
        %p759 = pneg %p407
        %p760 = pneg %p431
        %p761 = pneg %p428
        %p762 = pneg %p452
        %p763 = pneg %p449
        %p764 = pneg %p473
        %p765 = pneg %p470
        %p766 = pneg %p494
        %p767 = pneg %p491
        %p768 = pneg %p515
        %p769 = pneg %p512
        %p770 = pneg %p536
        %p771 = pneg %p533
        %p772 = pneg %p557
        %p773 = pneg %p554
        %p774 = pneg %p578
        %p775 = pneg %p575
        %p776 = pneg %p606
        %p777 = pneg %p603
        %s778 = sand.u32 %s593, 1
        %s779 = scalar_lea.sflag [#allocation9], %s778
        %s780 = sand.u32 %s593, 1
        %s781 = smul.addr %s780, 32
        %s782 = scalar_lea.vmem [#allocation8], %s781
        %s783 = smul.u32 4, %s44
        %p784 = scmp.lt.s32.totalorder %s43, 1
        %s785 = scalar_select %p784, %s43, 1
        %p786 = scmp.lt.s32.totalorder %s783, 7
        %s787 = scalar_select %p786, %s783, 7
        %s788 = smul.addr %s785, 8
        %s789 = sadd.s32 %s787, %s788
        %s790 = smul.addr %s789, 2
        %s791 = scalar_lea.vmem %s0, %s790
        %s792 = smul.u32 4, %s44
        %s793 = smul.u32 4, %s44
        %p795 = scmp.eq.s32.totalorder %s44, 0
        // Predicated region
        $region121: #{tpu_custom_call.1} parent=119 // pred_check
          %p796 = pneg %p795
        $region122: #{tpu_custom_call.1} parent=119 // pred_check_branch
          %798 = sbr.rel (%p796) target = $region124
        $region123: #{tpu_custom_call.1} parent=119 // pred_region
          %799 = vst [vmem:[#allocation2] sm:$0xff] 0
          %vm800 = vcmask 9216
          %801 = vst.msk [vmem:[#allocation2 + $0x8] sm:$0x3] %vm800, 0
          %802 = vst [vmem:[#allocation3] sm:$0xff] 0
          %803 = vst [vmem:[#allocation3 + $0x8] sm:$0xff] 0
          %vm804 = vcmask 11264
          %805 = vst.msk [vmem:[#allocation3 + $0x10] sm:$0xf] %vm804, 0
          %806 = vst [vmem:[#allocation4] sm:$0xff] 0
          %807 = vst [vmem:[#allocation4 + $0x8] sm:$0xff] 0
          %vm808 = vcmask 27648
          %809 = vst.msk [vmem:[#allocation4 + $0x10] sm:$0xf] %vm808, 0
          %810 = vst [vmem:[#allocation5] sm:$0xff] 0
          %811 = vst [vmem:[#allocation5 + $0x8] sm:$0xff] 0
          %812 = vst [vmem:[#allocation5 + $0x10] sm:$0xff] 0
          %813 = vst [vmem:[#allocation5 + $0x18] sm:$0xff] 0
          %vm814 = vcmask 31744
          %815 = vst.msk [vmem:[#allocation5 + $0x20] sm:$0xff] %vm814, 0
          %816 = vst [vmem:[#allocation6] sm:$0xff] 0
          %817 = vst [vmem:[#allocation6 + $0x8] sm:$0xff] 0
          %818 = vst [vmem:[#allocation6 + $0x10] sm:$0xff] 0
          %819 = vst [vmem:[#allocation6 + $0x18] sm:$0xff] 0
          %vm820 = vcmask 64512
          %821 = vst.msk [vmem:[#allocation6 + $0x20] sm:$0xff] %vm820, 0
          %822 = vst [vmem:[#allocation7] sm:$0xff] 0
          %823 = vst [vmem:[#allocation7 + $0x8] sm:$0xff] 0
          %824 = vst [vmem:[#allocation7 + $0x10] sm:$0xff] 0
          %825 = vst [vmem:[#allocation7 + $0x18] sm:$0xff] 0
          %826 = vst.msk [vmem:[#allocation7 + $0x20] sm:$0xff] %vm820, 0
        $region124: #{tpu_custom_call.1} parent=119 // pred_fallthru
          _
        %v827 = vld [vmem:[%s791] sm:$0xff]
        %v828 = vld [vmem:[%s3] sm:$0xf]
        %v829 = vld [vmem:[%s3 + $0x4] sm:$0xf]
        %v830 = vld [vmem:[%s4] sm:$0xff]
        %v831 = vld [vmem:[%s4 + $0x8] sm:$0xff]
        %833 = vset.pattern.permute.xlu0 0
        %834 = vperm.xlu0 %833, %v830
        %v835 = vpop.permute.xlu0 %834
        %838 = vset.pattern.permute.xlu0 0
        %839 = vperm.xlu0 %838, %v831
        %v840 = vpop.permute.xlu0 %839
        %v844 = vunpack.c.l.b16 %v828
        %v845 = vunpack.c.l.b16 %v829
        %v846 = vpack.c.b16 %v845, %v844
        %v848 = vcombine.high %v827, %v827
        %v850 = vunpack.c.l.s4 1983009808
        %v851 = vunpack.c.0.s8 %v850
        %v852 = vlaneseq
        %v853 = vshrl.u32 %v852, 7
        %v854 = vsub.s32 %v851, %v853
        %v855 = vrot.slane %v827, %v854
        %v857 = vunpack.c.l.s4 1983009808
        %v858 = vunpack.c.0.s8 %v857
        %v859 = vlaneseq
        %v860 = vshrl.u32 %v859, 7
        %v861 = vsub.s32 %v858, %v860
        %v862 = vrot.slane %v848, %v861
        %v863 = vcombine.high %v855, %v855
        %v864 = vcombine.high %v862, %v862
        %vm865 = vcmask 31744
        %v867 = vsel %vm865, %v846, 0
        %vm869 = vcmask 1041408
        %v871 = vsel %vm869, %v855, 0
        %v874 = vsel %vm869, %v863, 0
        %v877 = vsel %vm869, %v862, 0
        %v880 = vsel %vm869, %v864, 0
        %882 = vmatprep.subr.bf16.mxu0 %v874
        %883 = vmatpush1.bf16.msra.mxu0 %v871
        %884 = vmatprep.subr.bf16.mxu0 0
        %885 = vmatpush1.bf16.msra.mxu0 0
        %886 = vmatprep.subr.bf16.mxu0 0
        %887 = vmatpush1.bf16.msra.mxu0 0
        %888 = vmatprep.subr.bf16.mxu0 0
        %889 = vmatpush1.bf16.msra.mxu0 0
        %890 = vmatprep.subr.bf16.mxu0 0
        %891 = vmatpush1.bf16.msra.mxu0 0
        %892 = vmatprep.subr.bf16.mxu0 0
        %893 = vmatpush1.bf16.msra.mxu0 0
        %894 = vmatprep.subr.bf16.mxu0 0
        %895 = vmatpush1.bf16.msra.mxu0 0
        %896 = vmatprep.subr.bf16.mxu0 0
        %897 = vmatpush1.bf16.msra.mxu0 0
        %898 = vmatprep.subr.bf16.mxu0 0
        %899 = vmatpush1.bf16.msra.mxu0 0
        %900 = vmatprep.subr.bf16.mxu0 0
        %901 = vmatpush1.bf16.msra.mxu0 0
        %902 = vmatprep.subr.bf16.mxu0 0
        %903 = vmatpush1.bf16.msra.mxu0 0
        %904 = vmatprep.subr.bf16.mxu0 0
        %905 = vmatpush1.bf16.msra.mxu0 0
        %906 = vmatprep.subr.bf16.mxu0 0
        %907 = vmatpush1.bf16.msra.mxu0 0
        %908 = vmatprep.subr.bf16.mxu0 0
        %909 = vmatpush1.bf16.msra.mxu0 0
        %910 = vmatprep.subr.bf16.mxu0 0
        %911 = vmatpush1.bf16.msra.mxu0 0
        %912 = vmatprep.subr.bf16.mxu0 0
        %913 = vmatpush1.bf16.msra.mxu0 0
        %914 = vmatprep.mubr.bf16.mxu0 0
        %915 = vmatmul.mubr.bf16.gmra.mrb[0].mxu0 %v867
        %v916 = vpop.f32.mrb[0].mxu0
        %v917 = vadd.f32 %v835, %v916
        %v918 = vpop.f32.mrb[0].mxu0
        %v919 = vadd.f32 %v835, %v918
        %v920 = vpop.f32.mrb[0].mxu0
        %v921 = vadd.f32 %v840, %v920
        %v922 = vpop.f32.mrb[0].mxu0
        %v923 = vadd.f32 %v840, %v922
        %924 = vdwg.mxu0
        %925 = vmatprep.subr.bf16.mxu0 %v880
        %926 = vmatpush1.bf16.msra.mxu0 %v877
        %927 = vmatprep.subr.bf16.mxu0 0
        %928 = vmatpush1.bf16.msra.mxu0 0
        %929 = vmatprep.subr.bf16.mxu0 0
        %930 = vmatpush1.bf16.msra.mxu0 0
        %931 = vmatprep.subr.bf16.mxu0 0
        %932 = vmatpush1.bf16.msra.mxu0 0
        %933 = vmatprep.subr.bf16.mxu0 0
        %934 = vmatpush1.bf16.msra.mxu0 0
        %935 = vmatprep.subr.bf16.mxu0 0
        %936 = vmatpush1.bf16.msra.mxu0 0
        %937 = vmatprep.subr.bf16.mxu0 0
        %938 = vmatpush1.bf16.msra.mxu0 0
        %939 = vmatprep.subr.bf16.mxu0 0
        %940 = vmatpush1.bf16.msra.mxu0 0
        %941 = vmatprep.subr.bf16.mxu0 0
        %942 = vmatpush1.bf16.msra.mxu0 0
        %943 = vmatprep.subr.bf16.mxu0 0
        %944 = vmatpush1.bf16.msra.mxu0 0
        %945 = vmatprep.subr.bf16.mxu0 0
        %946 = vmatpush1.bf16.msra.mxu0 0
        %947 = vmatprep.subr.bf16.mxu0 0
        %948 = vmatpush1.bf16.msra.mxu0 0
        %949 = vmatprep.subr.bf16.mxu0 0
        %950 = vmatpush1.bf16.msra.mxu0 0
        %951 = vmatprep.subr.bf16.mxu0 0
        %952 = vmatpush1.bf16.msra.mxu0 0
        %953 = vmatprep.subr.bf16.mxu0 0
        %954 = vmatpush1.bf16.msra.mxu0 0
        %955 = vmatprep.subr.bf16.mxu0 0
        %956 = vmatpush1.bf16.msra.mxu0 0
        %957 = vmatprep.mubr.bf16.mxu0 0
        %958 = vmatmul.mubr.bf16.gmra.mrb[0].mxu0 %v867
        %v959 = vpop.f32.mrb[0].mxu0
        %v960 = vadd.f32 %v835, %v959
        %v961 = vpop.f32.mrb[0].mxu0
        %v962 = vadd.f32 %v835, %v961
        %v963 = vpop.f32.mrb[0].mxu0
        %v964 = vadd.f32 %v840, %v963
        %v965 = vpop.f32.mrb[0].mxu0
        %v966 = vadd.f32 %v840, %v965
        %967 = vdwg.mxu0
        %968 = vrot.lane.b32.xlu0 %v827, 2
        %v969 = vpop.permute.xlu0 %968
        %v970 = vrot.slane %v969, 6
        %vm971 = vcmask 15360
        %v972 = vsel %vm971, %v970, %v969
        %vm975 = vcmask 1041424
        %vm976 = vcmask 1043458
        %vm977 = vmor %vm976, %vm975
        %vm978 = vcmask 1045508
        %vm979 = vmor %vm978, %vm977
        %vm980 = vcmask 1047558
        %vm981 = vmor %vm980, %vm979
        %982 = vst.msk [vmem:[#allocation2] sm:$0xff] %vm981, %v972
        %vm983 = vcmask 9216
        %984 = vst.msk [vmem:[#allocation2 + $0x8] sm:$0x3] %vm983, %v970
        %v985 = vld [vmem:[#allocation2] sm:$0xff]
        %v986 = vld [vmem:[%s1] sm:$0xf]
        %v987 = vld [vmem:[#allocation2 + $0x8] sm:$0x3]
        %v988 = vld [vmem:[%s2] sm:$0xf]
        %v991 = vcombine.high %v985, %v985
        %v993 = vunpack.c.l.s4 1983009808
        %v994 = vunpack.c.0.s8 %v993
        %v995 = vlaneseq
        %v996 = vshrl.u32 %v995, 7
        %v997 = vsub.s32 %v994, %v996
        %v998 = vrot.slane %v985, %v997
        %v1000 = vunpack.c.l.s4 1983009808
        %v1001 = vunpack.c.0.s8 %v1000
        %v1002 = vlaneseq
        %v1003 = vshrl.u32 %v1002, 7
        %v1004 = vsub.s32 %v1001, %v1003
        %v1005 = vrot.slane %v991, %v1004
        %v1006 = vcombine.high %v998, %v998
        %v1007 = vcombine.high %v1005, %v1005
        %v1009 = vunpack.c.l.s4 1983009808
        %v1010 = vunpack.c.0.s8 %v1009
        %v1011 = vlaneseq
        %v1012 = vshrl.u32 %v1011, 7
        %v1013 = vsub.s32 %v1010, %v1012
        %v1014 = vrot.slane %v987, %v1013
        %1015 = vrot.lane.b32.xlu0 %v998, 127
        %v1016 = vpop.permute.xlu0 %1015
        %1017 = vrot.lane.b32.xlu0 %v1006, 127
        %v1018 = vpop.permute.xlu0 %1017
        %1019 = vrot.lane.b32.xlu0 %v1005, 127
        %v1020 = vpop.permute.xlu0 %1019
        %1021 = vrot.lane.b32.xlu0 %v1007, 127
        %v1022 = vpop.permute.xlu0 %1021
        %1023 = vrot.lane.b32.xlu0 %v1014, 127
        %v1024 = vpop.permute.xlu0 %1023
        %vm1025 = vcmask 1039360
        %v1026 = vsel %vm1025, %v1016, %v1018
        %v1027 = vsel %vm1025, %v1018, %v1020
        %v1028 = vsel %vm1025, %v1020, %v1022
        %v1029 = vsel %vm1025, %v1022, %v1024
        %v1031 = vsel %vm865, %v988, 0
        %v1034 = vsel %vm869, %v1026, 0
        %v1037 = vsel %vm869, %v1027, 0
        %v1040 = vsel %vm869, %v1028, 0
        %v1043 = vsel %vm869, %v1029, 0
        %1045 = vmatprep.subr.bf16.mxu0 %v1037
        %1046 = vmatpush1.bf16.msra.mxu0 %v1034
        %1047 = vmatprep.subr.bf16.mxu0 0
        %1048 = vmatpush1.bf16.msra.mxu0 0
        %1049 = vmatprep.subr.bf16.mxu0 0
        %1050 = vmatpush1.bf16.msra.mxu0 0
        %1051 = vmatprep.subr.bf16.mxu0 0
        %1052 = vmatpush1.bf16.msra.mxu0 0
        %1053 = vmatprep.subr.bf16.mxu0 0
        %1054 = vmatpush1.bf16.msra.mxu0 0
        %1055 = vmatprep.subr.bf16.mxu0 0
        %1056 = vmatpush1.bf16.msra.mxu0 0
        %1057 = vmatprep.subr.bf16.mxu0 0
        %1058 = vmatpush1.bf16.msra.mxu0 0
        %1059 = vmatprep.subr.bf16.mxu0 0
        %1060 = vmatpush1.bf16.msra.mxu0 0
        %1061 = vmatprep.subr.bf16.mxu0 0
        %1062 = vmatpush1.bf16.msra.mxu0 0
        %1063 = vmatprep.subr.bf16.mxu0 0
        %1064 = vmatpush1.bf16.msra.mxu0 0
        %1065 = vmatprep.subr.bf16.mxu0 0
        %1066 = vmatpush1.bf16.msra.mxu0 0
        %1067 = vmatprep.subr.bf16.mxu0 0
        %1068 = vmatpush1.bf16.msra.mxu0 0
        %1069 = vmatprep.subr.bf16.mxu0 0
        %1070 = vmatpush1.bf16.msra.mxu0 0
        %1071 = vmatprep.subr.bf16.mxu0 0
        %1072 = vmatpush1.bf16.msra.mxu0 0
        %1073 = vmatprep.subr.bf16.mxu0 0
        %1074 = vmatpush1.bf16.msra.mxu0 0
        %1075 = vmatprep.subr.bf16.mxu0 0
        %1076 = vmatpush1.bf16.msra.mxu0 0
        %1077 = vmatprep.mubr.bf16.mxu0 0
        %1078 = vmatmul.mubr.bf16.gmra.mrb[0].mxu0 %v1031
        %v1079 = vpop.f32.mrb[0].mxu0
        %v1080 = vadd.f32 0.0, %v1079
        %v1081 = vpop.f32.mrb[0].mxu0
        %v1082 = vadd.f32 0.0, %v1081
        %v1083 = vpop.f32.mrb[0].mxu0
        %v1084 = vpop.f32.mrb[0].mxu0
        %1085 = vdwg.mxu0
        %1086 = vmatprep.subr.bf16.mxu0 %v1043
        %1087 = vmatpush1.bf16.msra.mxu0 %v1040
        %1088 = vmatprep.subr.bf16.mxu0 0
        %1089 = vmatpush1.bf16.msra.mxu0 0
        %1090 = vmatprep.subr.bf16.mxu0 0
        %1091 = vmatpush1.bf16.msra.mxu0 0
        %1092 = vmatprep.subr.bf16.mxu0 0
        %1093 = vmatpush1.bf16.msra.mxu0 0
        %1094 = vmatprep.subr.bf16.mxu0 0
        %1095 = vmatpush1.bf16.msra.mxu0 0
        %1096 = vmatprep.subr.bf16.mxu0 0
        %1097 = vmatpush1.bf16.msra.mxu0 0
        %1098 = vmatprep.subr.bf16.mxu0 0
        %1099 = vmatpush1.bf16.msra.mxu0 0
        %1100 = vmatprep.subr.bf16.mxu0 0
        %1101 = vmatpush1.bf16.msra.mxu0 0
        %1102 = vmatprep.subr.bf16.mxu0 0
        %1103 = vmatpush1.bf16.msra.mxu0 0
        %1104 = vmatprep.subr.bf16.mxu0 0
        %1105 = vmatpush1.bf16.msra.mxu0 0
        %1106 = vmatprep.subr.bf16.mxu0 0
        %1107 = vmatpush1.bf16.msra.mxu0 0
        %1108 = vmatprep.subr.bf16.mxu0 0
        %1109 = vmatpush1.bf16.msra.mxu0 0
        %1110 = vmatprep.subr.bf16.mxu0 0
        %1111 = vmatpush1.bf16.msra.mxu0 0
        %1112 = vmatprep.subr.bf16.mxu0 0
        %1113 = vmatpush1.bf16.msra.mxu0 0
        %1114 = vmatprep.subr.bf16.mxu0 0
        %1115 = vmatpush1.bf16.msra.mxu0 0
        %1116 = vmatprep.subr.bf16.mxu0 0
        %1117 = vmatpush1.bf16.msra.mxu0 0
        %1118 = vmatprep.mubr.bf16.mxu0 0
        %1119 = vmatmul.mubr.bf16.gmra.mrb[0].mxu0 %v1031
        %v1120 = vpop.f32.mrb[0].mxu0
        %v1121 = vadd.f32 0.0, %v1120
        %v1122 = vpop.f32.mrb[0].mxu0
        %v1123 = vadd.f32 0.0, %v1122
        %v1124 = vpop.f32.mrb[0].mxu0
        %v1125 = vpop.f32.mrb[0].mxu0
        %1126 = vdwg.mxu0
        %v1128 = vsel %vm865, %v986, 0
        %v1131 = vsel %vm869, %v998, 0
        %v1134 = vsel %vm869, %v1006, 0
        %v1137 = vsel %vm869, %v1005, 0
        %v1140 = vsel %vm869, %v1007, 0
        %1142 = vmatprep.subr.bf16.mxu0 %v1134
        %1143 = vmatpush1.bf16.msra.mxu0 %v1131
        %1144 = vmatprep.subr.bf16.mxu0 0
        %1145 = vmatpush1.bf16.msra.mxu0 0
        %1146 = vmatprep.subr.bf16.mxu0 0
        %1147 = vmatpush1.bf16.msra.mxu0 0
        %1148 = vmatprep.subr.bf16.mxu0 0
        %1149 = vmatpush1.bf16.msra.mxu0 0
        %1150 = vmatprep.subr.bf16.mxu0 0
        %1151 = vmatpush1.bf16.msra.mxu0 0
        %1152 = vmatprep.subr.bf16.mxu0 0
        %1153 = vmatpush1.bf16.msra.mxu0 0
        %1154 = vmatprep.subr.bf16.mxu0 0
        %1155 = vmatpush1.bf16.msra.mxu0 0
        %1156 = vmatprep.subr.bf16.mxu0 0
        %1157 = vmatpush1.bf16.msra.mxu0 0
        %1158 = vmatprep.subr.bf16.mxu0 0
        %1159 = vmatpush1.bf16.msra.mxu0 0
        %1160 = vmatprep.subr.bf16.mxu0 0
        %1161 = vmatpush1.bf16.msra.mxu0 0
        %1162 = vmatprep.subr.bf16.mxu0 0
        %1163 = vmatpush1.bf16.msra.mxu0 0
        %1164 = vmatprep.subr.bf16.mxu0 0
        %1165 = vmatpush1.bf16.msra.mxu0 0
        %1166 = vmatprep.subr.bf16.mxu0 0
        %1167 = vmatpush1.bf16.msra.mxu0 0
        %1168 = vmatprep.subr.bf16.mxu0 0
        %1169 = vmatpush1.bf16.msra.mxu0 0
        %1170 = vmatprep.subr.bf16.mxu0 0
        %1171 = vmatpush1.bf16.msra.mxu0 0
        %1172 = vmatprep.subr.bf16.mxu0 0
        %1173 = vmatpush1.bf16.msra.mxu0 0
        %1174 = vmatprep.mubr.bf16.mxu0 0
        %1175 = vmatmul.mubr.bf16.gmra.mrb[0].mxu0 %v1128
        %v1176 = vpop.f32.mrb[0].mxu0
        %v1177 = vadd.f32 %v1080, %v1176
        %v1178 = vpop.f32.mrb[0].mxu0
        %v1179 = vadd.f32 %v1082, %v1178
        %v1180 = vpop.f32.mrb[0].mxu0
        %v1181 = vpop.f32.mrb[0].mxu0
        %1182 = vdwg.mxu0
        %1183 = vmatprep.subr.bf16.mxu0 %v1140
        %1184 = vmatpush1.bf16.msra.mxu0 %v1137
        %1185 = vmatprep.subr.bf16.mxu0 0
        %1186 = vmatpush1.bf16.msra.mxu0 0
        %1187 = vmatprep.subr.bf16.mxu0 0
        %1188 = vmatpush1.bf16.msra.mxu0 0
        %1189 = vmatprep.subr.bf16.mxu0 0
        %1190 = vmatpush1.bf16.msra.mxu0 0
        %1191 = vmatprep.subr.bf16.mxu0 0
        %1192 = vmatpush1.bf16.msra.mxu0 0
        %1193 = vmatprep.subr.bf16.mxu0 0
        %1194 = vmatpush1.bf16.msra.mxu0 0
        %1195 = vmatprep.subr.bf16.mxu0 0
        %1196 = vmatpush1.bf16.msra.mxu0 0
        %1197 = vmatprep.subr.bf16.mxu0 0
        %1198 = vmatpush1.bf16.msra.mxu0 0
        %1199 = vmatprep.subr.bf16.mxu0 0
        %1200 = vmatpush1.bf16.msra.mxu0 0
        %1201 = vmatprep.subr.bf16.mxu0 0
        %1202 = vmatpush1.bf16.msra.mxu0 0
        %1203 = vmatprep.subr.bf16.mxu0 0
        %1204 = vmatpush1.bf16.msra.mxu0 0
        %1205 = vmatprep.subr.bf16.mxu0 0
        %1206 = vmatpush1.bf16.msra.mxu0 0
        %1207 = vmatprep.subr.bf16.mxu0 0
        %1208 = vmatpush1.bf16.msra.mxu0 0
        %1209 = vmatprep.subr.bf16.mxu0 0
        %1210 = vmatpush1.bf16.msra.mxu0 0
        %1211 = vmatprep.subr.bf16.mxu0 0
        %1212 = vmatpush1.bf16.msra.mxu0 0
        %1213 = vmatprep.subr.bf16.mxu0 0
        %1214 = vmatpush1.bf16.msra.mxu0 0
        %1215 = vmatprep.mubr.bf16.mxu0 0
        %1216 = vmatmul.mubr.bf16.gmra.mrb[0].mxu0 %v1128
        %v1217 = vpop.f32.mrb[0].mxu0
        %v1218 = vadd.f32 %v1121, %v1217
        %v1219 = vpop.f32.mrb[0].mxu0
        %v1220 = vadd.f32 %v1123, %v1219
        %v1221 = vpop.f32.mrb[0].mxu0
        %v1222 = vpop.f32.mrb[0].mxu0
        %1223 = vdwg.mxu0
        %1224 = vst.msk [vmem:[#allocation2] sm:$0x3] %vm983, %v970
        %v1225 = vadd.f32 %v917, %v1177
        %v1226 = vadd.f32 %v919, %v1179
        %v1227 = vadd.f32 %v960, %v1218
        %v1228 = vadd.f32 %v962, %v1220
        %v1229 = vmax.f32 %v1225, 0.0
        %v1230 = vmax.f32 %v1226, 0.0
        %v1231 = vmax.f32 %v1227, 0.0
        %v1232 = vmax.f32 %v1228, 0.0
        %v1233 = vpack.c.bf16 %v1229, %v1229
        %v1234 = vpack.c.bf16 %v1230, %v1230
        %v1235 = vpack.c.bf16 %v1231, %v1231
        %v1236 = vpack.c.bf16 %v1232, %v1232
        %v1237 = vld [vmem:[%s7] sm:$0xf]
        %v1238 = vld [vmem:[%s8] sm:$0xff]
        %1240 = vset.pattern.permute.xlu0 0
        %1241 = vperm.xlu0 %1240, %v1238
        %v1242 = vpop.permute.xlu0 %1241
        %vm1244 = vcmask 64512
        %v1246 = vsel %vm1244, %v1237, 0
        %vm1248 = vcmask 1043456
        %v1250 = vsel %vm1248, %v1233, 0
        %v1253 = vsel %vm1248, %v1234, 0
        %v1256 = vsel %vm1248, %v1235, 0
        %v1259 = vsel %vm1248, %v1236, 0
        %1261 = vmatprep.subr.bf16.mxu0 %v1253
        %1262 = vmatpush1.bf16.msra.mxu0 %v1250
        %1263 = vmatprep.subr.bf16.mxu0 0
        %1264 = vmatpush1.bf16.msra.mxu0 0
        %1265 = vmatprep.subr.bf16.mxu0 0
        %1266 = vmatpush1.bf16.msra.mxu0 0
        %1267 = vmatprep.subr.bf16.mxu0 0
        %1268 = vmatpush1.bf16.msra.mxu0 0
        %1269 = vmatprep.subr.bf16.mxu0 0
        %1270 = vmatpush1.bf16.msra.mxu0 0
        %1271 = vmatprep.subr.bf16.mxu0 0
        %1272 = vmatpush1.bf16.msra.mxu0 0
        %1273 = vmatprep.subr.bf16.mxu0 0
        %1274 = vmatpush1.bf16.msra.mxu0 0
        %1275 = vmatprep.subr.bf16.mxu0 0
        %1276 = vmatpush1.bf16.msra.mxu0 0
        %1277 = vmatprep.subr.bf16.mxu0 0
        %1278 = vmatpush1.bf16.msra.mxu0 0
        %1279 = vmatprep.subr.bf16.mxu0 0
        %1280 = vmatpush1.bf16.msra.mxu0 0
        %1281 = vmatprep.subr.bf16.mxu0 0
        %1282 = vmatpush1.bf16.msra.mxu0 0
        %1283 = vmatprep.subr.bf16.mxu0 0
        %1284 = vmatpush1.bf16.msra.mxu0 0
        %1285 = vmatprep.subr.bf16.mxu0 0
        %1286 = vmatpush1.bf16.msra.mxu0 0
        %1287 = vmatprep.subr.bf16.mxu0 0
        %1288 = vmatpush1.bf16.msra.mxu0 0
        %1289 = vmatprep.subr.bf16.mxu0 0
        %1290 = vmatpush1.bf16.msra.mxu0 0
        %1291 = vmatprep.subr.bf16.mxu0 0
        %1292 = vmatpush1.bf16.msra.mxu0 0
        %1293 = vmatprep.mubr.bf16.mxu0 0
        %1294 = vmatmul.mubr.bf16.gmra.mrb[0].mxu0 %v1246
        %v1295 = vpop.f32.mrb[0].mxu0
        %v1296 = vadd.f32 %v1242, %v1295
        %v1297 = vpop.f32.mrb[0].mxu0
        %v1298 = vadd.f32 %v1242, %v1297
        %v1299 = vpop.f32.mrb[0].mxu0
        %v1300 = vpop.f32.mrb[0].mxu0
        %1301 = vdwg.mxu0
        %1302 = vmatprep.subr.bf16.mxu0 %v1259
        %1303 = vmatpush1.bf16.msra.mxu0 %v1256
        %1304 = vmatprep.subr.bf16.mxu0 0
        %1305 = vmatpush1.bf16.msra.mxu0 0
        %1306 = vmatprep.subr.bf16.mxu0 0
        %1307 = vmatpush1.bf16.msra.mxu0 0
        %1308 = vmatprep.subr.bf16.mxu0 0
        %1309 = vmatpush1.bf16.msra.mxu0 0
        %1310 = vmatprep.subr.bf16.mxu0 0
        %1311 = vmatpush1.bf16.msra.mxu0 0
        %1312 = vmatprep.subr.bf16.mxu0 0
        %1313 = vmatpush1.bf16.msra.mxu0 0
        %1314 = vmatprep.subr.bf16.mxu0 0
        %1315 = vmatpush1.bf16.msra.mxu0 0
        %1316 = vmatprep.subr.bf16.mxu0 0
        %1317 = vmatpush1.bf16.msra.mxu0 0
        %1318 = vmatprep.subr.bf16.mxu0 0
        %1319 = vmatpush1.bf16.msra.mxu0 0
        %1320 = vmatprep.subr.bf16.mxu0 0
        %1321 = vmatpush1.bf16.msra.mxu0 0
        %1322 = vmatprep.subr.bf16.mxu0 0
        %1323 = vmatpush1.bf16.msra.mxu0 0
        %1324 = vmatprep.subr.bf16.mxu0 0
        %1325 = vmatpush1.bf16.msra.mxu0 0
        %1326 = vmatprep.subr.bf16.mxu0 0
        %1327 = vmatpush1.bf16.msra.mxu0 0
        %1328 = vmatprep.subr.bf16.mxu0 0
        %1329 = vmatpush1.bf16.msra.mxu0 0
        %1330 = vmatprep.subr.bf16.mxu0 0
        %1331 = vmatpush1.bf16.msra.mxu0 0
        %1332 = vmatprep.subr.bf16.mxu0 0
        %1333 = vmatpush1.bf16.msra.mxu0 0
        %1334 = vmatprep.mubr.bf16.mxu0 0
        %1335 = vmatmul.mubr.bf16.gmra.mrb[0].mxu0 %v1246
        %v1336 = vpop.f32.mrb[0].mxu0
        %v1337 = vadd.f32 %v1242, %v1336
        %v1338 = vpop.f32.mrb[0].mxu0
        %v1339 = vadd.f32 %v1242, %v1338
        %v1340 = vpop.f32.mrb[0].mxu0
        %v1341 = vpop.f32.mrb[0].mxu0
        %1342 = vdwg.mxu0
        %v1347 = vunpack.c.l.b16 %v1233
        %v1348 = vunpack.c.l.b16 %v1234
        %v1349 = vunpack.c.l.b16 %v1235
        %v1350 = vunpack.c.l.b16 %v1236
        %v1351 = vpack.c.b16 %v1348, %v1347
        %v1352 = vpack.c.b16 %v1350, %v1349
        %1353 = vrot.lane.b32.xlu0 %v1351, 2
        %v1354 = vpop.permute.xlu0 %1353
        %1355 = vrot.lane.b32.xlu0 %v1352, 2
        %v1356 = vpop.permute.xlu0 %1355
        %v1357 = vrot.slane %v1354, 4
        %v1358 = vrot.slane %v1356, 4
        %v1359 = vsel %vm971, %v1357, %v1354
        %vm1360 = vcmask 1043456
        %v1361 = vsel %vm1360, %v1357, %v1358
        %v1362 = vsel %vm971, %v1361, %v1356
        %vm1366 = vcmask 1043472
        %vm1367 = vcmask 1047556
        %vm1368 = vmor %vm1367, %vm1366
        %1369 = vst.msk [vmem:[#allocation3] sm:$0xff] %vm1368, %v1359
        %1370 = vst [vmem:[#allocation3 + $0x8] sm:$0xff] %v1362
        %vm1371 = vcmask 11264
        %1372 = vst.msk [vmem:[#allocation3 + $0x10] sm:$0xf] %vm1371, %v1358
        %v1373 = vld [vmem:[#allocation3] sm:$0xff]
        %v1374 = vld [vmem:[#allocation3 + $0x8] sm:$0xff]
        %v1375 = vld [vmem:[%s5] sm:$0xf]
        %v1376 = vld [vmem:[#allocation3 + $0x10] sm:$0xf]
        %v1377 = vld [vmem:[%s6] sm:$0xf]
        %v1381 = vunpack.c.l.b16 %v1373
        %v1382 = vunpack.c.h.b16 %v1373
        %v1383 = vunpack.c.l.b16 %v1374
        %v1384 = vunpack.c.h.b16 %v1374
        %v1385 = vunpack.c.l.b16 %v1376
        %v1386 = vpack.c.b16 %v1381, %v1381
        %v1387 = vpack.c.b16 %v1382, %v1382
        %v1388 = vpack.c.b16 %v1383, %v1383
        %v1389 = vpack.c.b16 %v1384, %v1384
        %v1390 = vpack.c.b16 %v1385, %v1385
        %1391 = vrot.lane.b32.xlu0 %v1386, 127
        %v1392 = vpop.permute.xlu0 %1391
        %1393 = vrot.lane.b32.xlu0 %v1387, 127
        %v1394 = vpop.permute.xlu0 %1393
        %1395 = vrot.lane.b32.xlu0 %v1388, 127
        %v1396 = vpop.permute.xlu0 %1395
        %1397 = vrot.lane.b32.xlu0 %v1389, 127
        %v1398 = vpop.permute.xlu0 %1397
        %1399 = vrot.lane.b32.xlu0 %v1390, 127
        %v1400 = vpop.permute.xlu0 %1399
        %v1401 = vsel %vm1025, %v1392, %v1394
        %v1402 = vsel %vm1025, %v1394, %v1396
        %v1403 = vsel %vm1025, %v1396, %v1398
        %v1404 = vsel %vm1025, %v1398, %v1400
        %v1406 = vsel %vm1244, %v1377, 0
        %v1409 = vsel %vm1248, %v1401, 0
        %v1412 = vsel %vm1248, %v1402, 0
        %v1415 = vsel %vm1248, %v1403, 0
        %v1418 = vsel %vm1248, %v1404, 0
        %1420 = vmatprep.subr.bf16.mxu0 %v1412
        %1421 = vmatpush1.bf16.msra.mxu0 %v1409
        %1422 = vmatprep.subr.bf16.mxu0 0
        %1423 = vmatpush1.bf16.msra.mxu0 0
        %1424 = vmatprep.subr.bf16.mxu0 0
        %1425 = vmatpush1.bf16.msra.mxu0 0
        %1426 = vmatprep.subr.bf16.mxu0 0
        %1427 = vmatpush1.bf16.msra.mxu0 0
        %1428 = vmatprep.subr.bf16.mxu0 0
        %1429 = vmatpush1.bf16.msra.mxu0 0
        %1430 = vmatprep.subr.bf16.mxu0 0
        %1431 = vmatpush1.bf16.msra.mxu0 0
        %1432 = vmatprep.subr.bf16.mxu0 0
        %1433 = vmatpush1.bf16.msra.mxu0 0
        %1434 = vmatprep.subr.bf16.mxu0 0
        %1435 = vmatpush1.bf16.msra.mxu0 0
        %1436 = vmatprep.subr.bf16.mxu0 0
        %1437 = vmatpush1.bf16.msra.mxu0 0
        %1438 = vmatprep.subr.bf16.mxu0 0
        %1439 = vmatpush1.bf16.msra.mxu0 0
        %1440 = vmatprep.subr.bf16.mxu0 0
        %1441 = vmatpush1.bf16.msra.mxu0 0
        %1442 = vmatprep.subr.bf16.mxu0 0
        %1443 = vmatpush1.bf16.msra.mxu0 0
        %1444 = vmatprep.subr.bf16.mxu0 0
        %1445 = vmatpush1.bf16.msra.mxu0 0
        %1446 = vmatprep.subr.bf16.mxu0 0
        %1447 = vmatpush1.bf16.msra.mxu0 0
        %1448 = vmatprep.subr.bf16.mxu0 0
        %1449 = vmatpush1.bf16.msra.mxu0 0
        %1450 = vmatprep.subr.bf16.mxu0 0
        %1451 = vmatpush1.bf16.msra.mxu0 0
        %1452 = vmatprep.mubr.bf16.mxu0 0
        %1453 = vmatmul.mubr.bf16.gmra.mrb[0].mxu0 %v1406
        %v1454 = vpop.f32.mrb[0].mxu0
        %v1455 = vadd.f32 0.0, %v1454
        %v1456 = vpop.f32.mrb[0].mxu0
        %v1457 = vadd.f32 0.0, %v1456
        %v1458 = vpop.f32.mrb[0].mxu0
        %v1459 = vpop.f32.mrb[0].mxu0
        %1460 = vdwg.mxu0
        %1461 = vmatprep.subr.bf16.mxu0 %v1418
        %1462 = vmatpush1.bf16.msra.mxu0 %v1415
        %1463 = vmatprep.subr.bf16.mxu0 0
        %1464 = vmatpush1.bf16.msra.mxu0 0
        %1465 = vmatprep.subr.bf16.mxu0 0
        %1466 = vmatpush1.bf16.msra.mxu0 0
        %1467 = vmatprep.subr.bf16.mxu0 0
        %1468 = vmatpush1.bf16.msra.mxu0 0
        %1469 = vmatprep.subr.bf16.mxu0 0
        %1470 = vmatpush1.bf16.msra.mxu0 0
        %1471 = vmatprep.subr.bf16.mxu0 0
        %1472 = vmatpush1.bf16.msra.mxu0 0
        %1473 = vmatprep.subr.bf16.mxu0 0
        %1474 = vmatpush1.bf16.msra.mxu0 0
        %1475 = vmatprep.subr.bf16.mxu0 0
        %1476 = vmatpush1.bf16.msra.mxu0 0
        %1477 = vmatprep.subr.bf16.mxu0 0
        %1478 = vmatpush1.bf16.msra.mxu0 0
        %1479 = vmatprep.subr.bf16.mxu0 0
        %1480 = vmatpush1.bf16.msra.mxu0 0
        %1481 = vmatprep.subr.bf16.mxu0 0
        %1482 = vmatpush1.bf16.msra.mxu0 0
        %1483 = vmatprep.subr.bf16.mxu0 0
        %1484 = vmatpush1.bf16.msra.mxu0 0
        %1485 = vmatprep.subr.bf16.mxu0 0
        %1486 = vmatpush1.bf16.msra.mxu0 0
        %1487 = vmatprep.subr.bf16.mxu0 0
        %1488 = vmatpush1.bf16.msra.mxu0 0
        %1489 = vmatprep.subr.bf16.mxu0 0
        %1490 = vmatpush1.bf16.msra.mxu0 0
        %1491 = vmatprep.subr.bf16.mxu0 0
        %1492 = vmatpush1.bf16.msra.mxu0 0
        %1493 = vmatprep.mubr.bf16.mxu0 0
        %1494 = vmatmul.mubr.bf16.gmra.mrb[0].mxu0 %v1406
        %v1495 = vpop.f32.mrb[0].mxu0
        %v1496 = vadd.f32 0.0, %v1495
        %v1497 = vpop.f32.mrb[0].mxu0
        %v1498 = vadd.f32 0.0, %v1497
        %v1499 = vpop.f32.mrb[0].mxu0
        %v1500 = vpop.f32.mrb[0].mxu0
        %1501 = vdwg.mxu0
        %v1503 = vsel %vm1244, %v1375, 0
        %v1506 = vsel %vm1248, %v1386, 0
        %v1509 = vsel %vm1248, %v1387, 0
        %v1512 = vsel %vm1248, %v1388, 0
        %v1515 = vsel %vm1248, %v1389, 0
        %1517 = vmatprep.subr.bf16.mxu0 %v1509
        %1518 = vmatpush1.bf16.msra.mxu0 %v1506
        %1519 = vmatprep.subr.bf16.mxu0 0
        %1520 = vmatpush1.bf16.msra.mxu0 0
        %1521 = vmatprep.subr.bf16.mxu0 0
        %1522 = vmatpush1.bf16.msra.mxu0 0
        %1523 = vmatprep.subr.bf16.mxu0 0
        %1524 = vmatpush1.bf16.msra.mxu0 0
        %1525 = vmatprep.subr.bf16.mxu0 0
        %1526 = vmatpush1.bf16.msra.mxu0 0
        %1527 = vmatprep.subr.bf16.mxu0 0
        %1528 = vmatpush1.bf16.msra.mxu0 0
        %1529 = vmatprep.subr.bf16.mxu0 0
        %1530 = vmatpush1.bf16.msra.mxu0 0
        %1531 = vmatprep.subr.bf16.mxu0 0
        %1532 = vmatpush1.bf16.msra.mxu0 0
        %1533 = vmatprep.subr.bf16.mxu0 0
        %1534 = vmatpush1.bf16.msra.mxu0 0
        %1535 = vmatprep.subr.bf16.mxu0 0
        %1536 = vmatpush1.bf16.msra.mxu0 0
        %1537 = vmatprep.subr.bf16.mxu0 0
        %1538 = vmatpush1.bf16.msra.mxu0 0
        %1539 = vmatprep.subr.bf16.mxu0 0
        %1540 = vmatpush1.bf16.msra.mxu0 0
        %1541 = vmatprep.subr.bf16.mxu0 0
        %1542 = vmatpush1.bf16.msra.mxu0 0
        %1543 = vmatprep.subr.bf16.mxu0 0
        %1544 = vmatpush1.bf16.msra.mxu0 0
        %1545 = vmatprep.subr.bf16.mxu0 0
        %1546 = vmatpush1.bf16.msra.mxu0 0
        %1547 = vmatprep.subr.bf16.mxu0 0
        %1548 = vmatpush1.bf16.msra.mxu0 0
        %1549 = vmatprep.mubr.bf16.mxu0 0
        %1550 = vmatmul.mubr.bf16.gmra.mrb[0].mxu0 %v1503
        %v1551 = vpop.f32.mrb[0].mxu0
        %v1552 = vadd.f32 %v1455, %v1551
        %v1553 = vpop.f32.mrb[0].mxu0
        %v1554 = vadd.f32 %v1457, %v1553
        %v1555 = vpop.f32.mrb[0].mxu0
        %v1556 = vpop.f32.mrb[0].mxu0
        %1557 = vdwg.mxu0
        %1558 = vmatprep.subr.bf16.mxu0 %v1515
        %1559 = vmatpush1.bf16.msra.mxu0 %v1512
        %1560 = vmatprep.subr.bf16.mxu0 0
        %1561 = vmatpush1.bf16.msra.mxu0 0
        %1562 = vmatprep.subr.bf16.mxu0 0
        %1563 = vmatpush1.bf16.msra.mxu0 0
        %1564 = vmatprep.subr.bf16.mxu0 0
        %1565 = vmatpush1.bf16.msra.mxu0 0
        %1566 = vmatprep.subr.bf16.mxu0 0
        %1567 = vmatpush1.bf16.msra.mxu0 0
        %1568 = vmatprep.subr.bf16.mxu0 0
        %1569 = vmatpush1.bf16.msra.mxu0 0
        %1570 = vmatprep.subr.bf16.mxu0 0
        %1571 = vmatpush1.bf16.msra.mxu0 0
        %1572 = vmatprep.subr.bf16.mxu0 0
        %1573 = vmatpush1.bf16.msra.mxu0 0
        %1574 = vmatprep.subr.bf16.mxu0 0
        %1575 = vmatpush1.bf16.msra.mxu0 0
        %1576 = vmatprep.subr.bf16.mxu0 0
        %1577 = vmatpush1.bf16.msra.mxu0 0
        %1578 = vmatprep.subr.bf16.mxu0 0
        %1579 = vmatpush1.bf16.msra.mxu0 0
        %1580 = vmatprep.subr.bf16.mxu0 0
        %1581 = vmatpush1.bf16.msra.mxu0 0
        %1582 = vmatprep.subr.bf16.mxu0 0
        %1583 = vmatpush1.bf16.msra.mxu0 0
        %1584 = vmatprep.subr.bf16.mxu0 0
        %1585 = vmatpush1.bf16.msra.mxu0 0
        %1586 = vmatprep.subr.bf16.mxu0 0
        %1587 = vmatpush1.bf16.msra.mxu0 0
        %1588 = vmatprep.subr.bf16.mxu0 0
        %1589 = vmatpush1.bf16.msra.mxu0 0
        %1590 = vmatprep.mubr.bf16.mxu0 0
        %1591 = vmatmul.mubr.bf16.gmra.mrb[0].mxu0 %v1503
        %v1592 = vpop.f32.mrb[0].mxu0
        %v1593 = vadd.f32 %v1496, %v1592
        %v1594 = vpop.f32.mrb[0].mxu0
        %v1595 = vadd.f32 %v1498, %v1594
        %v1596 = vpop.f32.mrb[0].mxu0
        %v1597 = vpop.f32.mrb[0].mxu0
        %1598 = vdwg.mxu0
        %v1599 = vpack.c.b16 %v1350, %v1350
        %1600 = vrot.lane.b32.xlu0 %v1599, 2
        %v1601 = vpop.permute.xlu0 %1600
        %1603 = vst.msk [vmem:[#allocation3] sm:$0xf] %vm1371, %v1601
        %v1604 = vadd.f32 %v1296, %v1552
        %v1605 = vadd.f32 %v1298, %v1554
        %v1606 = vadd.f32 %v1337, %v1593
        %v1607 = vadd.f32 %v1339, %v1595
        %v1608 = vmax.f32 %v1604, 0.0
        %v1609 = vmax.f32 %v1605, 0.0
        %v1610 = vmax.f32 %v1606, 0.0
        %v1611 = vmax.f32 %v1607, 0.0
        %v1612 = vadd.f32 %v1608, %v921
        %v1613 = vadd.f32 %v1609, %v923
        %v1614 = vadd.f32 %v1610, %v964
        %v1615 = vadd.f32 %v1611, %v966
        %v1616 = vmax.f32 %v1612, 0.0
        %v1617 = vmax.f32 %v1613, 0.0
        %v1618 = vmax.f32 %v1614, 0.0
        %v1619 = vmax.f32 %v1615, 0.0
        %v1620 = vpack.c.bf16 %v1616, %v1616
        %v1621 = vpack.c.bf16 %v1617, %v1617
        %v1622 = vpack.c.bf16 %v1618, %v1618
        %v1623 = vpack.c.bf16 %v1619, %v1619
        %v1624 = vld [vmem:[%s11] sm:$0xf]
        %v1625 = vld [vmem:[%s11 + $0x4] sm:$0xf]
        %v1626 = vld [vmem:[%s11 + $0x8] sm:$0xf]
        %v1627 = vld [vmem:[%s11 + $0xc] sm:$0xf]
        %v1628 = vld [vmem:[%s12] sm:$0xff]
        %v1629 = vld [vmem:[%s12 + $0x8] sm:$0xff]
        %v1630 = vld [vmem:[%s12 + $0x10] sm:$0xff]
        %v1631 = vld [vmem:[%s12 + $0x18] sm:$0xff]
        %1633 = vset.pattern.permute.xlu0 0
        %1634 = vperm.xlu0 %1633, %v1628
        %v1635 = vpop.permute.xlu0 %1634
        %1638 = vset.pattern.permute.xlu0 0
        %1639 = vperm.xlu0 %1638, %v1629
        %v1640 = vpop.permute.xlu0 %1639
        %1643 = vset.pattern.permute.xlu0 0
        %1644 = vperm.xlu0 %1643, %v1630
        %v1645 = vpop.permute.xlu0 %1644
        %1648 = vset.pattern.permute.xlu0 0
        %1649 = vperm.xlu0 %1648, %v1631
        %v1650 = vpop.permute.xlu0 %1649
        %v1656 = vunpack.c.l.b16 %v1624
        %v1657 = vunpack.c.l.b16 %v1625
        %v1658 = vunpack.c.l.b16 %v1626
        %v1659 = vunpack.c.l.b16 %v1627
        %v1660 = vpack.c.b16 %v1657, %v1656
        %v1661 = vpack.c.b16 %v1659, %v1658
        %v1663 = vsel %vm1244, %v1660, 0
        %v1666 = vsel %vm1244, %v1661, 0
        %v1669 = vsel %vm1248, %v1620, 0
        %v1672 = vsel %vm1248, %v1621, 0
        %v1675 = vsel %vm1248, %v1622, 0
        %v1678 = vsel %vm1248, %v1623, 0
        %1680 = vmatprep.subr.bf16.mxu0 %v1672
        %1681 = vmatpush1.bf16.msra.mxu0 %v1669
        %1682 = vmatprep.subr.bf16.mxu0 0
        %1683 = vmatpush1.bf16.msra.mxu0 0
        %1684 = vmatprep.subr.bf16.mxu0 0
        %1685 = vmatpush1.bf16.msra.mxu0 0
        %1686 = vmatprep.subr.bf16.mxu0 0
        %1687 = vmatpush1.bf16.msra.mxu0 0
        %1688 = vmatprep.subr.bf16.mxu0 0
        %1689 = vmatpush1.bf16.msra.mxu0 0
        %1690 = vmatprep.subr.bf16.mxu0 0
        %1691 = vmatpush1.bf16.msra.mxu0 0
        %1692 = vmatprep.subr.bf16.mxu0 0
        %1693 = vmatpush1.bf16.msra.mxu0 0
        %1694 = vmatprep.subr.bf16.mxu0 0
        %1695 = vmatpush1.bf16.msra.mxu0 0
        %1696 = vmatprep.subr.bf16.mxu0 0
        %1697 = vmatpush1.bf16.msra.mxu0 0
        %1698 = vmatprep.subr.bf16.mxu0 0
        %1699 = vmatpush1.bf16.msra.mxu0 0
        %1700 = vmatprep.subr.bf16.mxu0 0
        %1701 = vmatpush1.bf16.msra.mxu0 0
        %1702 = vmatprep.subr.bf16.mxu0 0
        %1703 = vmatpush1.bf16.msra.mxu0 0
        %1704 = vmatprep.subr.bf16.mxu0 0
        %1705 = vmatpush1.bf16.msra.mxu0 0
        %1706 = vmatprep.subr.bf16.mxu0 0
        %1707 = vmatpush1.bf16.msra.mxu0 0
        %1708 = vmatprep.subr.bf16.mxu0 0
        %1709 = vmatpush1.bf16.msra.mxu0 0
        %1710 = vmatprep.subr.bf16.mxu0 0
        %1711 = vmatpush1.bf16.msra.mxu0 0
        %1712 = vmatprep.mubr.bf16.mxu0 0
        %1713 = vmatmul.mubr.bf16.gmra.mrb[0].mxu0 %v1663
        %v1714 = vpop.f32.mrb[0].mxu0
        %v1715 = vadd.f32 %v1635, %v1714
        %v1716 = vpop.f32.mrb[0].mxu0
        %v1717 = vadd.f32 %v1635, %v1716
        %v1718 = vpop.f32.mrb[0].mxu0
        %v1719 = vadd.f32 %v1640, %v1718
        %v1720 = vpop.f32.mrb[0].mxu0
        %v1721 = vadd.f32 %v1640, %v1720
        %1722 = vmatprep.mubr.bf16.mxu0 0
        %1723 = vmatmul.mubr.bf16.gmra.mrb[0].mxu0 %v1666
        %v1724 = vpop.f32.mrb[0].mxu0
        %v1725 = vadd.f32 %v1645, %v1724
        %v1726 = vpop.f32.mrb[0].mxu0
        %v1727 = vadd.f32 %v1645, %v1726
        %v1728 = vpop.f32.mrb[0].mxu0
        %v1729 = vadd.f32 %v1650, %v1728
        %v1730 = vpop.f32.mrb[0].mxu0
        %v1731 = vadd.f32 %v1650, %v1730
        %1732 = vdwg.mxu0
        %1733 = vmatprep.subr.bf16.mxu0 %v1678
        %1734 = vmatpush1.bf16.msra.mxu0 %v1675
        %1735 = vmatprep.subr.bf16.mxu0 0
        %1736 = vmatpush1.bf16.msra.mxu0 0
        %1737 = vmatprep.subr.bf16.mxu0 0
        %1738 = vmatpush1.bf16.msra.mxu0 0
        %1739 = vmatprep.subr.bf16.mxu0 0
        %1740 = vmatpush1.bf16.msra.mxu0 0
        %1741 = vmatprep.subr.bf16.mxu0 0
        %1742 = vmatpush1.bf16.msra.mxu0 0
        %1743 = vmatprep.subr.bf16.mxu0 0
        %1744 = vmatpush1.bf16.msra.mxu0 0
        %1745 = vmatprep.subr.bf16.mxu0 0
        %1746 = vmatpush1.bf16.msra.mxu0 0
        %1747 = vmatprep.subr.bf16.mxu0 0
        %1748 = vmatpush1.bf16.msra.mxu0 0
        %1749 = vmatprep.subr.bf16.mxu0 0
        %1750 = vmatpush1.bf16.msra.mxu0 0
        %1751 = vmatprep.subr.bf16.mxu0 0
        %1752 = vmatpush1.bf16.msra.mxu0 0
        %1753 = vmatprep.subr.bf16.mxu0 0
        %1754 = vmatpush1.bf16.msra.mxu0 0
        %1755 = vmatprep.subr.bf16.mxu0 0
        %1756 = vmatpush1.bf16.msra.mxu0 0
        %1757 = vmatprep.subr.bf16.mxu0 0
        %1758 = vmatpush1.bf16.msra.mxu0 0
        %1759 = vmatprep.subr.bf16.mxu0 0
        %1760 = vmatpush1.bf16.msra.mxu0 0
        %1761 = vmatprep.subr.bf16.mxu0 0
        %1762 = vmatpush1.bf16.msra.mxu0 0
        %1763 = vmatprep.subr.bf16.mxu0 0
        %1764 = vmatpush1.bf16.msra.mxu0 0
        %1765 = vmatprep.mubr.bf16.mxu0 0
        %1766 = vmatmul.mubr.bf16.gmra.mrb[0].mxu0 %v1663
        %v1767 = vpop.f32.mrb[0].mxu0
        %v1768 = vadd.f32 %v1635, %v1767
        %v1769 = vpop.f32.mrb[0].mxu0
        %v1770 = vadd.f32 %v1635, %v1769
        %v1771 = vpop.f32.mrb[0].mxu0
        %v1772 = vadd.f32 %v1640, %v1771
        %v1773 = vpop.f32.mrb[0].mxu0
        %v1774 = vadd.f32 %v1640, %v1773
        %1775 = vmatprep.mubr.bf16.mxu0 0
        %1776 = vmatmul.mubr.bf16.gmra.mrb[0].mxu0 %v1666
        %v1777 = vpop.f32.mrb[0].mxu0
        %v1778 = vadd.f32 %v1645, %v1777
        %v1779 = vpop.f32.mrb[0].mxu0
        %v1780 = vadd.f32 %v1645, %v1779
        %v1781 = vpop.f32.mrb[0].mxu0
        %v1782 = vadd.f32 %v1650, %v1781
        %v1783 = vpop.f32.mrb[0].mxu0
        %v1784 = vadd.f32 %v1650, %v1783
        %1785 = vdwg.mxu0
        %v1790 = vunpack.c.l.b16 %v1620
        %v1791 = vunpack.c.l.b16 %v1621
        %v1792 = vunpack.c.l.b16 %v1622
        %v1793 = vunpack.c.l.b16 %v1623
        %v1794 = vpack.c.b16 %v1791, %v1790
        %v1795 = vpack.c.b16 %v1793, %v1792
        %1796 = vrot.lane.b32.xlu0 %v1794, 4
        %v1797 = vpop.permute.xlu0 %1796
        %1798 = vrot.lane.b32.xlu0 %v1795, 4
        %v1799 = vpop.permute.xlu0 %1798
        %v1800 = vrot.slane %v1797, 4
        %v1801 = vrot.slane %v1799, 4
        %vm1802 = vcmask 31744
        %v1803 = vsel %vm1802, %v1800, %v1797
        %v1804 = vsel %vm1360, %v1800, %v1801
        %v1805 = vsel %vm1802, %v1804, %v1799
        %vm1809 = vcmask 1043488
        %vm1810 = vmor %vm1367, %vm1809
        %1811 = vst.msk [vmem:[#allocation4] sm:$0xff] %vm1810, %v1803
        %1812 = vst [vmem:[#allocation4 + $0x8] sm:$0xff] %v1805
        %vm1813 = vcmask 27648
        %1814 = vst.msk [vmem:[#allocation4 + $0x10] sm:$0xf] %vm1813, %v1801
        %v1815 = vld [vmem:[#allocation4] sm:$0xff]
        %v1816 = vld [vmem:[#allocation4 + $0x8] sm:$0xff]
        %v1817 = vld [vmem:[%s9] sm:$0xf]
        %v1818 = vld [vmem:[%s9 + $0x4] sm:$0xf]
        %v1819 = vld [vmem:[#allocation4 + $0x10] sm:$0xf]
        %v1820 = vld [vmem:[%s10] sm:$0xf]
        %v1821 = vld [vmem:[%s10 + $0x4] sm:$0xf]
        %v1824 = vunpack.c.l.b16 %v1820
        %v1825 = vunpack.c.l.b16 %v1821
        %v1826 = vpack.c.b16 %v1825, %v1824
        %v1830 = vunpack.c.l.b16 %v1815
        %v1831 = vunpack.c.h.b16 %v1815
        %v1832 = vunpack.c.l.b16 %v1816
        %v1833 = vunpack.c.h.b16 %v1816
        %v1834 = vunpack.c.l.b16 %v1819
        %v1835 = vpack.c.b16 %v1830, %v1830
        %v1836 = vpack.c.b16 %v1831, %v1831
        %v1837 = vpack.c.b16 %v1832, %v1832
        %v1838 = vpack.c.b16 %v1833, %v1833
        %v1839 = vpack.c.b16 %v1834, %v1834
        %1840 = vrot.lane.b32.xlu0 %v1835, 126
        %v1841 = vpop.permute.xlu0 %1840
        %1842 = vrot.lane.b32.xlu0 %v1836, 126
        %v1843 = vpop.permute.xlu0 %1842
        %1844 = vrot.lane.b32.xlu0 %v1837, 126
        %v1845 = vpop.permute.xlu0 %1844
        %1846 = vrot.lane.b32.xlu0 %v1838, 126
        %v1847 = vpop.permute.xlu0 %1846
        %1848 = vrot.lane.b32.xlu0 %v1839, 126
        %v1849 = vpop.permute.xlu0 %1848
        %vm1850 = vcmask 1031168
        %v1851 = vsel %vm1850, %v1841, %v1843
        %v1852 = vsel %vm1850, %v1843, %v1845
        %v1853 = vsel %vm1850, %v1845, %v1847
        %v1854 = vsel %vm1850, %v1847, %v1849
        %v1856 = vsel %vm1244, %v1826, 0
        %v1859 = vsel %vm1248, %v1851, 0
        %v1862 = vsel %vm1248, %v1852, 0
        %v1865 = vsel %vm1248, %v1853, 0
        %v1868 = vsel %vm1248, %v1854, 0
        %1870 = vmatprep.subr.bf16.mxu0 %v1862
        %1871 = vmatpush1.bf16.msra.mxu0 %v1859
        %1872 = vmatprep.subr.bf16.mxu0 0
        %1873 = vmatpush1.bf16.msra.mxu0 0
        %1874 = vmatprep.subr.bf16.mxu0 0
        %1875 = vmatpush1.bf16.msra.mxu0 0
        %1876 = vmatprep.subr.bf16.mxu0 0
        %1877 = vmatpush1.bf16.msra.mxu0 0
        %1878 = vmatprep.subr.bf16.mxu0 0
        %1879 = vmatpush1.bf16.msra.mxu0 0
        %1880 = vmatprep.subr.bf16.mxu0 0
        %1881 = vmatpush1.bf16.msra.mxu0 0
        %1882 = vmatprep.subr.bf16.mxu0 0
        %1883 = vmatpush1.bf16.msra.mxu0 0
        %1884 = vmatprep.subr.bf16.mxu0 0
        %1885 = vmatpush1.bf16.msra.mxu0 0
        %1886 = vmatprep.subr.bf16.mxu0 0
        %1887 = vmatpush1.bf16.msra.mxu0 0
        %1888 = vmatprep.subr.bf16.mxu0 0
        %1889 = vmatpush1.bf16.msra.mxu0 0
        %1890 = vmatprep.subr.bf16.mxu0 0
        %1891 = vmatpush1.bf16.msra.mxu0 0
        %1892 = vmatprep.subr.bf16.mxu0 0
        %1893 = vmatpush1.bf16.msra.mxu0 0
        %1894 = vmatprep.subr.bf16.mxu0 0
        %1895 = vmatpush1.bf16.msra.mxu0 0
        %1896 = vmatprep.subr.bf16.mxu0 0
        %1897 = vmatpush1.bf16.msra.mxu0 0
        %1898 = vmatprep.subr.bf16.mxu0 0
        %1899 = vmatpush1.bf16.msra.mxu0 0
        %1900 = vmatprep.subr.bf16.mxu0 0
        %1901 = vmatpush1.bf16.msra.mxu0 0
        %1902 = vmatprep.mubr.bf16.mxu0 0
        %1903 = vmatmul.mubr.bf16.gmra.mrb[0].mxu0 %v1856
        %v1904 = vpop.f32.mrb[0].mxu0
        %v1905 = vadd.f32 0.0, %v1904
        %v1906 = vpop.f32.mrb[0].mxu0
        %v1907 = vadd.f32 0.0, %v1906
        %v1908 = vpop.f32.mrb[0].mxu0
        %v1909 = vadd.f32 0.0, %v1908
        %v1910 = vpop.f32.mrb[0].mxu0
        %v1911 = vadd.f32 0.0, %v1910
        %1912 = vdwg.mxu0
        %1913 = vmatprep.subr.bf16.mxu0 %v1868
        %1914 = vmatpush1.bf16.msra.mxu0 %v1865
        %1915 = vmatprep.subr.bf16.mxu0 0
        %1916 = vmatpush1.bf16.msra.mxu0 0
        %1917 = vmatprep.subr.bf16.mxu0 0
        %1918 = vmatpush1.bf16.msra.mxu0 0
        %1919 = vmatprep.subr.bf16.mxu0 0
        %1920 = vmatpush1.bf16.msra.mxu0 0
        %1921 = vmatprep.subr.bf16.mxu0 0
        %1922 = vmatpush1.bf16.msra.mxu0 0
        %1923 = vmatprep.subr.bf16.mxu0 0
        %1924 = vmatpush1.bf16.msra.mxu0 0
        %1925 = vmatprep.subr.bf16.mxu0 0
        %1926 = vmatpush1.bf16.msra.mxu0 0
        %1927 = vmatprep.subr.bf16.mxu0 0
        %1928 = vmatpush1.bf16.msra.mxu0 0
        %1929 = vmatprep.subr.bf16.mxu0 0
        %1930 = vmatpush1.bf16.msra.mxu0 0
        %1931 = vmatprep.subr.bf16.mxu0 0
        %1932 = vmatpush1.bf16.msra.mxu0 0
        %1933 = vmatprep.subr.bf16.mxu0 0
        %1934 = vmatpush1.bf16.msra.mxu0 0
        %1935 = vmatprep.subr.bf16.mxu0 0
        %1936 = vmatpush1.bf16.msra.mxu0 0
        %1937 = vmatprep.subr.bf16.mxu0 0
        %1938 = vmatpush1.bf16.msra.mxu0 0
        %1939 = vmatprep.subr.bf16.mxu0 0
        %1940 = vmatpush1.bf16.msra.mxu0 0
        %1941 = vmatprep.subr.bf16.mxu0 0
        %1942 = vmatpush1.bf16.msra.mxu0 0
        %1943 = vmatprep.subr.bf16.mxu0 0
        %1944 = vmatpush1.bf16.msra.mxu0 0
        %1945 = vmatprep.mubr.bf16.mxu0 0
        %1946 = vmatmul.mubr.bf16.gmra.mrb[0].mxu0 %v1856
        %v1947 = vpop.f32.mrb[0].mxu0
        %v1948 = vadd.f32 0.0, %v1947
        %v1949 = vpop.f32.mrb[0].mxu0
        %v1950 = vadd.f32 0.0, %v1949
        %v1951 = vpop.f32.mrb[0].mxu0
        %v1952 = vadd.f32 0.0, %v1951
        %v1953 = vpop.f32.mrb[0].mxu0
        %v1954 = vadd.f32 0.0, %v1953
        %1955 = vdwg.mxu0
        %v1958 = vunpack.c.l.b16 %v1817
        %v1959 = vunpack.c.l.b16 %v1818
        %v1960 = vpack.c.b16 %v1959, %v1958
        %v1962 = vsel %vm1244, %v1960, 0
        %v1965 = vsel %vm1248, %v1835, 0
        %v1968 = vsel %vm1248, %v1836, 0
        %v1971 = vsel %vm1248, %v1837, 0
        %v1974 = vsel %vm1248, %v1838, 0
        %1976 = vmatprep.subr.bf16.mxu0 %v1968
        %1977 = vmatpush1.bf16.msra.mxu0 %v1965
        %1978 = vmatprep.subr.bf16.mxu0 0
        %1979 = vmatpush1.bf16.msra.mxu0 0
        %1980 = vmatprep.subr.bf16.mxu0 0
        %1981 = vmatpush1.bf16.msra.mxu0 0
        %1982 = vmatprep.subr.bf16.mxu0 0
        %1983 = vmatpush1.bf16.msra.mxu0 0
        %1984 = vmatprep.subr.bf16.mxu0 0
        %1985 = vmatpush1.bf16.msra.mxu0 0
        %1986 = vmatprep.subr.bf16.mxu0 0
        %1987 = vmatpush1.bf16.msra.mxu0 0
        %1988 = vmatprep.subr.bf16.mxu0 0
        %1989 = vmatpush1.bf16.msra.mxu0 0
        %1990 = vmatprep.subr.bf16.mxu0 0
        %1991 = vmatpush1.bf16.msra.mxu0 0
        %1992 = vmatprep.subr.bf16.mxu0 0
        %1993 = vmatpush1.bf16.msra.mxu0 0
        %1994 = vmatprep.subr.bf16.mxu0 0
        %1995 = vmatpush1.bf16.msra.mxu0 0
        %1996 = vmatprep.subr.bf16.mxu0 0
        %1997 = vmatpush1.bf16.msra.mxu0 0
        %1998 = vmatprep.subr.bf16.mxu0 0
        %1999 = vmatpush1.bf16.msra.mxu0 0
        %2000 = vmatprep.subr.bf16.mxu0 0
        %2001 = vmatpush1.bf16.msra.mxu0 0
        %2002 = vmatprep.subr.bf16.mxu0 0
        %2003 = vmatpush1.bf16.msra.mxu0 0
        %2004 = vmatprep.subr.bf16.mxu0 0
        %2005 = vmatpush1.bf16.msra.mxu0 0
        %2006 = vmatprep.subr.bf16.mxu0 0
        %2007 = vmatpush1.bf16.msra.mxu0 0
        %2008 = vmatprep.mubr.bf16.mxu0 0
        %2009 = vmatmul.mubr.bf16.gmra.mrb[0].mxu0 %v1962
        %v2010 = vpop.f32.mrb[0].mxu0
        %v2011 = vadd.f32 %v1905, %v2010
        %v2012 = vpop.f32.mrb[0].mxu0
        %v2013 = vadd.f32 %v1907, %v2012
        %v2014 = vpop.f32.mrb[0].mxu0
        %v2015 = vadd.f32 %v1909, %v2014
        %v2016 = vpop.f32.mrb[0].mxu0
        %v2017 = vadd.f32 %v1911, %v2016
        %2018 = vdwg.mxu0
        %2019 = vmatprep.subr.bf16.mxu0 %v1974
        %2020 = vmatpush1.bf16.msra.mxu0 %v1971
        %2021 = vmatprep.subr.bf16.mxu0 0
        %2022 = vmatpush1.bf16.msra.mxu0 0
        %2023 = vmatprep.subr.bf16.mxu0 0
        %2024 = vmatpush1.bf16.msra.mxu0 0
        %2025 = vmatprep.subr.bf16.mxu0 0
        %2026 = vmatpush1.bf16.msra.mxu0 0
        %2027 = vmatprep.subr.bf16.mxu0 0
        %2028 = vmatpush1.bf16.msra.mxu0 0
        %2029 = vmatprep.subr.bf16.mxu0 0
        %2030 = vmatpush1.bf16.msra.mxu0 0
        %2031 = vmatprep.subr.bf16.mxu0 0
        %2032 = vmatpush1.bf16.msra.mxu0 0
        %2033 = vmatprep.subr.bf16.mxu0 0
        %2034 = vmatpush1.bf16.msra.mxu0 0
        %2035 = vmatprep.subr.bf16.mxu0 0
        %2036 = vmatpush1.bf16.msra.mxu0 0
        %2037 = vmatprep.subr.bf16.mxu0 0
        %2038 = vmatpush1.bf16.msra.mxu0 0
        %2039 = vmatprep.subr.bf16.mxu0 0
        %2040 = vmatpush1.bf16.msra.mxu0 0
        %2041 = vmatprep.subr.bf16.mxu0 0
        %2042 = vmatpush1.bf16.msra.mxu0 0
        %2043 = vmatprep.subr.bf16.mxu0 0
        %2044 = vmatpush1.bf16.msra.mxu0 0
        %2045 = vmatprep.subr.bf16.mxu0 0
        %2046 = vmatpush1.bf16.msra.mxu0 0
        %2047 = vmatprep.subr.bf16.mxu0 0
        %2048 = vmatpush1.bf16.msra.mxu0 0
        %2049 = vmatprep.subr.bf16.mxu0 0
        %2050 = vmatpush1.bf16.msra.mxu0 0
        %2051 = vmatprep.mubr.bf16.mxu0 0
        %2052 = vmatmul.mubr.bf16.gmra.mrb[0].mxu0 %v1962
        %v2053 = vpop.f32.mrb[0].mxu0
        %v2054 = vadd.f32 %v1948, %v2053
        %v2055 = vpop.f32.mrb[0].mxu0
        %v2056 = vadd.f32 %v1950, %v2055
        %v2057 = vpop.f32.mrb[0].mxu0
        %v2058 = vadd.f32 %v1952, %v2057
        %v2059 = vpop.f32.mrb[0].mxu0
        %v2060 = vadd.f32 %v1954, %v2059
        %2061 = vdwg.mxu0
        %v2062 = vpack.c.b16 %v1793, %v1793
        %2063 = vrot.lane.b32.xlu0 %v2062, 4
        %v2064 = vpop.permute.xlu0 %2063
        %2066 = vst.msk [vmem:[#allocation4] sm:$0xf] %vm1813, %v2064
        %v2067 = vadd.f32 %v1715, %v2011
        %v2068 = vadd.f32 %v1717, %v2013
        %v2069 = vadd.f32 %v1768, %v2054
        %v2070 = vadd.f32 %v1770, %v2056
        %v2071 = vadd.f32 %v1719, %v2015
        %v2072 = vadd.f32 %v1721, %v2017
        %v2073 = vadd.f32 %v1772, %v2058
        %v2074 = vadd.f32 %v1774, %v2060
        %v2075 = vmax.f32 %v2067, 0.0
        %v2076 = vmax.f32 %v2068, 0.0
        %v2077 = vmax.f32 %v2069, 0.0
        %v2078 = vmax.f32 %v2070, 0.0
        %v2079 = vmax.f32 %v2071, 0.0
        %v2080 = vmax.f32 %v2072, 0.0
        %v2081 = vmax.f32 %v2073, 0.0
        %v2082 = vmax.f32 %v2074, 0.0
        %v2083 = vpack.c.bf16 %v2079, %v2075
        %v2084 = vpack.c.bf16 %v2080, %v2076
        %v2085 = vpack.c.bf16 %v2081, %v2077
        %v2086 = vpack.c.bf16 %v2082, %v2078
        %v2087 = vld [vmem:[%s15] sm:$0xf]
        %v2088 = vld [vmem:[%s15 + $0x4] sm:$0xf]
        %v2089 = vld [vmem:[%s16] sm:$0xff]
        %v2090 = vld [vmem:[%s16 + $0x8] sm:$0xff]
        %2092 = vset.pattern.permute.xlu0 0
        %2093 = vperm.xlu0 %2092, %v2089
        %v2094 = vpop.permute.xlu0 %2093
        %2097 = vset.pattern.permute.xlu0 0
        %2098 = vperm.xlu0 %2097, %v2090
        %v2099 = vpop.permute.xlu0 %2098
        %v2103 = vunpack.c.l.b16 %v2087
        %v2104 = vunpack.c.l.b16 %v2088
        %v2105 = vpack.c.b16 %v2104, %v2103
        %vm2106 = vcmask 130048
        %v2108 = vsel %vm2106, %v2105, 0
        %2110 = vmatprep.subr.bf16.mxu0 %v2084
        %2111 = vmatpush1.bf16.msra.mxu0 %v2083
        %2112 = vmatprep.subr.bf16.mxu0 0
        %2113 = vmatpush1.bf16.msra.mxu0 0
        %2114 = vmatprep.subr.bf16.mxu0 0
        %2115 = vmatpush1.bf16.msra.mxu0 0
        %2116 = vmatprep.subr.bf16.mxu0 0
        %2117 = vmatpush1.bf16.msra.mxu0 0
        %2118 = vmatprep.subr.bf16.mxu0 0
        %2119 = vmatpush1.bf16.msra.mxu0 0
        %2120 = vmatprep.subr.bf16.mxu0 0
        %2121 = vmatpush1.bf16.msra.mxu0 0
        %2122 = vmatprep.subr.bf16.mxu0 0
        %2123 = vmatpush1.bf16.msra.mxu0 0
        %2124 = vmatprep.subr.bf16.mxu0 0
        %2125 = vmatpush1.bf16.msra.mxu0 0
        %2126 = vmatprep.subr.bf16.mxu0 0
        %2127 = vmatpush1.bf16.msra.mxu0 0
        %2128 = vmatprep.subr.bf16.mxu0 0
        %2129 = vmatpush1.bf16.msra.mxu0 0
        %2130 = vmatprep.subr.bf16.mxu0 0
        %2131 = vmatpush1.bf16.msra.mxu0 0
        %2132 = vmatprep.subr.bf16.mxu0 0
        %2133 = vmatpush1.bf16.msra.mxu0 0
        %2134 = vmatprep.subr.bf16.mxu0 0
        %2135 = vmatpush1.bf16.msra.mxu0 0
        %2136 = vmatprep.subr.bf16.mxu0 0
        %2137 = vmatpush1.bf16.msra.mxu0 0
        %2138 = vmatprep.subr.bf16.mxu0 0
        %2139 = vmatpush1.bf16.msra.mxu0 0
        %2140 = vmatprep.subr.bf16.mxu0 0
        %2141 = vmatpush1.bf16.msra.mxu0 0
        %2142 = vmatprep.mubr.bf16.mxu0 0
        %2143 = vmatmul.mubr.bf16.gmra.mrb[0].mxu0 %v2108
        %v2144 = vpop.f32.mrb[0].mxu0
        %v2145 = vadd.f32 %v2094, %v2144
        %v2146 = vpop.f32.mrb[0].mxu0
        %v2147 = vadd.f32 %v2094, %v2146
        %v2148 = vpop.f32.mrb[0].mxu0
        %v2149 = vadd.f32 %v2099, %v2148
        %v2150 = vpop.f32.mrb[0].mxu0
        %v2151 = vadd.f32 %v2099, %v2150
        %2152 = vdwg.mxu0
        %2153 = vmatprep.subr.bf16.mxu0 %v2086
        %2154 = vmatpush1.bf16.msra.mxu0 %v2085
        %2155 = vmatprep.subr.bf16.mxu0 0
        %2156 = vmatpush1.bf16.msra.mxu0 0
        %2157 = vmatprep.subr.bf16.mxu0 0
        %2158 = vmatpush1.bf16.msra.mxu0 0
        %2159 = vmatprep.subr.bf16.mxu0 0
        %2160 = vmatpush1.bf16.msra.mxu0 0
        %2161 = vmatprep.subr.bf16.mxu0 0
        %2162 = vmatpush1.bf16.msra.mxu0 0
        %2163 = vmatprep.subr.bf16.mxu0 0
        %2164 = vmatpush1.bf16.msra.mxu0 0
        %2165 = vmatprep.subr.bf16.mxu0 0
        %2166 = vmatpush1.bf16.msra.mxu0 0
        %2167 = vmatprep.subr.bf16.mxu0 0
        %2168 = vmatpush1.bf16.msra.mxu0 0
        %2169 = vmatprep.subr.bf16.mxu0 0
        %2170 = vmatpush1.bf16.msra.mxu0 0
        %2171 = vmatprep.subr.bf16.mxu0 0
        %2172 = vmatpush1.bf16.msra.mxu0 0
        %2173 = vmatprep.subr.bf16.mxu0 0
        %2174 = vmatpush1.bf16.msra.mxu0 0
        %2175 = vmatprep.subr.bf16.mxu0 0
        %2176 = vmatpush1.bf16.msra.mxu0 0
        %2177 = vmatprep.subr.bf16.mxu0 0
        %2178 = vmatpush1.bf16.msra.mxu0 0
        %2179 = vmatprep.subr.bf16.mxu0 0
        %2180 = vmatpush1.bf16.msra.mxu0 0
        %2181 = vmatprep.subr.bf16.mxu0 0
        %2182 = vmatpush1.bf16.msra.mxu0 0
        %2183 = vmatprep.subr.bf16.mxu0 0
        %2184 = vmatpush1.bf16.msra.mxu0 0
        %2185 = vmatprep.mubr.bf16.mxu0 0
        %2186 = vmatmul.mubr.bf16.gmra.mrb[0].mxu0 %v2108
        %v2187 = vpop.f32.mrb[0].mxu0
        %v2188 = vadd.f32 %v2094, %v2187
        %v2189 = vpop.f32.mrb[0].mxu0
        %v2190 = vadd.f32 %v2094, %v2189
        %v2191 = vpop.f32.mrb[0].mxu0
        %v2192 = vadd.f32 %v2099, %v2191
        %v2193 = vpop.f32.mrb[0].mxu0
        %v2194 = vadd.f32 %v2099, %v2193
        %2195 = vdwg.mxu0
        %2200 = vrot.lane.b32.xlu0 %v2083, 4
        %v2201 = vpop.permute.xlu0 %2200
        %2202 = vrot.lane.b32.xlu0 %v2084, 4
        %v2203 = vpop.permute.xlu0 %2202
        %2204 = vrot.lane.b32.xlu0 %v2085, 4
        %v2205 = vpop.permute.xlu0 %2204
        %2206 = vrot.lane.b32.xlu0 %v2086, 4
        %v2207 = vpop.permute.xlu0 %2206
        %v2208 = vsel %vm1802, %v2201, %v2203
        %v2209 = vsel %vm1802, %v2203, %v2205
        %v2210 = vsel %vm1802, %v2205, %v2207
        %vm2216 = vcmask 1047584
        %2217 = vst.msk [vmem:[#allocation5] sm:$0xff] %vm2216, %v2201
        %2218 = vst [vmem:[#allocation5 + $0x8] sm:$0xff] %v2208
        %2219 = vst [vmem:[#allocation5 + $0x10] sm:$0xff] %v2209
        %2220 = vst [vmem:[#allocation5 + $0x18] sm:$0xff] %v2210
        %2221 = vst.msk [vmem:[#allocation5 + $0x20] sm:$0xff] %vm865, %v2207
        %v2222 = vld [vmem:[#allocation5] sm:$0xff]
        %v2223 = vld [vmem:[#allocation5 + $0x8] sm:$0xff]
        %v2224 = vld [vmem:[#allocation5 + $0x10] sm:$0xff]
        %v2225 = vld [vmem:[#allocation5 + $0x18] sm:$0xff]
        %v2226 = vld [vmem:[%s13] sm:$0xf]
        %v2227 = vld [vmem:[%s13 + $0x4] sm:$0xf]
        %v2228 = vld [vmem:[#allocation5 + $0x20] sm:$0xff]
        %v2229 = vld [vmem:[%s14] sm:$0xf]
        %v2230 = vld [vmem:[%s14 + $0x4] sm:$0xf]
        %v2233 = vunpack.c.l.b16 %v2229
        %v2234 = vunpack.c.l.b16 %v2230
        %v2235 = vpack.c.b16 %v2234, %v2233
        %2241 = vrot.lane.b32.xlu0 %v2222, 126
        %v2242 = vpop.permute.xlu0 %2241
        %2243 = vrot.lane.b32.xlu0 %v2223, 126
        %v2244 = vpop.permute.xlu0 %2243
        %2245 = vrot.lane.b32.xlu0 %v2224, 126
        %v2246 = vpop.permute.xlu0 %2245
        %2247 = vrot.lane.b32.xlu0 %v2225, 126
        %v2248 = vpop.permute.xlu0 %2247
        %2249 = vrot.lane.b32.xlu0 %v2228, 126
        %v2250 = vpop.permute.xlu0 %2249
        %v2251 = vsel %vm1850, %v2242, %v2244
        %v2252 = vsel %vm1850, %v2244, %v2246
        %v2253 = vsel %vm1850, %v2246, %v2248
        %v2254 = vsel %vm1850, %v2248, %v2250
        %v2260 = vsel %vm2106, %v2235, 0
        %2262 = vmatprep.subr.bf16.mxu0 %v2252
        %2263 = vmatpush1.bf16.msra.mxu0 %v2251
        %2264 = vmatprep.subr.bf16.mxu0 0
        %2265 = vmatpush1.bf16.msra.mxu0 0
        %2266 = vmatprep.subr.bf16.mxu0 0
        %2267 = vmatpush1.bf16.msra.mxu0 0
        %2268 = vmatprep.subr.bf16.mxu0 0
        %2269 = vmatpush1.bf16.msra.mxu0 0
        %2270 = vmatprep.subr.bf16.mxu0 0
        %2271 = vmatpush1.bf16.msra.mxu0 0
        %2272 = vmatprep.subr.bf16.mxu0 0
        %2273 = vmatpush1.bf16.msra.mxu0 0
        %2274 = vmatprep.subr.bf16.mxu0 0
        %2275 = vmatpush1.bf16.msra.mxu0 0
        %2276 = vmatprep.subr.bf16.mxu0 0
        %2277 = vmatpush1.bf16.msra.mxu0 0
        %2278 = vmatprep.subr.bf16.mxu0 0
        %2279 = vmatpush1.bf16.msra.mxu0 0
        %2280 = vmatprep.subr.bf16.mxu0 0
        %2281 = vmatpush1.bf16.msra.mxu0 0
        %2282 = vmatprep.subr.bf16.mxu0 0
        %2283 = vmatpush1.bf16.msra.mxu0 0
        %2284 = vmatprep.subr.bf16.mxu0 0
        %2285 = vmatpush1.bf16.msra.mxu0 0
        %2286 = vmatprep.subr.bf16.mxu0 0
        %2287 = vmatpush1.bf16.msra.mxu0 0
        %2288 = vmatprep.subr.bf16.mxu0 0
        %2289 = vmatpush1.bf16.msra.mxu0 0
        %2290 = vmatprep.subr.bf16.mxu0 0
        %2291 = vmatpush1.bf16.msra.mxu0 0
        %2292 = vmatprep.subr.bf16.mxu0 0
        %2293 = vmatpush1.bf16.msra.mxu0 0
        %2294 = vmatprep.mubr.bf16.mxu0 0
        %2295 = vmatmul.mubr.bf16.gmra.mrb[0].mxu0 %v2260
        %v2296 = vpop.f32.mrb[0].mxu0
        %v2297 = vadd.f32 0.0, %v2296
        %v2298 = vpop.f32.mrb[0].mxu0
        %v2299 = vadd.f32 0.0, %v2298
        %v2300 = vpop.f32.mrb[0].mxu0
        %v2301 = vadd.f32 0.0, %v2300
        %v2302 = vpop.f32.mrb[0].mxu0
        %v2303 = vadd.f32 0.0, %v2302
        %2304 = vdwg.mxu0
        %2305 = vmatprep.subr.bf16.mxu0 %v2254
        %2306 = vmatpush1.bf16.msra.mxu0 %v2253
        %2307 = vmatprep.subr.bf16.mxu0 0
        %2308 = vmatpush1.bf16.msra.mxu0 0
        %2309 = vmatprep.subr.bf16.mxu0 0
        %2310 = vmatpush1.bf16.msra.mxu0 0
        %2311 = vmatprep.subr.bf16.mxu0 0
        %2312 = vmatpush1.bf16.msra.mxu0 0
        %2313 = vmatprep.subr.bf16.mxu0 0
        %2314 = vmatpush1.bf16.msra.mxu0 0
        %2315 = vmatprep.subr.bf16.mxu0 0
        %2316 = vmatpush1.bf16.msra.mxu0 0
        %2317 = vmatprep.subr.bf16.mxu0 0
        %2318 = vmatpush1.bf16.msra.mxu0 0
        %2319 = vmatprep.subr.bf16.mxu0 0
        %2320 = vmatpush1.bf16.msra.mxu0 0
        %2321 = vmatprep.subr.bf16.mxu0 0
        %2322 = vmatpush1.bf16.msra.mxu0 0
        %2323 = vmatprep.subr.bf16.mxu0 0
        %2324 = vmatpush1.bf16.msra.mxu0 0
        %2325 = vmatprep.subr.bf16.mxu0 0
        %2326 = vmatpush1.bf16.msra.mxu0 0
        %2327 = vmatprep.subr.bf16.mxu0 0
        %2328 = vmatpush1.bf16.msra.mxu0 0
        %2329 = vmatprep.subr.bf16.mxu0 0
        %2330 = vmatpush1.bf16.msra.mxu0 0
        %2331 = vmatprep.subr.bf16.mxu0 0
        %2332 = vmatpush1.bf16.msra.mxu0 0
        %2333 = vmatprep.subr.bf16.mxu0 0
        %2334 = vmatpush1.bf16.msra.mxu0 0
        %2335 = vmatprep.subr.bf16.mxu0 0
        %2336 = vmatpush1.bf16.msra.mxu0 0
        %2337 = vmatprep.mubr.bf16.mxu0 0
        %2338 = vmatmul.mubr.bf16.gmra.mrb[0].mxu0 %v2260
        %v2339 = vpop.f32.mrb[0].mxu0
        %v2340 = vadd.f32 0.0, %v2339
        %v2341 = vpop.f32.mrb[0].mxu0
        %v2342 = vadd.f32 0.0, %v2341
        %v2343 = vpop.f32.mrb[0].mxu0
        %v2344 = vadd.f32 0.0, %v2343
        %v2345 = vpop.f32.mrb[0].mxu0
        %v2346 = vadd.f32 0.0, %v2345
        %2347 = vdwg.mxu0
        %v2350 = vunpack.c.l.b16 %v2226
        %v2351 = vunpack.c.l.b16 %v2227
        %v2352 = vpack.c.b16 %v2351, %v2350
        %v2354 = vsel %vm2106, %v2352, 0
        %2356 = vmatprep.subr.bf16.mxu0 %v2223
        %2357 = vmatpush1.bf16.msra.mxu0 %v2222
        %2358 = vmatprep.subr.bf16.mxu0 0
        %2359 = vmatpush1.bf16.msra.mxu0 0
        %2360 = vmatprep.subr.bf16.mxu0 0
        %2361 = vmatpush1.bf16.msra.mxu0 0
        %2362 = vmatprep.subr.bf16.mxu0 0
        %2363 = vmatpush1.bf16.msra.mxu0 0
        %2364 = vmatprep.subr.bf16.mxu0 0
        %2365 = vmatpush1.bf16.msra.mxu0 0
        %2366 = vmatprep.subr.bf16.mxu0 0
        %2367 = vmatpush1.bf16.msra.mxu0 0
        %2368 = vmatprep.subr.bf16.mxu0 0
        %2369 = vmatpush1.bf16.msra.mxu0 0
        %2370 = vmatprep.subr.bf16.mxu0 0
        %2371 = vmatpush1.bf16.msra.mxu0 0
        %2372 = vmatprep.subr.bf16.mxu0 0
        %2373 = vmatpush1.bf16.msra.mxu0 0
        %2374 = vmatprep.subr.bf16.mxu0 0
        %2375 = vmatpush1.bf16.msra.mxu0 0
        %2376 = vmatprep.subr.bf16.mxu0 0
        %2377 = vmatpush1.bf16.msra.mxu0 0
        %2378 = vmatprep.subr.bf16.mxu0 0
        %2379 = vmatpush1.bf16.msra.mxu0 0
        %2380 = vmatprep.subr.bf16.mxu0 0
        %2381 = vmatpush1.bf16.msra.mxu0 0
        %2382 = vmatprep.subr.bf16.mxu0 0
        %2383 = vmatpush1.bf16.msra.mxu0 0
        %2384 = vmatprep.subr.bf16.mxu0 0
        %2385 = vmatpush1.bf16.msra.mxu0 0
        %2386 = vmatprep.subr.bf16.mxu0 0
        %2387 = vmatpush1.bf16.msra.mxu0 0
        %2388 = vmatprep.mubr.bf16.mxu0 0
        %2389 = vmatmul.mubr.bf16.gmra.mrb[0].mxu0 %v2354
        %v2390 = vpop.f32.mrb[0].mxu0
        %v2391 = vadd.f32 %v2297, %v2390
        %v2392 = vpop.f32.mrb[0].mxu0
        %v2393 = vadd.f32 %v2299, %v2392
        %v2394 = vpop.f32.mrb[0].mxu0
        %v2395 = vadd.f32 %v2301, %v2394
        %v2396 = vpop.f32.mrb[0].mxu0
        %v2397 = vadd.f32 %v2303, %v2396
        %2398 = vdwg.mxu0
        %2399 = vmatprep.subr.bf16.mxu0 %v2225
        %2400 = vmatpush1.bf16.msra.mxu0 %v2224
        %2401 = vmatprep.subr.bf16.mxu0 0
        %2402 = vmatpush1.bf16.msra.mxu0 0
        %2403 = vmatprep.subr.bf16.mxu0 0
        %2404 = vmatpush1.bf16.msra.mxu0 0
        %2405 = vmatprep.subr.bf16.mxu0 0
        %2406 = vmatpush1.bf16.msra.mxu0 0
        %2407 = vmatprep.subr.bf16.mxu0 0
        %2408 = vmatpush1.bf16.msra.mxu0 0
        %2409 = vmatprep.subr.bf16.mxu0 0
        %2410 = vmatpush1.bf16.msra.mxu0 0
        %2411 = vmatprep.subr.bf16.mxu0 0
        %2412 = vmatpush1.bf16.msra.mxu0 0
        %2413 = vmatprep.subr.bf16.mxu0 0
        %2414 = vmatpush1.bf16.msra.mxu0 0
        %2415 = vmatprep.subr.bf16.mxu0 0
        %2416 = vmatpush1.bf16.msra.mxu0 0
        %2417 = vmatprep.subr.bf16.mxu0 0
        %2418 = vmatpush1.bf16.msra.mxu0 0
        %2419 = vmatprep.subr.bf16.mxu0 0
        %2420 = vmatpush1.bf16.msra.mxu0 0
        %2421 = vmatprep.subr.bf16.mxu0 0
        %2422 = vmatpush1.bf16.msra.mxu0 0
        %2423 = vmatprep.subr.bf16.mxu0 0
        %2424 = vmatpush1.bf16.msra.mxu0 0
        %2425 = vmatprep.subr.bf16.mxu0 0
        %2426 = vmatpush1.bf16.msra.mxu0 0
        %2427 = vmatprep.subr.bf16.mxu0 0
        %2428 = vmatpush1.bf16.msra.mxu0 0
        %2429 = vmatprep.subr.bf16.mxu0 0
        %2430 = vmatpush1.bf16.msra.mxu0 0
        %2431 = vmatprep.mubr.bf16.mxu0 0
        %2432 = vmatmul.mubr.bf16.gmra.mrb[0].mxu0 %v2354
        %v2433 = vpop.f32.mrb[0].mxu0
        %v2434 = vadd.f32 %v2340, %v2433
        %v2435 = vpop.f32.mrb[0].mxu0
        %v2436 = vadd.f32 %v2342, %v2435
        %v2437 = vpop.f32.mrb[0].mxu0
        %v2438 = vadd.f32 %v2344, %v2437
        %v2439 = vpop.f32.mrb[0].mxu0
        %v2440 = vadd.f32 %v2346, %v2439
        %2441 = vdwg.mxu0
        %2442 = vst.msk [vmem:[#allocation5] sm:$0xff] %vm865, %v2207
        %v2443 = vadd.f32 %v2145, %v2391
        %v2444 = vadd.f32 %v2147, %v2393
        %v2445 = vadd.f32 %v2188, %v2434
        %v2446 = vadd.f32 %v2190, %v2436
        %v2447 = vadd.f32 %v2149, %v2395
        %v2448 = vadd.f32 %v2151, %v2397
        %v2449 = vadd.f32 %v2192, %v2438
        %v2450 = vadd.f32 %v2194, %v2440
        %v2451 = vmax.f32 %v2443, 0.0
        %v2452 = vmax.f32 %v2444, 0.0
        %v2453 = vmax.f32 %v2445, 0.0
        %v2454 = vmax.f32 %v2446, 0.0
        %v2455 = vmax.f32 %v2447, 0.0
        %v2456 = vmax.f32 %v2448, 0.0
        %v2457 = vmax.f32 %v2449, 0.0
        %v2458 = vmax.f32 %v2450, 0.0
        %v2459 = vadd.f32 %v2451, %v1725
        %v2460 = vadd.f32 %v2452, %v1727
        %v2461 = vadd.f32 %v2453, %v1778
        %v2462 = vadd.f32 %v2454, %v1780
        %v2463 = vadd.f32 %v2455, %v1729
        %v2464 = vadd.f32 %v2456, %v1731
        %v2465 = vadd.f32 %v2457, %v1782
        %v2466 = vadd.f32 %v2458, %v1784
        %v2467 = vmax.f32 %v2459, 0.0
        %v2468 = vmax.f32 %v2460, 0.0
        %v2469 = vmax.f32 %v2461, 0.0
        %v2470 = vmax.f32 %v2462, 0.0
        %v2471 = vmax.f32 %v2463, 0.0
        %v2472 = vmax.f32 %v2464, 0.0
        %v2473 = vmax.f32 %v2465, 0.0
        %v2474 = vmax.f32 %v2466, 0.0
        %v2475 = vpack.c.bf16 %v2471, %v2467
        %v2476 = vpack.c.bf16 %v2472, %v2468
        %v2477 = vpack.c.bf16 %v2473, %v2469
        %v2478 = vpack.c.bf16 %v2474, %v2470
        %v2479 = vld [vmem:[%s19] sm:$0xf]
        %v2480 = vld [vmem:[%s19 + $0x4] sm:$0xf]
        %v2481 = vld [vmem:[%s20] sm:$0xff]
        %v2482 = vld [vmem:[%s20 + $0x8] sm:$0xff]
        %2484 = vset.pattern.permute.xlu0 0
        %2485 = vperm.xlu0 %2484, %v2481
        %v2486 = vpop.permute.xlu0 %2485
        %2489 = vset.pattern.permute.xlu0 0
        %2490 = vperm.xlu0 %2489, %v2482
        %v2491 = vpop.permute.xlu0 %2490
        %v2495 = vunpack.c.l.b16 %v2479
        %v2496 = vunpack.c.l.b16 %v2480
        %v2497 = vpack.c.b16 %v2496, %v2495
        %v2499 = vsel %vm2106, %v2497, 0
        %2501 = vmatprep.subr.bf16.mxu0 %v2476
        %2502 = vmatpush1.bf16.msra.mxu0 %v2475
        %2503 = vmatprep.subr.bf16.mxu0 0
        %2504 = vmatpush1.bf16.msra.mxu0 0
        %2505 = vmatprep.subr.bf16.mxu0 0
        %2506 = vmatpush1.bf16.msra.mxu0 0
        %2507 = vmatprep.subr.bf16.mxu0 0
        %2508 = vmatpush1.bf16.msra.mxu0 0
        %2509 = vmatprep.subr.bf16.mxu0 0
        %2510 = vmatpush1.bf16.msra.mxu0 0
        %2511 = vmatprep.subr.bf16.mxu0 0
        %2512 = vmatpush1.bf16.msra.mxu0 0
        %2513 = vmatprep.subr.bf16.mxu0 0
        %2514 = vmatpush1.bf16.msra.mxu0 0
        %2515 = vmatprep.subr.bf16.mxu0 0
        %2516 = vmatpush1.bf16.msra.mxu0 0
        %2517 = vmatprep.subr.bf16.mxu0 0
        %2518 = vmatpush1.bf16.msra.mxu0 0
        %2519 = vmatprep.subr.bf16.mxu0 0
        %2520 = vmatpush1.bf16.msra.mxu0 0
        %2521 = vmatprep.subr.bf16.mxu0 0
        %2522 = vmatpush1.bf16.msra.mxu0 0
        %2523 = vmatprep.subr.bf16.mxu0 0
        %2524 = vmatpush1.bf16.msra.mxu0 0
        %2525 = vmatprep.subr.bf16.mxu0 0
        %2526 = vmatpush1.bf16.msra.mxu0 0
        %2527 = vmatprep.subr.bf16.mxu0 0
        %2528 = vmatpush1.bf16.msra.mxu0 0
        %2529 = vmatprep.subr.bf16.mxu0 0
        %2530 = vmatpush1.bf16.msra.mxu0 0
        %2531 = vmatprep.subr.bf16.mxu0 0
        %2532 = vmatpush1.bf16.msra.mxu0 0
        %2533 = vmatprep.mubr.bf16.mxu0 0
        %2534 = vmatmul.mubr.bf16.gmra.mrb[0].mxu0 %v2499
        %v2535 = vpop.f32.mrb[0].mxu0
        %v2536 = vadd.f32 %v2486, %v2535
        %v2537 = vpop.f32.mrb[0].mxu0
        %v2538 = vadd.f32 %v2486, %v2537
        %v2539 = vpop.f32.mrb[0].mxu0
        %v2540 = vadd.f32 %v2491, %v2539
        %v2541 = vpop.f32.mrb[0].mxu0
        %v2542 = vadd.f32 %v2491, %v2541
        %2543 = vdwg.mxu0
        %2544 = vmatprep.subr.bf16.mxu0 %v2478
        %2545 = vmatpush1.bf16.msra.mxu0 %v2477
        %2546 = vmatprep.subr.bf16.mxu0 0
        %2547 = vmatpush1.bf16.msra.mxu0 0
        %2548 = vmatprep.subr.bf16.mxu0 0
        %2549 = vmatpush1.bf16.msra.mxu0 0
        %2550 = vmatprep.subr.bf16.mxu0 0
        %2551 = vmatpush1.bf16.msra.mxu0 0
        %2552 = vmatprep.subr.bf16.mxu0 0
        %2553 = vmatpush1.bf16.msra.mxu0 0
        %2554 = vmatprep.subr.bf16.mxu0 0
        %2555 = vmatpush1.bf16.msra.mxu0 0
        %2556 = vmatprep.subr.bf16.mxu0 0
        %2557 = vmatpush1.bf16.msra.mxu0 0
        %2558 = vmatprep.subr.bf16.mxu0 0
        %2559 = vmatpush1.bf16.msra.mxu0 0
        %2560 = vmatprep.subr.bf16.mxu0 0
        %2561 = vmatpush1.bf16.msra.mxu0 0
        %2562 = vmatprep.subr.bf16.mxu0 0
        %2563 = vmatpush1.bf16.msra.mxu0 0
        %2564 = vmatprep.subr.bf16.mxu0 0
        %2565 = vmatpush1.bf16.msra.mxu0 0
        %2566 = vmatprep.subr.bf16.mxu0 0
        %2567 = vmatpush1.bf16.msra.mxu0 0
        %2568 = vmatprep.subr.bf16.mxu0 0
        %2569 = vmatpush1.bf16.msra.mxu0 0
        %2570 = vmatprep.subr.bf16.mxu0 0
        %2571 = vmatpush1.bf16.msra.mxu0 0
        %2572 = vmatprep.subr.bf16.mxu0 0
        %2573 = vmatpush1.bf16.msra.mxu0 0
        %2574 = vmatprep.subr.bf16.mxu0 0
        %2575 = vmatpush1.bf16.msra.mxu0 0
        %2576 = vmatprep.mubr.bf16.mxu0 0
        %2577 = vmatmul.mubr.bf16.gmra.mrb[0].mxu0 %v2499
        %v2578 = vpop.f32.mrb[0].mxu0
        %v2579 = vadd.f32 %v2486, %v2578
        %v2580 = vpop.f32.mrb[0].mxu0
        %v2581 = vadd.f32 %v2486, %v2580
        %v2582 = vpop.f32.mrb[0].mxu0
        %v2583 = vadd.f32 %v2491, %v2582
        %v2584 = vpop.f32.mrb[0].mxu0
        %v2585 = vadd.f32 %v2491, %v2584
        %2586 = vdwg.mxu0
        %2591 = vrot.lane.b32.xlu0 %v2475, 8
        %v2592 = vpop.permute.xlu0 %2591
        %2593 = vrot.lane.b32.xlu0 %v2476, 8
        %v2594 = vpop.permute.xlu0 %2593
        %2595 = vrot.lane.b32.xlu0 %v2477, 8
        %v2596 = vpop.permute.xlu0 %2595
        %2597 = vrot.lane.b32.xlu0 %v2478, 8
        %v2598 = vpop.permute.xlu0 %2597
        %vm2599 = vcmask 64512
        %v2600 = vsel %vm2599, %v2592, %v2594
        %v2601 = vsel %vm2599, %v2594, %v2596
        %v2602 = vsel %vm2599, %v2596, %v2598
        %vm2608 = vcmask 1047616
        %2609 = vst.msk [vmem:[#allocation6] sm:$0xff] %vm2608, %v2592
        %2610 = vst [vmem:[#allocation6 + $0x8] sm:$0xff] %v2600
        %2611 = vst [vmem:[#allocation6 + $0x10] sm:$0xff] %v2601
        %2612 = vst [vmem:[#allocation6 + $0x18] sm:$0xff] %v2602
        %2613 = vst.msk [vmem:[#allocation6 + $0x20] sm:$0xff] %vm1244, %v2598
        %v2614 = vld [vmem:[#allocation6] sm:$0xff]
        %v2615 = vld [vmem:[#allocation6 + $0x8] sm:$0xff]
        %v2616 = vld [vmem:[#allocation6 + $0x10] sm:$0xff]
        %v2617 = vld [vmem:[#allocation6 + $0x18] sm:$0xff]
        %v2618 = vld [vmem:[%s17] sm:$0xf]
        %v2619 = vld [vmem:[%s17 + $0x4] sm:$0xf]
        %v2620 = vld [vmem:[#allocation6 + $0x20] sm:$0xff]
        %v2621 = vld [vmem:[%s18] sm:$0xf]
        %v2622 = vld [vmem:[%s18 + $0x4] sm:$0xf]
        %v2625 = vunpack.c.l.b16 %v2621
        %v2626 = vunpack.c.l.b16 %v2622
        %v2627 = vpack.c.b16 %v2626, %v2625
        %2633 = vrot.lane.b32.xlu0 %v2614, 124
        %v2634 = vpop.permute.xlu0 %2633
        %2635 = vrot.lane.b32.xlu0 %v2615, 124
        %v2636 = vpop.permute.xlu0 %2635
        %2637 = vrot.lane.b32.xlu0 %v2616, 124
        %v2638 = vpop.permute.xlu0 %2637
        %2639 = vrot.lane.b32.xlu0 %v2617, 124
        %v2640 = vpop.permute.xlu0 %2639
        %2641 = vrot.lane.b32.xlu0 %v2620, 124
        %v2642 = vpop.permute.xlu0 %2641
        %vm2643 = vcmask 1014784
        %v2644 = vsel %vm2643, %v2634, %v2636
        %v2645 = vsel %vm2643, %v2636, %v2638
        %v2646 = vsel %vm2643, %v2638, %v2640
        %v2647 = vsel %vm2643, %v2640, %v2642
        %v2653 = vsel %vm2106, %v2627, 0
        %2655 = vmatprep.subr.bf16.mxu0 %v2645
        %2656 = vmatpush1.bf16.msra.mxu0 %v2644
        %2657 = vmatprep.subr.bf16.mxu0 0
        %2658 = vmatpush1.bf16.msra.mxu0 0
        %2659 = vmatprep.subr.bf16.mxu0 0
        %2660 = vmatpush1.bf16.msra.mxu0 0
        %2661 = vmatprep.subr.bf16.mxu0 0
        %2662 = vmatpush1.bf16.msra.mxu0 0
        %2663 = vmatprep.subr.bf16.mxu0 0
        %2664 = vmatpush1.bf16.msra.mxu0 0
        %2665 = vmatprep.subr.bf16.mxu0 0
        %2666 = vmatpush1.bf16.msra.mxu0 0
        %2667 = vmatprep.subr.bf16.mxu0 0
        %2668 = vmatpush1.bf16.msra.mxu0 0
        %2669 = vmatprep.subr.bf16.mxu0 0
        %2670 = vmatpush1.bf16.msra.mxu0 0
        %2671 = vmatprep.subr.bf16.mxu0 0
        %2672 = vmatpush1.bf16.msra.mxu0 0
        %2673 = vmatprep.subr.bf16.mxu0 0
        %2674 = vmatpush1.bf16.msra.mxu0 0
        %2675 = vmatprep.subr.bf16.mxu0 0
        %2676 = vmatpush1.bf16.msra.mxu0 0
        %2677 = vmatprep.subr.bf16.mxu0 0
        %2678 = vmatpush1.bf16.msra.mxu0 0
        %2679 = vmatprep.subr.bf16.mxu0 0
        %2680 = vmatpush1.bf16.msra.mxu0 0
        %2681 = vmatprep.subr.bf16.mxu0 0
        %2682 = vmatpush1.bf16.msra.mxu0 0
        %2683 = vmatprep.subr.bf16.mxu0 0
        %2684 = vmatpush1.bf16.msra.mxu0 0
        %2685 = vmatprep.subr.bf16.mxu0 0
        %2686 = vmatpush1.bf16.msra.mxu0 0
        %2687 = vmatprep.mubr.bf16.mxu0 0
        %2688 = vmatmul.mubr.bf16.gmra.mrb[0].mxu0 %v2653
        %v2689 = vpop.f32.mrb[0].mxu0
        %v2690 = vadd.f32 0.0, %v2689
        %v2691 = vpop.f32.mrb[0].mxu0
        %v2692 = vadd.f32 0.0, %v2691
        %v2693 = vpop.f32.mrb[0].mxu0
        %v2694 = vadd.f32 0.0, %v2693
        %v2695 = vpop.f32.mrb[0].mxu0
        %v2696 = vadd.f32 0.0, %v2695
        %2697 = vdwg.mxu0
        %2698 = vmatprep.subr.bf16.mxu0 %v2647
        %2699 = vmatpush1.bf16.msra.mxu0 %v2646
        %2700 = vmatprep.subr.bf16.mxu0 0
        %2701 = vmatpush1.bf16.msra.mxu0 0
        %2702 = vmatprep.subr.bf16.mxu0 0
        %2703 = vmatpush1.bf16.msra.mxu0 0
        %2704 = vmatprep.subr.bf16.mxu0 0
        %2705 = vmatpush1.bf16.msra.mxu0 0
        %2706 = vmatprep.subr.bf16.mxu0 0
        %2707 = vmatpush1.bf16.msra.mxu0 0
        %2708 = vmatprep.subr.bf16.mxu0 0
        %2709 = vmatpush1.bf16.msra.mxu0 0
        %2710 = vmatprep.subr.bf16.mxu0 0
        %2711 = vmatpush1.bf16.msra.mxu0 0
        %2712 = vmatprep.subr.bf16.mxu0 0
        %2713 = vmatpush1.bf16.msra.mxu0 0
        %2714 = vmatprep.subr.bf16.mxu0 0
        %2715 = vmatpush1.bf16.msra.mxu0 0
        %2716 = vmatprep.subr.bf16.mxu0 0
        %2717 = vmatpush1.bf16.msra.mxu0 0
        %2718 = vmatprep.subr.bf16.mxu0 0
        %2719 = vmatpush1.bf16.msra.mxu0 0
        %2720 = vmatprep.subr.bf16.mxu0 0
        %2721 = vmatpush1.bf16.msra.mxu0 0
        %2722 = vmatprep.subr.bf16.mxu0 0
        %2723 = vmatpush1.bf16.msra.mxu0 0
        %2724 = vmatprep.subr.bf16.mxu0 0
        %2725 = vmatpush1.bf16.msra.mxu0 0
        %2726 = vmatprep.subr.bf16.mxu0 0
        %2727 = vmatpush1.bf16.msra.mxu0 0
        %2728 = vmatprep.subr.bf16.mxu0 0
        %2729 = vmatpush1.bf16.msra.mxu0 0
        %2730 = vmatprep.mubr.bf16.mxu0 0
        %2731 = vmatmul.mubr.bf16.gmra.mrb[0].mxu0 %v2653
        %v2732 = vpop.f32.mrb[0].mxu0
        %v2733 = vadd.f32 0.0, %v2732
        %v2734 = vpop.f32.mrb[0].mxu0
        %v2735 = vadd.f32 0.0, %v2734
        %v2736 = vpop.f32.mrb[0].mxu0
        %v2737 = vadd.f32 0.0, %v2736
        %v2738 = vpop.f32.mrb[0].mxu0
        %v2739 = vadd.f32 0.0, %v2738
        %2740 = vdwg.mxu0
        %v2743 = vunpack.c.l.b16 %v2618
        %v2744 = vunpack.c.l.b16 %v2619
        %v2745 = vpack.c.b16 %v2744, %v2743
        %v2747 = vsel %vm2106, %v2745, 0
        %2749 = vmatprep.subr.bf16.mxu0 %v2615
        %2750 = vmatpush1.bf16.msra.mxu0 %v2614
        %2751 = vmatprep.subr.bf16.mxu0 0
        %2752 = vmatpush1.bf16.msra.mxu0 0
        %2753 = vmatprep.subr.bf16.mxu0 0
        %2754 = vmatpush1.bf16.msra.mxu0 0
        %2755 = vmatprep.subr.bf16.mxu0 0
        %2756 = vmatpush1.bf16.msra.mxu0 0
        %2757 = vmatprep.subr.bf16.mxu0 0
        %2758 = vmatpush1.bf16.msra.mxu0 0
        %2759 = vmatprep.subr.bf16.mxu0 0
        %2760 = vmatpush1.bf16.msra.mxu0 0
        %2761 = vmatprep.subr.bf16.mxu0 0
        %2762 = vmatpush1.bf16.msra.mxu0 0
        %2763 = vmatprep.subr.bf16.mxu0 0
        %2764 = vmatpush1.bf16.msra.mxu0 0
        %2765 = vmatprep.subr.bf16.mxu0 0
        %2766 = vmatpush1.bf16.msra.mxu0 0
        %2767 = vmatprep.subr.bf16.mxu0 0
        %2768 = vmatpush1.bf16.msra.mxu0 0
        %2769 = vmatprep.subr.bf16.mxu0 0
        %2770 = vmatpush1.bf16.msra.mxu0 0
        %2771 = vmatprep.subr.bf16.mxu0 0
        %2772 = vmatpush1.bf16.msra.mxu0 0
        %2773 = vmatprep.subr.bf16.mxu0 0
        %2774 = vmatpush1.bf16.msra.mxu0 0
        %2775 = vmatprep.subr.bf16.mxu0 0
        %2776 = vmatpush1.bf16.msra.mxu0 0
        %2777 = vmatprep.subr.bf16.mxu0 0
        %2778 = vmatpush1.bf16.msra.mxu0 0
        %2779 = vmatprep.subr.bf16.mxu0 0
        %2780 = vmatpush1.bf16.msra.mxu0 0
        %2781 = vmatprep.mubr.bf16.mxu0 0
        %2782 = vmatmul.mubr.bf16.gmra.mrb[0].mxu0 %v2747
        %v2783 = vpop.f32.mrb[0].mxu0
        %v2784 = vadd.f32 %v2690, %v2783
        %v2785 = vpop.f32.mrb[0].mxu0
        %v2786 = vadd.f32 %v2692, %v2785
        %v2787 = vpop.f32.mrb[0].mxu0
        %v2788 = vadd.f32 %v2694, %v2787
        %v2789 = vpop.f32.mrb[0].mxu0
        %v2790 = vadd.f32 %v2696, %v2789
        %2791 = vdwg.mxu0
        %2792 = vmatprep.subr.bf16.mxu0 %v2617
        %2793 = vmatpush1.bf16.msra.mxu0 %v2616
        %2794 = vmatprep.subr.bf16.mxu0 0
        %2795 = vmatpush1.bf16.msra.mxu0 0
        %2796 = vmatprep.subr.bf16.mxu0 0
        %2797 = vmatpush1.bf16.msra.mxu0 0
        %2798 = vmatprep.subr.bf16.mxu0 0
        %2799 = vmatpush1.bf16.msra.mxu0 0
        %2800 = vmatprep.subr.bf16.mxu0 0
        %2801 = vmatpush1.bf16.msra.mxu0 0
        %2802 = vmatprep.subr.bf16.mxu0 0
        %2803 = vmatpush1.bf16.msra.mxu0 0
        %2804 = vmatprep.subr.bf16.mxu0 0
        %2805 = vmatpush1.bf16.msra.mxu0 0
        %2806 = vmatprep.subr.bf16.mxu0 0
        %2807 = vmatpush1.bf16.msra.mxu0 0
        %2808 = vmatprep.subr.bf16.mxu0 0
        %2809 = vmatpush1.bf16.msra.mxu0 0
        %2810 = vmatprep.subr.bf16.mxu0 0
        %2811 = vmatpush1.bf16.msra.mxu0 0
        %2812 = vmatprep.subr.bf16.mxu0 0
        %2813 = vmatpush1.bf16.msra.mxu0 0
        %2814 = vmatprep.subr.bf16.mxu0 0
        %2815 = vmatpush1.bf16.msra.mxu0 0
        %2816 = vmatprep.subr.bf16.mxu0 0
        %2817 = vmatpush1.bf16.msra.mxu0 0
        %2818 = vmatprep.subr.bf16.mxu0 0
        %2819 = vmatpush1.bf16.msra.mxu0 0
        %2820 = vmatprep.subr.bf16.mxu0 0
        %2821 = vmatpush1.bf16.msra.mxu0 0
        %2822 = vmatprep.subr.bf16.mxu0 0
        %2823 = vmatpush1.bf16.msra.mxu0 0
        %2824 = vmatprep.mubr.bf16.mxu0 0
        %2825 = vmatmul.mubr.bf16.gmra.mrb[0].mxu0 %v2747
        %v2826 = vpop.f32.mrb[0].mxu0
        %v2827 = vadd.f32 %v2733, %v2826
        %v2828 = vpop.f32.mrb[0].mxu0
        %v2829 = vadd.f32 %v2735, %v2828
        %v2830 = vpop.f32.mrb[0].mxu0
        %v2831 = vadd.f32 %v2737, %v2830
        %v2832 = vpop.f32.mrb[0].mxu0
        %v2833 = vadd.f32 %v2739, %v2832
        %2834 = vdwg.mxu0
        %2835 = vst.msk [vmem:[#allocation6] sm:$0xff] %vm1244, %v2598
        %v2836 = vadd.f32 %v2536, %v2784
        %v2837 = vadd.f32 %v2538, %v2786
        %v2838 = vadd.f32 %v2579, %v2827
        %v2839 = vadd.f32 %v2581, %v2829
        %v2840 = vadd.f32 %v2540, %v2788
        %v2841 = vadd.f32 %v2542, %v2790
        %v2842 = vadd.f32 %v2583, %v2831
        %v2843 = vadd.f32 %v2585, %v2833
        %v2844 = vmax.f32 %v2836, 0.0
        %v2845 = vmax.f32 %v2837, 0.0
        %v2846 = vmax.f32 %v2838, 0.0
        %v2847 = vmax.f32 %v2839, 0.0
        %v2848 = vmax.f32 %v2840, 0.0
        %v2849 = vmax.f32 %v2841, 0.0
        %v2850 = vmax.f32 %v2842, 0.0
        %v2851 = vmax.f32 %v2843, 0.0
        %v2852 = vpack.c.bf16 %v2848, %v2844
        %v2853 = vpack.c.bf16 %v2849, %v2845
        %v2854 = vpack.c.bf16 %v2850, %v2846
        %v2855 = vpack.c.bf16 %v2851, %v2847
        %v2856 = vld [vmem:[%s23] sm:$0xf]
        %v2857 = vld [vmem:[%s23 + $0x4] sm:$0xf]
        %v2858 = vld [vmem:[%s24] sm:$0xff]
        %v2859 = vld [vmem:[%s24 + $0x8] sm:$0xff]
        %2861 = vset.pattern.permute.xlu0 0
        %2862 = vperm.xlu0 %2861, %v2858
        %v2863 = vpop.permute.xlu0 %2862
        %2866 = vset.pattern.permute.xlu0 0
        %2867 = vperm.xlu0 %2866, %v2859
        %v2868 = vpop.permute.xlu0 %2867
        %v2872 = vunpack.c.l.b16 %v2856
        %v2873 = vunpack.c.l.b16 %v2857
        %v2874 = vpack.c.b16 %v2873, %v2872
        %v2876 = vsel %vm2106, %v2874, 0
        %2878 = vmatprep.subr.bf16.mxu0 %v2853
        %2879 = vmatpush1.bf16.msra.mxu0 %v2852
        %2880 = vmatprep.subr.bf16.mxu0 0
        %2881 = vmatpush1.bf16.msra.mxu0 0
        %2882 = vmatprep.subr.bf16.mxu0 0
        %2883 = vmatpush1.bf16.msra.mxu0 0
        %2884 = vmatprep.subr.bf16.mxu0 0
        %2885 = vmatpush1.bf16.msra.mxu0 0
        %2886 = vmatprep.subr.bf16.mxu0 0
        %2887 = vmatpush1.bf16.msra.mxu0 0
        %2888 = vmatprep.subr.bf16.mxu0 0
        %2889 = vmatpush1.bf16.msra.mxu0 0
        %2890 = vmatprep.subr.bf16.mxu0 0
        %2891 = vmatpush1.bf16.msra.mxu0 0
        %2892 = vmatprep.subr.bf16.mxu0 0
        %2893 = vmatpush1.bf16.msra.mxu0 0
        %2894 = vmatprep.subr.bf16.mxu0 0
        %2895 = vmatpush1.bf16.msra.mxu0 0
        %2896 = vmatprep.subr.bf16.mxu0 0
        %2897 = vmatpush1.bf16.msra.mxu0 0
        %2898 = vmatprep.subr.bf16.mxu0 0
        %2899 = vmatpush1.bf16.msra.mxu0 0
        %2900 = vmatprep.subr.bf16.mxu0 0
        %2901 = vmatpush1.bf16.msra.mxu0 0
        %2902 = vmatprep.subr.bf16.mxu0 0
        %2903 = vmatpush1.bf16.msra.mxu0 0
        %2904 = vmatprep.subr.bf16.mxu0 0
        %2905 = vmatpush1.bf16.msra.mxu0 0
        %2906 = vmatprep.subr.bf16.mxu0 0
        %2907 = vmatpush1.bf16.msra.mxu0 0
        %2908 = vmatprep.subr.bf16.mxu0 0
        %2909 = vmatpush1.bf16.msra.mxu0 0
        %2910 = vmatprep.mubr.bf16.mxu0 0
        %2911 = vmatmul.mubr.bf16.gmra.mrb[0].mxu0 %v2876
        %v2912 = vpop.f32.mrb[0].mxu0
        %v2913 = vadd.f32 %v2863, %v2912
        %v2914 = vpop.f32.mrb[0].mxu0
        %v2915 = vadd.f32 %v2863, %v2914
        %v2916 = vpop.f32.mrb[0].mxu0
        %v2917 = vadd.f32 %v2868, %v2916
        %v2918 = vpop.f32.mrb[0].mxu0
        %v2919 = vadd.f32 %v2868, %v2918
        %2920 = vdwg.mxu0
        %2921 = vmatprep.subr.bf16.mxu0 %v2855
        %2922 = vmatpush1.bf16.msra.mxu0 %v2854
        %2923 = vmatprep.subr.bf16.mxu0 0
        %2924 = vmatpush1.bf16.msra.mxu0 0
        %2925 = vmatprep.subr.bf16.mxu0 0
        %2926 = vmatpush1.bf16.msra.mxu0 0
        %2927 = vmatprep.subr.bf16.mxu0 0
        %2928 = vmatpush1.bf16.msra.mxu0 0
        %2929 = vmatprep.subr.bf16.mxu0 0
        %2930 = vmatpush1.bf16.msra.mxu0 0
        %2931 = vmatprep.subr.bf16.mxu0 0
        %2932 = vmatpush1.bf16.msra.mxu0 0
        %2933 = vmatprep.subr.bf16.mxu0 0
        %2934 = vmatpush1.bf16.msra.mxu0 0
        %2935 = vmatprep.subr.bf16.mxu0 0
        %2936 = vmatpush1.bf16.msra.mxu0 0
        %2937 = vmatprep.subr.bf16.mxu0 0
        %2938 = vmatpush1.bf16.msra.mxu0 0
        %2939 = vmatprep.subr.bf16.mxu0 0
        %2940 = vmatpush1.bf16.msra.mxu0 0
        %2941 = vmatprep.subr.bf16.mxu0 0
        %2942 = vmatpush1.bf16.msra.mxu0 0
        %2943 = vmatprep.subr.bf16.mxu0 0
        %2944 = vmatpush1.bf16.msra.mxu0 0
        %2945 = vmatprep.subr.bf16.mxu0 0
        %2946 = vmatpush1.bf16.msra.mxu0 0
        %2947 = vmatprep.subr.bf16.mxu0 0
        %2948 = vmatpush1.bf16.msra.mxu0 0
        %2949 = vmatprep.subr.bf16.mxu0 0
        %2950 = vmatpush1.bf16.msra.mxu0 0
        %2951 = vmatprep.subr.bf16.mxu0 0
        %2952 = vmatpush1.bf16.msra.mxu0 0
        %2953 = vmatprep.mubr.bf16.mxu0 0
        %2954 = vmatmul.mubr.bf16.gmra.mrb[0].mxu0 %v2876
        %v2955 = vpop.f32.mrb[0].mxu0
        %v2956 = vadd.f32 %v2863, %v2955
        %v2957 = vpop.f32.mrb[0].mxu0
        %v2958 = vadd.f32 %v2863, %v2957
        %v2959 = vpop.f32.mrb[0].mxu0
        %v2960 = vadd.f32 %v2868, %v2959
        %v2961 = vpop.f32.mrb[0].mxu0
        %v2962 = vadd.f32 %v2868, %v2961
        %2963 = vdwg.mxu0
        %2968 = vrot.lane.b32.xlu0 %v2852, 8
        %v2969 = vpop.permute.xlu0 %2968
        %2970 = vrot.lane.b32.xlu0 %v2853, 8
        %v2971 = vpop.permute.xlu0 %2970
        %2972 = vrot.lane.b32.xlu0 %v2854, 8
        %v2973 = vpop.permute.xlu0 %2972
        %2974 = vrot.lane.b32.xlu0 %v2855, 8
        %v2975 = vpop.permute.xlu0 %2974
        %v2976 = vsel %vm2599, %v2969, %v2971
        %v2977 = vsel %vm2599, %v2971, %v2973
        %v2978 = vsel %vm2599, %v2973, %v2975
        %2984 = vst.msk [vmem:[#allocation7] sm:$0xff] %vm2608, %v2969
        %2985 = vst [vmem:[#allocation7 + $0x8] sm:$0xff] %v2976
        %2986 = vst [vmem:[#allocation7 + $0x10] sm:$0xff] %v2977
        %2987 = vst [vmem:[#allocation7 + $0x18] sm:$0xff] %v2978
        %2988 = vst.msk [vmem:[#allocation7 + $0x20] sm:$0xff] %vm1244, %v2975
        %v2989 = vld [vmem:[#allocation7] sm:$0xff]
        %v2990 = vld [vmem:[#allocation7 + $0x8] sm:$0xff]
        %v2991 = vld [vmem:[#allocation7 + $0x10] sm:$0xff]
        %v2992 = vld [vmem:[#allocation7 + $0x18] sm:$0xff]
        %v2993 = vld [vmem:[%s21] sm:$0xf]
        %v2994 = vld [vmem:[%s21 + $0x4] sm:$0xf]
        %v2995 = vld [vmem:[#allocation7 + $0x20] sm:$0xff]
        %v2996 = vld [vmem:[%s22] sm:$0xf]
        %v2997 = vld [vmem:[%s22 + $0x4] sm:$0xf]
        %v3000 = vunpack.c.l.b16 %v2996
        %v3001 = vunpack.c.l.b16 %v2997
        %v3002 = vpack.c.b16 %v3001, %v3000
        %3008 = vrot.lane.b32.xlu0 %v2989, 124
        %v3009 = vpop.permute.xlu0 %3008
        %3010 = vrot.lane.b32.xlu0 %v2990, 124
        %v3011 = vpop.permute.xlu0 %3010
        %3012 = vrot.lane.b32.xlu0 %v2991, 124
        %v3013 = vpop.permute.xlu0 %3012
        %3014 = vrot.lane.b32.xlu0 %v2992, 124
        %v3015 = vpop.permute.xlu0 %3014
        %3016 = vrot.lane.b32.xlu0 %v2995, 124
        %v3017 = vpop.permute.xlu0 %3016
        %v3018 = vsel %vm2643, %v3009, %v3011
        %v3019 = vsel %vm2643, %v3011, %v3013
        %v3020 = vsel %vm2643, %v3013, %v3015
        %v3021 = vsel %vm2643, %v3015, %v3017
        %v3027 = vsel %vm2106, %v3002, 0
        %3029 = vmatprep.subr.bf16.mxu0 %v3019
        %3030 = vmatpush1.bf16.msra.mxu0 %v3018
        %3031 = vmatprep.subr.bf16.mxu0 0
        %3032 = vmatpush1.bf16.msra.mxu0 0
        %3033 = vmatprep.subr.bf16.mxu0 0
        %3034 = vmatpush1.bf16.msra.mxu0 0
        %3035 = vmatprep.subr.bf16.mxu0 0
        %3036 = vmatpush1.bf16.msra.mxu0 0
        %3037 = vmatprep.subr.bf16.mxu0 0
        %3038 = vmatpush1.bf16.msra.mxu0 0
        %3039 = vmatprep.subr.bf16.mxu0 0
        %3040 = vmatpush1.bf16.msra.mxu0 0
        %3041 = vmatprep.subr.bf16.mxu0 0
        %3042 = vmatpush1.bf16.msra.mxu0 0
        %3043 = vmatprep.subr.bf16.mxu0 0
        %3044 = vmatpush1.bf16.msra.mxu0 0
        %3045 = vmatprep.subr.bf16.mxu0 0
        %3046 = vmatpush1.bf16.msra.mxu0 0
        %3047 = vmatprep.subr.bf16.mxu0 0
        %3048 = vmatpush1.bf16.msra.mxu0 0
        %3049 = vmatprep.subr.bf16.mxu0 0
        %3050 = vmatpush1.bf16.msra.mxu0 0
        %3051 = vmatprep.subr.bf16.mxu0 0
        %3052 = vmatpush1.bf16.msra.mxu0 0
        %3053 = vmatprep.subr.bf16.mxu0 0
        %3054 = vmatpush1.bf16.msra.mxu0 0
        %3055 = vmatprep.subr.bf16.mxu0 0
        %3056 = vmatpush1.bf16.msra.mxu0 0
        %3057 = vmatprep.subr.bf16.mxu0 0
        %3058 = vmatpush1.bf16.msra.mxu0 0
        %3059 = vmatprep.subr.bf16.mxu0 0
        %3060 = vmatpush1.bf16.msra.mxu0 0
        %3061 = vmatprep.mubr.bf16.mxu0 0
        %3062 = vmatmul.mubr.bf16.gmra.mrb[0].mxu0 %v3027
        %v3063 = vpop.f32.mrb[0].mxu0
        %v3064 = vadd.f32 0.0, %v3063
        %v3065 = vpop.f32.mrb[0].mxu0
        %v3066 = vadd.f32 0.0, %v3065
        %v3067 = vpop.f32.mrb[0].mxu0
        %v3068 = vadd.f32 0.0, %v3067
        %v3069 = vpop.f32.mrb[0].mxu0
        %v3070 = vadd.f32 0.0, %v3069
        %3071 = vdwg.mxu0
        %3072 = vmatprep.subr.bf16.mxu0 %v3021
        %3073 = vmatpush1.bf16.msra.mxu0 %v3020
        %3074 = vmatprep.subr.bf16.mxu0 0
        %3075 = vmatpush1.bf16.msra.mxu0 0
        %3076 = vmatprep.subr.bf16.mxu0 0
        %3077 = vmatpush1.bf16.msra.mxu0 0
        %3078 = vmatprep.subr.bf16.mxu0 0
        %3079 = vmatpush1.bf16.msra.mxu0 0
        %3080 = vmatprep.subr.bf16.mxu0 0
        %3081 = vmatpush1.bf16.msra.mxu0 0
        %3082 = vmatprep.subr.bf16.mxu0 0
        %3083 = vmatpush1.bf16.msra.mxu0 0
        %3084 = vmatprep.subr.bf16.mxu0 0
        %3085 = vmatpush1.bf16.msra.mxu0 0
        %3086 = vmatprep.subr.bf16.mxu0 0
        %3087 = vmatpush1.bf16.msra.mxu0 0
        %3088 = vmatprep.subr.bf16.mxu0 0
        %3089 = vmatpush1.bf16.msra.mxu0 0
        %3090 = vmatprep.subr.bf16.mxu0 0
        %3091 = vmatpush1.bf16.msra.mxu0 0
        %3092 = vmatprep.subr.bf16.mxu0 0
        %3093 = vmatpush1.bf16.msra.mxu0 0
        %3094 = vmatprep.subr.bf16.mxu0 0
        %3095 = vmatpush1.bf16.msra.mxu0 0
        %3096 = vmatprep.subr.bf16.mxu0 0
        %3097 = vmatpush1.bf16.msra.mxu0 0
        %3098 = vmatprep.subr.bf16.mxu0 0
        %3099 = vmatpush1.bf16.msra.mxu0 0
        %3100 = vmatprep.subr.bf16.mxu0 0
        %3101 = vmatpush1.bf16.msra.mxu0 0
        %3102 = vmatprep.subr.bf16.mxu0 0
        %3103 = vmatpush1.bf16.msra.mxu0 0
        %3104 = vmatprep.mubr.bf16.mxu0 0
        %3105 = vmatmul.mubr.bf16.gmra.mrb[0].mxu0 %v3027
        %v3106 = vpop.f32.mrb[0].mxu0
        %v3107 = vadd.f32 0.0, %v3106
        %v3108 = vpop.f32.mrb[0].mxu0
        %v3109 = vadd.f32 0.0, %v3108
        %v3110 = vpop.f32.mrb[0].mxu0
        %v3111 = vadd.f32 0.0, %v3110
        %v3112 = vpop.f32.mrb[0].mxu0
        %v3113 = vadd.f32 0.0, %v3112
        %3114 = vdwg.mxu0
        %v3117 = vunpack.c.l.b16 %v2993
        %v3118 = vunpack.c.l.b16 %v2994
        %v3119 = vpack.c.b16 %v3118, %v3117
        %v3121 = vsel %vm2106, %v3119, 0
        %3123 = vmatprep.subr.bf16.mxu0 %v2990
        %3124 = vmatpush1.bf16.msra.mxu0 %v2989
        %3125 = vmatprep.subr.bf16.mxu0 0
        %3126 = vmatpush1.bf16.msra.mxu0 0
        %3127 = vmatprep.subr.bf16.mxu0 0
        %3128 = vmatpush1.bf16.msra.mxu0 0
        %3129 = vmatprep.subr.bf16.mxu0 0
        %3130 = vmatpush1.bf16.msra.mxu0 0
        %3131 = vmatprep.subr.bf16.mxu0 0
        %3132 = vmatpush1.bf16.msra.mxu0 0
        %3133 = vmatprep.subr.bf16.mxu0 0
        %3134 = vmatpush1.bf16.msra.mxu0 0
        %3135 = vmatprep.subr.bf16.mxu0 0
        %3136 = vmatpush1.bf16.msra.mxu0 0
        %3137 = vmatprep.subr.bf16.mxu0 0
        %3138 = vmatpush1.bf16.msra.mxu0 0
        %3139 = vmatprep.subr.bf16.mxu0 0
        %3140 = vmatpush1.bf16.msra.mxu0 0
        %3141 = vmatprep.subr.bf16.mxu0 0
        %3142 = vmatpush1.bf16.msra.mxu0 0
        %3143 = vmatprep.subr.bf16.mxu0 0
        %3144 = vmatpush1.bf16.msra.mxu0 0
        %3145 = vmatprep.subr.bf16.mxu0 0
        %3146 = vmatpush1.bf16.msra.mxu0 0
        %3147 = vmatprep.subr.bf16.mxu0 0
        %3148 = vmatpush1.bf16.msra.mxu0 0
        %3149 = vmatprep.subr.bf16.mxu0 0
        %3150 = vmatpush1.bf16.msra.mxu0 0
        %3151 = vmatprep.subr.bf16.mxu0 0
        %3152 = vmatpush1.bf16.msra.mxu0 0
        %3153 = vmatprep.subr.bf16.mxu0 0
        %3154 = vmatpush1.bf16.msra.mxu0 0
        %3155 = vmatprep.mubr.bf16.mxu0 0
        %3156 = vmatmul.mubr.bf16.gmra.mrb[0].mxu0 %v3121
        %v3157 = vpop.f32.mrb[0].mxu0
        %v3158 = vadd.f32 %v3064, %v3157
        %v3159 = vpop.f32.mrb[0].mxu0
        %v3160 = vadd.f32 %v3066, %v3159
        %v3161 = vpop.f32.mrb[0].mxu0
        %v3162 = vadd.f32 %v3068, %v3161
        %v3163 = vpop.f32.mrb[0].mxu0
        %v3164 = vadd.f32 %v3070, %v3163
        %3165 = vdwg.mxu0
        %3166 = vmatprep.subr.bf16.mxu0 %v2992
        %3167 = vmatpush1.bf16.msra.mxu0 %v2991
        %3168 = vmatprep.subr.bf16.mxu0 0
        %3169 = vmatpush1.bf16.msra.mxu0 0
        %3170 = vmatprep.subr.bf16.mxu0 0
        %3171 = vmatpush1.bf16.msra.mxu0 0
        %3172 = vmatprep.subr.bf16.mxu0 0
        %3173 = vmatpush1.bf16.msra.mxu0 0
        %3174 = vmatprep.subr.bf16.mxu0 0
        %3175 = vmatpush1.bf16.msra.mxu0 0
        %3176 = vmatprep.subr.bf16.mxu0 0
        %3177 = vmatpush1.bf16.msra.mxu0 0
        %3178 = vmatprep.subr.bf16.mxu0 0
        %3179 = vmatpush1.bf16.msra.mxu0 0
        %3180 = vmatprep.subr.bf16.mxu0 0
        %3181 = vmatpush1.bf16.msra.mxu0 0
        %3182 = vmatprep.subr.bf16.mxu0 0
        %3183 = vmatpush1.bf16.msra.mxu0 0
        %3184 = vmatprep.subr.bf16.mxu0 0
        %3185 = vmatpush1.bf16.msra.mxu0 0
        %3186 = vmatprep.subr.bf16.mxu0 0
        %3187 = vmatpush1.bf16.msra.mxu0 0
        %3188 = vmatprep.subr.bf16.mxu0 0
        %3189 = vmatpush1.bf16.msra.mxu0 0
        %3190 = vmatprep.subr.bf16.mxu0 0
        %3191 = vmatpush1.bf16.msra.mxu0 0
        %3192 = vmatprep.subr.bf16.mxu0 0
        %3193 = vmatpush1.bf16.msra.mxu0 0
        %3194 = vmatprep.subr.bf16.mxu0 0
        %3195 = vmatpush1.bf16.msra.mxu0 0
        %3196 = vmatprep.subr.bf16.mxu0 0
        %3197 = vmatpush1.bf16.msra.mxu0 0
        %3198 = vmatprep.mubr.bf16.mxu0 0
        %3199 = vmatmul.mubr.bf16.gmra.mrb[0].mxu0 %v3121
        %v3200 = vpop.f32.mrb[0].mxu0
        %v3201 = vadd.f32 %v3107, %v3200
        %v3202 = vpop.f32.mrb[0].mxu0
        %v3203 = vadd.f32 %v3109, %v3202
        %v3204 = vpop.f32.mrb[0].mxu0
        %v3205 = vadd.f32 %v3111, %v3204
        %v3206 = vpop.f32.mrb[0].mxu0
        %v3207 = vadd.f32 %v3113, %v3206
        %3208 = vdwg.mxu0
        %3209 = vst.msk [vmem:[#allocation7] sm:$0xff] %vm1244, %v2975
        %v3210 = vadd.f32 %v2913, %v3158
        %v3211 = vadd.f32 %v2915, %v3160
        %v3212 = vadd.f32 %v2956, %v3201
        %v3213 = vadd.f32 %v2958, %v3203
        %v3214 = vadd.f32 %v2917, %v3162
        %v3215 = vadd.f32 %v2919, %v3164
        %v3216 = vadd.f32 %v2960, %v3205
        %v3217 = vadd.f32 %v2962, %v3207
        %v3218 = vmax.f32 %v3210, 0.0
        %v3219 = vmax.f32 %v3211, 0.0
        %v3220 = vmax.f32 %v3212, 0.0
        %v3221 = vmax.f32 %v3213, 0.0
        %v3222 = vmax.f32 %v3214, 0.0
        %v3223 = vmax.f32 %v3215, 0.0
        %v3224 = vmax.f32 %v3216, 0.0
        %v3225 = vmax.f32 %v3217, 0.0
        %v3226 = vunpack.c.l.bf16 %v2475
        %v3227 = vunpack.c.l.bf16 %v2476
        %v3228 = vunpack.c.l.bf16 %v2477
        %v3229 = vunpack.c.l.bf16 %v2478
        %v3230 = vunpack.c.h.bf16 %v2475
        %v3231 = vunpack.c.h.bf16 %v2476
        %v3232 = vunpack.c.h.bf16 %v2477
        %v3233 = vunpack.c.h.bf16 %v2478
        %v3234 = vadd.f32 %v3218, %v3226
        %v3235 = vadd.f32 %v3219, %v3227
        %v3236 = vadd.f32 %v3220, %v3228
        %v3237 = vadd.f32 %v3221, %v3229
        %v3238 = vadd.f32 %v3222, %v3230
        %v3239 = vadd.f32 %v3223, %v3231
        %v3240 = vadd.f32 %v3224, %v3232
        %v3241 = vadd.f32 %v3225, %v3233
        %v3242 = vmax.f32 %v3234, 0.0
        %v3243 = vmax.f32 %v3235, 0.0
        %v3244 = vmax.f32 %v3236, 0.0
        %v3245 = vmax.f32 %v3237, 0.0
        %v3246 = vmax.f32 %v3238, 0.0
        %v3247 = vmax.f32 %v3239, 0.0
        %v3248 = vmax.f32 %v3240, 0.0
        %v3249 = vmax.f32 %v3241, 0.0
        %v3250 = vpack.c.bf16 %v3246, %v3242
        %v3251 = vpack.c.bf16 %v3247, %v3243
        %v3252 = vpack.c.bf16 %v3248, %v3244
        %v3253 = vpack.c.bf16 %v3249, %v3245
        %v3258 = vunpack.c.l.b16 %v3250
        %v3259 = vunpack.c.l.b16 %v3251
        %v3260 = vunpack.c.l.b16 %v3252
        %v3261 = vunpack.c.l.b16 %v3253
        %v3262 = vunpack.c.h.b16 %v3250
        %v3263 = vunpack.c.h.b16 %v3251
        %v3264 = vunpack.c.h.b16 %v3252
        %v3265 = vunpack.c.h.b16 %v3253
        %v3266 = vpack.c.b16 %v3259, %v3258
        %v3267 = vpack.c.b16 %v3261, %v3260
        %v3268 = vpack.c.b16 %v3263, %v3262
        %v3269 = vpack.c.b16 %v3265, %v3264
        %3274 = vst [vmem:[%s782] sm:$0xff] %v3266
        %3275 = vst [vmem:[%s782 + $0x8] sm:$0xff] %v3267
        %3276 = vst [vmem:[%s782 + $0x10] sm:$0xff] %v3268
        %3277 = vst [vmem:[%s782 + $0x18] sm:$0xff] %v3269
        %s3278 = sand.u32 %s593, 1
        %s3279 = scalar_lea.sflag [#allocation9], %s3278
        %s3280 = sand.u32 %s593, 1
        %s3281 = smul.addr %s3280, 32
        %s3282 = scalar_lea.vmem [#allocation8], %s3281
        // Predicated region
        $region125: #{tpu_custom_call.1} parent=119 // pred_check
          %p3283 = pneg %p603
        $region126: #{tpu_custom_call.1} parent=119 // pred_check_branch
          %3285 = sbr.rel (%p3283) target = $region128
        $region127: #{tpu_custom_call.1} parent=119 // pred_region
          %s3286 = smul.u32 4, %s44
          %s3288 = ssub.s32 512, 512
          %3289 = vsyncadd %s3279, %s3288
          %s3290 = smul.addr %s43, 16
          %s3291 = sadd.s32 %s3286, %s3290
          %s3292 = smul.addr %s3291, 64
          %s3293 = scalar_lea.hbm %s25, %s3292
          %s3294 = sshll.u32 %s3282, 4
          %s3295 = int_to_ptr.vmem [resolvable:$true] %s3294
          %3300 = dma.vmem_to_hbm [thread:$0]  %s3295, 512, %s3293, %s3279, 256, 512, 16
        $region128: #{tpu_custom_call.1} parent=119 // pred_fallthru
          _
      $region120: #{tpu_custom_call.1} parent=5 // pred_fallthru
        _
      %p3301 = scmp.le.s32.totalorder 2, %s34
      // Predicated region
      $region129: #{tpu_custom_call.1} parent=5 // pred_check
        %p3302 = pneg %p3301
      $region130: #{tpu_custom_call.1} parent=5 // pred_check_branch
        %3304 = sbr.rel (%p3302) target = $region132
      $region131: #{tpu_custom_call.1} parent=5 // pred_region
        %s3305 = ssub.s32 %s34, 2
        // Predicated region
        $region133: #{tpu_custom_call.1} parent=131 // pred_check
          %p3306 = pneg %p609
        $region134: #{tpu_custom_call.1} parent=131 // pred_check_branch
          %3308 = sbr.rel (%p3306) target = $region136
        $region135: #{tpu_custom_call.1} parent=131 // pred_region
          %s3309 = sand.u32 %s594, 1
          %s3310 = scalar_lea.sflag [#allocation9], %s3309
          %s3311 = sand.u32 %s594, 1
          %s3312 = smul.addr %s3311, 32
          %s3313 = scalar_lea.vmem [#allocation8], %s3312
          %3314 = dma.done %s3310, 512
        $region136: #{tpu_custom_call.1} parent=131 // pred_fallthru
          _
      $region132: #{tpu_custom_call.1} parent=5 // pred_fallthru
        _
    $region6: #{tpu_custom_call.1} parent=1 // loop_footer
      %s38 = sadd.s32 1, %s34
    $region7: #{tpu_custom_call.1} parent=1 // loop_footer_branch
      %33 = sbr.rel target = $region3
    $region8: #{tpu_custom_call.1} parent=1 // loop_exit
      _
    %3315 = vsyncpa [#allocation9], 1
    %s3316 = scalar_lea.sflag [#allocation9], 1
    %3317 = vsyncpa %s3316, 1

</llo_original>
